<compile_context>
chip_gen: v6e
topology: v6e:2x2x1
jax: 0.10.0
libtpu: 0.0.40
codegen_flags: <defaults>
</compile_context>

<pallas_src>
import jax
import jax.numpy as jnp
from jax.experimental import pallas as pl
from jax.experimental.pallas import tpu as pltpu

HIDDEN = 256       # hardcoded by the module's .reshape(-1, 15, 256) / .reshape(-1, 256)
MAX_LENGTH = 15
LPAD = 16          # encoder length padded to a sublane multiple
EMB = 128          # embedding_size
VOCAB = 512        # output_size (vocab)


def attn_decoder_kernel(
    tok_ref,                                     # (T,) int32 SMEM (scalar prefetch)
    emb_ref, enc_ref, h0_ref, c0_ref,            # activations / initial state
    wa_e_ref, wa_h_ref, ba_ref, wa2_ref, ba2_ref,
    wc_ref, bc_ref, wlstm_ref, blstm_ref, wout_ref, bout_ref,
    logp_ref, hout_ref, cout_ref, attnw_ref,     # outputs (VMEM-resident)
    h_sc, c_sc,                                  # carried LSTM state (VMEM scratch)
):
    del tok_ref  # only consumed by the embedding BlockSpec index_map
    t = pl.program_id(0)
    f32, bf16 = jnp.float32, jnp.bfloat16

    @pl.when(t == 0)
    def _():
        h_sc[...] = h0_ref[...]
        c_sc[...] = c0_ref[...]

    h0 = h_sc[...]                 # (1, H) f32
    c0 = c_sc[...]                 # (1, H) f32
    emb = emb_ref[0]               # (1, E) f32  dropout(embedding(token)), eval mode
    enc = enc_ref[...]             # (LPAD, H) f32, rows >= MAX_LENGTH are zero pad

    # --- attention scores: attn2(relu(attn(cat(encoder_outputs, broadcast(h0), dim=2)))) ---
    # cat along features == split attn's (2H, H) weight into encoder / hidden halves.
    z = (jnp.dot(enc.astype(bf16), wa_e_ref[...], preferred_element_type=f32)
         + jnp.dot(h0.astype(bf16), wa_h_ref[...], preferred_element_type=f32)
         + ba_ref[...])
    z = jnp.maximum(z, 0.0)                                             # (LPAD, H)
    # attn2: Linear(H -> 1) as VPU mul + lane reduction (avoids an N=1 MXU matmul).
    scores = jnp.sum(z * wa2_ref[...], axis=-1, keepdims=True) + ba2_ref[...]   # (LPAD, 1)

    # softmax over the 15 real encoder positions (torch dim=1); mask the pad row.
    pos = jax.lax.broadcasted_iota(jnp.int32, (LPAD, 1), 0)
    scores = jnp.where(pos < MAX_LENGTH, scores, jnp.float32(-1e30))
    m = jnp.max(scores, axis=0, keepdims=True)
    e = jnp.exp(scores - m)
    attn_w = e / jnp.sum(e, axis=0, keepdims=True)                      # (LPAD, 1)
    attnw_ref[pl.ds(t, 1)] = attn_w[None]                               # (1, LPAD, 1)

    # attn_applied = bmm(attn_w^T, encoder_outputs) -> (1, H); pad row has weight 0.
    applied = jnp.sum(attn_w * enc, axis=0, keepdims=True)

    # attn_combine(cat(embedded, attn_applied, dim=2)) + relu : single fused dot.
    ec = jnp.concatenate([emb, applied], axis=1).astype(bf16)           # (1, E+H)
    x = jnp.maximum(
        jnp.dot(ec, wc_ref[...], preferred_element_type=f32) + bc_ref[...], 0.0)

    # --- single-step LSTM cell, fused x/h matmul (PyTorch gate order i, f, g, o) ---
    xh = jnp.concatenate([x, h0], axis=1).astype(bf16)                  # (1, 2H)
    gates = jnp.dot(xh, wlstm_ref[...], preferred_element_type=f32) + blstm_ref[...]
    i_g = jax.nn.sigmoid(gates[:, 0 * HIDDEN:1 * HIDDEN])
    f_g = jax.nn.sigmoid(gates[:, 1 * HIDDEN:2 * HIDDEN])
    g_g = jnp.tanh(gates[:, 2 * HIDDEN:3 * HIDDEN])
    o_g = jax.nn.sigmoid(gates[:, 3 * HIDDEN:4 * HIDDEN])
    c1 = f_g * c0 + i_g * g_g
    h1 = o_g * jnp.tanh(c1)
    h_sc[...] = h1
    c_sc[...] = c1
    hout_ref[...] = h1              # final state == last grid step's write
    cout_ref[...] = c1

    # --- output projection + log_softmax(dim=1) ---
    logits = (jnp.dot(h1.astype(bf16), wout_ref[...], preferred_element_type=f32)
              + bout_ref[...])                                          # (1, VOCAB)
    lmax = jnp.max(logits, axis=1, keepdims=True)
    shifted = logits - lmax
    lse = jnp.log(jnp.sum(jnp.exp(shifted), axis=1, keepdims=True))
    logp_ref[pl.ds(t, 1), :] = shifted - lse


def init_params(key):
    ks = jax.random.split(key, 12)
    s = 0.05
    f32, bf16 = jnp.float32, jnp.bfloat16
    wa = s * jax.random.normal(ks[1], (2 * HIDDEN, HIDDEN), f32)        # attn (2H -> H), (in, out)
    wih = s * jax.random.normal(ks[7], (HIDDEN, 4 * HIDDEN), f32)       # LSTM weight_ih^T
    whh = s * jax.random.normal(ks[8], (HIDDEN, 4 * HIDDEN), f32)       # LSTM weight_hh^T
    bih = s * jax.random.normal(ks[9], (1, 4 * HIDDEN), f32)
    bhh = s * jax.random.normal(ks[10], (1, 4 * HIDDEN), f32)
    return {
        "embedding": s * jax.random.normal(ks[0], (VOCAB, EMB), f32),
        "wa_e": wa[:HIDDEN].astype(bf16),        # encoder-outputs half of attn
        "wa_h": wa[HIDDEN:].astype(bf16),        # broadcast-hidden half of attn
        "ba":   s * jax.random.normal(ks[2], (1, HIDDEN), f32),
        "wa2":  (s * jax.random.normal(ks[3], (1, HIDDEN), f32)).astype(bf16),  # attn2 (H->1) as a row
        "ba2":  s * jax.random.normal(ks[4], (1, 1), f32),
        "wc":   (s * jax.random.normal(ks[5], (EMB + HIDDEN, HIDDEN), f32)).astype(bf16),
        "bc":   s * jax.random.normal(ks[6], (1, HIDDEN), f32),
        "w_lstm": jnp.concatenate([wih, whh], axis=0).astype(bf16),     # (2H, 4H) fused
        "b_lstm": bih + bhh,                                            # (1, 4H) fused
        "wout": (s * jax.random.normal(ks[11], (HIDDEN, VOCAB), f32)).astype(bf16),
        "bout": jnp.zeros((1, VOCAB), f32),
    }


def attn_decoder_forward(tokens, hidden, context, encoder_outputs, params):
    """Runs T teacher-forced decode steps of AttnDecoderRNN.forward in one pallas_call.

    Returns (log_softmax (T, VOCAB), final hidden (1,1,H), final cell (1,1,H),
    per-step attention weights (T, 15, 1)).  T == 1 matches the module exactly.
    """
    tokens = jnp.asarray(tokens, jnp.int32).reshape(-1)
    T = int(tokens.shape[0])
    enc = encoder_outputs.reshape(MAX_LENGTH, HIDDEN).astype(jnp.float32)
    enc_pad = jnp.pad(enc, ((0, LPAD - MAX_LENGTH), (0, 0)))            # (16, H)
    h0 = hidden.reshape(1, HIDDEN).astype(jnp.float32)
    c0 = context.reshape(1, HIDDEN).astype(jnp.float32)
    emb_table = params["embedding"].reshape(VOCAB, 1, EMB)
    # TODO(synk): training-mode dropout on the embedding is omitted (eval-mode identity).

    weights = (params["wa_e"], params["wa_h"], params["ba"], params["wa2"],
               params["ba2"], params["wc"], params["bc"],
               params["w_lstm"], params["b_lstm"], params["wout"], params["bout"])

    def _resident(shape):   # grid-invariant block: DMA'd once, stays in VMEM
        return pl.BlockSpec(shape, lambda t, tok: (0,) * len(shape))

    in_specs = (
        [pl.BlockSpec((1, 1, EMB), lambda t, tok: (tok[t], 0, 0)),      # embedding row gather
         _resident((LPAD, HIDDEN)),                                     # encoder outputs
         _resident((1, HIDDEN)),                                        # initial h
         _resident((1, HIDDEN))]                                        # initial c
        + [_resident(w.shape) for w in weights]
    )
    out_specs = (
        _resident((T, VOCAB)),          # per-step log-probs (written back once)
        _resident((1, HIDDEN)),         # final hidden
        _resident((1, HIDDEN)),         # final cell
        _resident((T, LPAD, 1)),        # per-step attention weights
    )
    out_shape = (
        jax.ShapeDtypeStruct((T, VOCAB), jnp.float32),
        jax.ShapeDtypeStruct((1, HIDDEN), jnp.float32),
        jax.ShapeDtypeStruct((1, HIDDEN), jnp.float32),
        jax.ShapeDtypeStruct((T, LPAD, 1), jnp.float32),
    )
    grid_spec = pltpu.PrefetchScalarGridSpec(
        num_scalar_prefetch=1,
        grid=(T,),
        in_specs=in_specs,
        out_specs=out_specs,
        scratch_shapes=[pltpu.VMEM((1, HIDDEN), jnp.float32),   # carried h
                        pltpu.VMEM((1, HIDDEN), jnp.float32)],  # carried c
    )
    logp, h1, c1, attn_w = pl.pallas_call(
        attn_decoder_kernel,
        out_shape=out_shape,
        grid_spec=grid_spec,
        compiler_params=pltpu.CompilerParams(
            dimension_semantics=("arbitrary",)),    # sequential state carry
    )(tokens, emb_table, enc_pad, h0, c0, *weights)

    return (logp,                                   # (T, VOCAB)
            h1.reshape(1, 1, HIDDEN),               # (1, 1, HIDDEN)
            c1.reshape(1, 1, HIDDEN),               # (1, 1, HIDDEN)
            attn_w[:, :MAX_LENGTH, :])              # (T, 15, 1)


if __name__ == "__main__":
    key = jax.random.PRNGKey(0)
    kp, k1, k2, k3, k4 = jax.random.split(key, 5)
    params = init_params(kp)

    T = 4
    tokens = jax.random.randint(k4, (T,), 0, VOCAB, dtype=jnp.int32)       # teacher-forced ids
    hidden = jax.random.normal(k1, (1, 1, HIDDEN), jnp.float32)            # h_0
    context = jax.random.normal(k2, (1, 1, HIDDEN), jnp.float32)           # c_0
    encoder_outputs = jax.random.normal(k3, (MAX_LENGTH, HIDDEN), jnp.float32)

    logp, h1, c1, attn_w = attn_decoder_forward(
        tokens, hidden, context, encoder_outputs, params)
    jax.block_until_ready((logp, h1, c1, attn_w))

    assert logp.shape == (T, VOCAB)
    assert h1.shape == (1, 1, HIDDEN) and c1.shape == (1, 1, HIDDEN)
    assert attn_w.shape == (T, MAX_LENGTH, 1)
    assert bool(jnp.all(jnp.isfinite(logp)))
    # attention weights sum to 1 over the 15 encoder positions every step
    assert bool(jnp.allclose(attn_w.sum(axis=1), 1.0, atol=1e-3))
    # log_softmax rows exponentiate to a proper distribution
    assert bool(jnp.allclose(jnp.exp(logp).sum(axis=1), 1.0, atol=1e-3))
    print("KERNEL_OK")
</pallas_src>

<mosaic_0001>
module attributes {stable_mosaic.version = 11 : i64} {
  func.func @attn_decoder_kernel(%arg0: i32, %arg1: memref<4xi32, #tpu.memory_space<smem>>, %arg2: memref<1x1x128xf32, #tpu.memory_space<vmem>>, %arg3: memref<16x256xf32, #tpu.memory_space<vmem>>, %arg4: memref<1x256xf32, #tpu.memory_space<vmem>>, %arg5: memref<1x256xf32, #tpu.memory_space<vmem>>, %arg6: memref<256x256xbf16, #tpu.memory_space<vmem>>, %arg7: memref<256x256xbf16, #tpu.memory_space<vmem>>, %arg8: memref<1x256xf32, #tpu.memory_space<vmem>>, %arg9: memref<1x256xbf16, #tpu.memory_space<vmem>>, %arg10: memref<1x1xf32, #tpu.memory_space<vmem>>, %arg11: memref<384x256xbf16, #tpu.memory_space<vmem>>, %arg12: memref<1x256xf32, #tpu.memory_space<vmem>>, %arg13: memref<512x1024xbf16, #tpu.memory_space<vmem>>, %arg14: memref<1x1024xf32, #tpu.memory_space<vmem>>, %arg15: memref<256x512xbf16, #tpu.memory_space<vmem>>, %arg16: memref<1x512xf32, #tpu.memory_space<vmem>>, %arg17: memref<4x512xf32, #tpu.memory_space<vmem>>, %arg18: memref<1x256xf32, #tpu.memory_space<vmem>>, %arg19: memref<1x256xf32, #tpu.memory_space<vmem>>, %arg20: memref<4x16x1xf32, #tpu.memory_space<vmem>>, %arg21: memref<1x256xf32, #tpu.memory_space<vmem>>, %arg22: memref<1x256xf32, #tpu.memory_space<vmem>>) attributes {dimension_semantics = [#tpu.dimension_semantics<arbitrary>], iteration_bounds = array<i64: 4>, scalar_prefetch = 1 : i64, scratch_operands = 2 : i64, tpu.core_type = #tpu.core_type<tc>, window_params = [{transform_indices = @transform_0, window_bounds = array<i64: 1, 1, 128>}, {pipeline_mode = #tpu.pipeline_mode<synchronous>, transform_indices = @transform_1, window_bounds = array<i64: 16, 256>}, {pipeline_mode = #tpu.pipeline_mode<synchronous>, transform_indices = @transform_2, window_bounds = array<i64: 1, 256>}, {pipeline_mode = #tpu.pipeline_mode<synchronous>, transform_indices = @transform_3, window_bounds = array<i64: 1, 256>}, {pipeline_mode = #tpu.pipeline_mode<synchronous>, transform_indices = @transform_4, window_bounds = array<i64: 256, 256>}, {pipeline_mode = #tpu.pipeline_mode<synchronous>, transform_indices = @transform_5, window_bounds = array<i64: 256, 256>}, {pipeline_mode = #tpu.pipeline_mode<synchronous>, transform_indices = @transform_6, window_bounds = array<i64: 1, 256>}, {pipeline_mode = #tpu.pipeline_mode<synchronous>, transform_indices = @transform_7, window_bounds = array<i64: 1, 256>}, {pipeline_mode = #tpu.pipeline_mode<synchronous>, transform_indices = @transform_8, window_bounds = array<i64: 1, 1>}, {pipeline_mode = #tpu.pipeline_mode<synchronous>, transform_indices = @transform_9, window_bounds = array<i64: 384, 256>}, {pipeline_mode = #tpu.pipeline_mode<synchronous>, transform_indices = @transform_10, window_bounds = array<i64: 1, 256>}, {pipeline_mode = #tpu.pipeline_mode<synchronous>, transform_indices = @transform_11, window_bounds = array<i64: 512, 1024>}, {pipeline_mode = #tpu.pipeline_mode<synchronous>, transform_indices = @transform_12, window_bounds = array<i64: 1, 1024>}, {pipeline_mode = #tpu.pipeline_mode<synchronous>, transform_indices = @transform_13, window_bounds = array<i64: 256, 512>}, {pipeline_mode = #tpu.pipeline_mode<synchronous>, transform_indices = @transform_14, window_bounds = array<i64: 1, 512>}, {pipeline_mode = #tpu.pipeline_mode<synchronous>, transform_indices = @transform_15, window_bounds = array<i64: 4, 512>}, {pipeline_mode = #tpu.pipeline_mode<synchronous>, transform_indices = @transform_16, window_bounds = array<i64: 1, 256>}, {pipeline_mode = #tpu.pipeline_mode<synchronous>, transform_indices = @transform_17, window_bounds = array<i64: 1, 256>}, {pipeline_mode = #tpu.pipeline_mode<synchronous>, transform_indices = @transform_18, window_bounds = array<i64: 4, 16, 1>}]} {
    %c0_i32 = arith.constant 0 : i32
    %0 = arith.cmpi eq, %arg0, %c0_i32 : i32
    %1 = arith.extui %0 : i1 to i32
    %c0_i32_0 = arith.constant 0 : i32
    %2 = arith.cmpi ne, %1, %c0_i32_0 : i32
    scf.if %2 {
      %c0_58 = arith.constant 0 : index
      %c0_59 = arith.constant 0 : index
      %111 = vector.load %arg4[%c0_58, %c0_59] : memref<1x256xf32, #tpu.memory_space<vmem>>, vector<1x256xf32>
      %c0_60 = arith.constant 0 : index
      %c0_61 = arith.constant 0 : index
      %112 = vector.load %arg21[%c0_60, %c0_61] : memref<1x256xf32, #tpu.memory_space<vmem>>, vector<1x256xf32>
      tpu.vector_store %arg21[%c0_60, %c0_61], %111 {strides = array<i32>} : memref<1x256xf32, #tpu.memory_space<vmem>>, vector<1x256xf32>,
      %c0_62 = arith.constant 0 : index
      %c0_63 = arith.constant 0 : index
      %113 = vector.load %arg5[%c0_62, %c0_63] : memref<1x256xf32, #tpu.memory_space<vmem>>, vector<1x256xf32>
      %c0_64 = arith.constant 0 : index
      %c0_65 = arith.constant 0 : index
      %114 = vector.load %arg22[%c0_64, %c0_65] : memref<1x256xf32, #tpu.memory_space<vmem>>, vector<1x256xf32>
      tpu.vector_store %arg22[%c0_64, %c0_65], %113 {strides = array<i32>} : memref<1x256xf32, #tpu.memory_space<vmem>>, vector<1x256xf32>,
    } else {
    }
    %c0 = arith.constant 0 : index
    %c0_1 = arith.constant 0 : index
    %3 = vector.load %arg21[%c0, %c0_1] : memref<1x256xf32, #tpu.memory_space<vmem>>, vector<1x256xf32>
    %c0_2 = arith.constant 0 : index
    %c0_3 = arith.constant 0 : index
    %4 = vector.load %arg22[%c0_2, %c0_3] : memref<1x256xf32, #tpu.memory_space<vmem>>, vector<1x256xf32>
    %c0_4 = arith.constant 0 : index
    %c0_5 = arith.constant 0 : index
    %c0_6 = arith.constant 0 : index
    %5 = vector.load %arg2[%c0_4, %c0_5, %c0_6] : memref<1x1x128xf32, #tpu.memory_space<vmem>>, vector<1x1x128xf32>
    %6 = vector.shape_cast %5 : vector<1x1x128xf32> to vector<1x128xf32>
    %c0_7 = arith.constant 0 : index
    %c0_8 = arith.constant 0 : index
    %7 = vector.load %arg3[%c0_7, %c0_8] : memref<16x256xf32, #tpu.memory_space<vmem>>, vector<16x256xf32>
    %8 = arith.truncf %7 : vector<16x256xf32> to vector<16x256xbf16>
    %c0_9 = arith.constant 0 : index
    %c0_10 = arith.constant 0 : index
    %9 = vector.load %arg6[%c0_9, %c0_10] : memref<256x256xbf16, #tpu.memory_space<vmem>>, vector<256x256xbf16>
    %cst = arith.constant dense<0.000000e+00> : vector<16x256xf32>
    %10 = tpu.matmul %8, %9, %cst {dimension_numbers = #tpu.dot_dimension_numbers<[1], [0], [0], [1], [0, 0, 1, 1], [], []>} : vector<16x256xbf16>, vector<256x256xbf16>, vector<16x256xf32> -> vector<16x256xf32>
    %11 = arith.truncf %3 : vector<1x256xf32> to vector<1x256xbf16>
    %c0_11 = arith.constant 0 : index
    %c0_12 = arith.constant 0 : index
    %12 = vector.load %arg7[%c0_11, %c0_12] : memref<256x256xbf16, #tpu.memory_space<vmem>>, vector<256x256xbf16>
    %cst_13 = arith.constant dense<0.000000e+00> : vector<1x256xf32>
    %13 = tpu.matmul %11, %12, %cst_13 {dimension_numbers = #tpu.dot_dimension_numbers<[1], [0], [0], [1], [0, 0, 1, 1], [], []>} : vector<1x256xbf16>, vector<256x256xbf16>, vector<1x256xf32> -> vector<1x256xf32>
    %14 = vector.broadcast %13 : vector<1x256xf32> to vector<16x256xf32>
    %15 = arith.addf %10, %14 : vector<16x256xf32>
    %c0_14 = arith.constant 0 : index
    %c0_15 = arith.constant 0 : index
    %16 = vector.load %arg8[%c0_14, %c0_15] : memref<1x256xf32, #tpu.memory_space<vmem>>, vector<1x256xf32>
    %17 = vector.broadcast %16 : vector<1x256xf32> to vector<16x256xf32>
    %18 = arith.addf %15, %17 : vector<16x256xf32>
    %cst_16 = arith.constant 0.000000e+00 : f32
    %19 = vector.broadcast %cst_16 : f32 to vector<16x256xf32>
    %20 = arith.maximumf %18, %19 : vector<16x256xf32>
    %c0_17 = arith.constant 0 : index
    %c0_18 = arith.constant 0 : index
    %21 = vector.load %arg9[%c0_17, %c0_18] : memref<1x256xbf16, #tpu.memory_space<vmem>>, vector<1x256xbf16>
    %22 = arith.extf %21 : vector<1x256xbf16> to vector<1x256xf32>
    %23 = vector.broadcast %22 : vector<1x256xf32> to vector<16x256xf32>
    %24 = arith.mulf %20, %23 : vector<16x256xf32>
    %cst_19 = arith.constant dense<0.000000e+00> : vector<16xf32>
    %25 = vector.multi_reduction <add>, %24, %cst_19 [1] : vector<16x256xf32> to vector<16xf32>
    %26 = vector.shape_cast %25 : vector<16xf32> to vector<16x1xf32>
    %c0_20 = arith.constant 0 : index
    %c0_21 = arith.constant 0 : index
    %27 = vector.load %arg10[%c0_20, %c0_21] : memref<1x1xf32, #tpu.memory_space<vmem>>, vector<1x1xf32>
    %28 = vector.broadcast %27 : vector<1x1xf32> to vector<16x1xf32>
    %29 = arith.addf %26, %28 : vector<16x1xf32>
    %30 = tpu.iota {dimensions = array<i32: 0>} : vector<16x1xi32>
    %c15_i32 = arith.constant 15 : i32
    %31 = vector.broadcast %c15_i32 : i32 to vector<16x1xi32>
    %32 = arith.cmpi slt, %30, %31 : vector<16x1xi32>
    %cst_22 = arith.constant -1.000000e+30 : f32
    %33 = vector.broadcast %cst_22 : f32 to vector<16x1xf32>
    %34 = arith.select %32, %29, %33 : vector<16x1xi1>, vector<16x1xf32>
    %cst_23 = arith.constant dense<0xFF800000> : vector<1xf32>
    %35 = vector.multi_reduction <maximumf>, %34, %cst_23 [0] : vector<16x1xf32> to vector<1xf32>
    %36 = vector.shape_cast %35 : vector<1xf32> to vector<1x1xf32>
    %37 = vector.broadcast %36 : vector<1x1xf32> to vector<16x1xf32>
    %38 = arith.subf %34, %37 : vector<16x1xf32>
    %39 = math.exp %38 : vector<16x1xf32>
    %cst_24 = arith.constant dense<0.000000e+00> : vector<1xf32>
    %40 = vector.multi_reduction <add>, %39, %cst_24 [0] : vector<16x1xf32> to vector<1xf32>
    %41 = vector.shape_cast %40 : vector<1xf32> to vector<1x1xf32>
    %42 = vector.broadcast %41 : vector<1x1xf32> to vector<16x1xf32>
    %43 = arith.divf %39, %42 : vector<16x1xf32>
    %44 = vector.shape_cast %43 : vector<16x1xf32> to vector<1x16x1xf32>
    %45 = arith.index_cast %arg0 : i32 to index
    %c0_25 = arith.constant 0 : index
    %c0_26 = arith.constant 0 : index
    %46 = vector.load %arg20[%45, %c0_25, %c0_26] : memref<4x16x1xf32, #tpu.memory_space<vmem>>, vector<1x16x1xf32>
    tpu.vector_store %arg20[%45, %c0_25, %c0_26], %44 {strides = array<i32>} : memref<4x16x1xf32, #tpu.memory_space<vmem>>, vector<1x16x1xf32>,
    %47 = vector.broadcast %43 : vector<16x1xf32> to vector<16x256xf32>
    %48 = arith.mulf %47, %7 : vector<16x256xf32>
    %cst_27 = arith.constant dense<0.000000e+00> : vector<256xf32>
    %49 = vector.multi_reduction <add>, %48, %cst_27 [0] : vector<16x256xf32> to vector<256xf32>
    %50 = vector.shape_cast %49 : vector<256xf32> to vector<1x256xf32>
    %51 = tpu.concatenate %6, %50 in 1 : vector<1x128xf32>, vector<1x256xf32> -> vector<1x384xf32>
    %52 = arith.truncf %51 : vector<1x384xf32> to vector<1x384xbf16>
    %c0_28 = arith.constant 0 : index
    %c0_29 = arith.constant 0 : index
    %53 = vector.load %arg11[%c0_28, %c0_29] : memref<384x256xbf16, #tpu.memory_space<vmem>>, vector<384x256xbf16>
    %cst_30 = arith.constant dense<0.000000e+00> : vector<1x256xf32>
    %54 = tpu.matmul %52, %53, %cst_30 {dimension_numbers = #tpu.dot_dimension_numbers<[1], [0], [0], [1], [0, 0, 1, 1], [], []>} : vector<1x384xbf16>, vector<384x256xbf16>, vector<1x256xf32> -> vector<1x256xf32>
    %c0_31 = arith.constant 0 : index
    %c0_32 = arith.constant 0 : index
    %55 = vector.load %arg12[%c0_31, %c0_32] : memref<1x256xf32, #tpu.memory_space<vmem>>, vector<1x256xf32>
    %56 = arith.addf %54, %55 : vector<1x256xf32>
    %cst_33 = arith.constant 0.000000e+00 : f32
    %57 = vector.broadcast %cst_33 : f32 to vector<1x256xf32>
    %58 = arith.maximumf %56, %57 : vector<1x256xf32>
    %59 = tpu.concatenate %58, %3 in 1 : vector<1x256xf32>, vector<1x256xf32> -> vector<1x512xf32>
    %60 = arith.truncf %59 : vector<1x512xf32> to vector<1x512xbf16>
    %c0_34 = arith.constant 0 : index
    %c0_35 = arith.constant 0 : index
    %61 = vector.load %arg13[%c0_34, %c0_35] : memref<512x1024xbf16, #tpu.memory_space<vmem>>, vector<512x1024xbf16>
    %cst_36 = arith.constant dense<0.000000e+00> : vector<1x1024xf32>
    %62 = tpu.matmul %60, %61, %cst_36 {dimension_numbers = #tpu.dot_dimension_numbers<[1], [0], [0], [1], [0, 0, 1, 1], [], []>} : vector<1x512xbf16>, vector<512x1024xbf16>, vector<1x1024xf32> -> vector<1x1024xf32>
    %c0_37 = arith.constant 0 : index
    %c0_38 = arith.constant 0 : index
    %63 = vector.load %arg14[%c0_37, %c0_38] : memref<1x1024xf32, #tpu.memory_space<vmem>>, vector<1x1024xf32>
    %64 = arith.addf %62, %63 : vector<1x1024xf32>
    %65 = vector.extract_strided_slice %64 {offsets = [0, 0], sizes = [1, 256], strides = [1, 1]} : vector<1x1024xf32> to vector<1x256xf32>
    %66 = arith.negf %65 : vector<1x256xf32>
    %67 = math.exp %66 : vector<1x256xf32>
    %cst_39 = arith.constant 1.000000e+00 : f32
    %68 = vector.broadcast %cst_39 : f32 to vector<1x256xf32>
    %69 = arith.addf %68, %67 : vector<1x256xf32>
    %70 = arith.divf %68, %69 : vector<1x256xf32>
    %71 = vector.extract_strided_slice %64 {offsets = [0, 256], sizes = [1, 256], strides = [1, 1]} : vector<1x1024xf32> to vector<1x256xf32>
    %72 = arith.negf %71 : vector<1x256xf32>
    %73 = math.exp %72 : vector<1x256xf32>
    %cst_40 = arith.constant 1.000000e+00 : f32
    %74 = vector.broadcast %cst_40 : f32 to vector<1x256xf32>
    %75 = arith.addf %74, %73 : vector<1x256xf32>
    %76 = arith.divf %74, %75 : vector<1x256xf32>
    %77 = vector.extract_strided_slice %64 {offsets = [0, 512], sizes = [1, 256], strides = [1, 1]} : vector<1x1024xf32> to vector<1x256xf32>
    %78 = math.tanh %77 : vector<1x256xf32>
    %79 = vector.extract_strided_slice %64 {offsets = [0, 768], sizes = [1, 256], strides = [1, 1]} : vector<1x1024xf32> to vector<1x256xf32>
    %80 = arith.negf %79 : vector<1x256xf32>
    %81 = math.exp %80 : vector<1x256xf32>
    %cst_41 = arith.constant 1.000000e+00 : f32
    %82 = vector.broadcast %cst_41 : f32 to vector<1x256xf32>
    %83 = arith.addf %82, %81 : vector<1x256xf32>
    %84 = arith.divf %82, %83 : vector<1x256xf32>
    %85 = arith.mulf %76, %4 : vector<1x256xf32>
    %86 = arith.mulf %70, %78 : vector<1x256xf32>
    %87 = arith.addf %85, %86 : vector<1x256xf32>
    %88 = math.tanh %87 : vector<1x256xf32>
    %89 = arith.mulf %84, %88 : vector<1x256xf32>
    %c0_42 = arith.constant 0 : index
    %c0_43 = arith.constant 0 : index
    %90 = vector.load %arg21[%c0_42, %c0_43] : memref<1x256xf32, #tpu.memory_space<vmem>>, vector<1x256xf32>
    tpu.vector_store %arg21[%c0_42, %c0_43], %89 {strides = array<i32>} : memref<1x256xf32, #tpu.memory_space<vmem>>, vector<1x256xf32>,
    %c0_44 = arith.constant 0 : index
    %c0_45 = arith.constant 0 : index
    %91 = vector.load %arg22[%c0_44, %c0_45] : memref<1x256xf32, #tpu.memory_space<vmem>>, vector<1x256xf32>
    tpu.vector_store %arg22[%c0_44, %c0_45], %87 {strides = array<i32>} : memref<1x256xf32, #tpu.memory_space<vmem>>, vector<1x256xf32>,
    %c0_46 = arith.constant 0 : index
    %c0_47 = arith.constant 0 : index
    %92 = vector.load %arg18[%c0_46, %c0_47] : memref<1x256xf32, #tpu.memory_space<vmem>>, vector<1x256xf32>
    tpu.vector_store %arg18[%c0_46, %c0_47], %89 {strides = array<i32>} : memref<1x256xf32, #tpu.memory_space<vmem>>, vector<1x256xf32>,
    %c0_48 = arith.constant 0 : index
    %c0_49 = arith.constant 0 : index
    %93 = vector.load %arg19[%c0_48, %c0_49] : memref<1x256xf32, #tpu.memory_space<vmem>>, vector<1x256xf32>
    tpu.vector_store %arg19[%c0_48, %c0_49], %87 {strides = array<i32>} : memref<1x256xf32, #tpu.memory_space<vmem>>, vector<1x256xf32>,
    %94 = arith.truncf %89 : vector<1x256xf32> to vector<1x256xbf16>
    %c0_50 = arith.constant 0 : index
    %c0_51 = arith.constant 0 : index
    %95 = vector.load %arg15[%c0_50, %c0_51] : memref<256x512xbf16, #tpu.memory_space<vmem>>, vector<256x512xbf16>
    %cst_52 = arith.constant dense<0.000000e+00> : vector<1x512xf32>
    %96 = tpu.matmul %94, %95, %cst_52 {dimension_numbers = #tpu.dot_dimension_numbers<[1], [0], [0], [1], [0, 0, 1, 1], [], []>} : vector<1x256xbf16>, vector<256x512xbf16>, vector<1x512xf32> -> vector<1x512xf32>
    %c0_53 = arith.constant 0 : index
    %c0_54 = arith.constant 0 : index
    %97 = vector.load %arg16[%c0_53, %c0_54] : memref<1x512xf32, #tpu.memory_space<vmem>>, vector<1x512xf32>
    %98 = arith.addf %96, %97 : vector<1x512xf32>
    %cst_55 = arith.constant dense<0xFF800000> : vector<1xf32>
    %99 = vector.multi_reduction <maximumf>, %98, %cst_55 [1] : vector<1x512xf32> to vector<1xf32>
    %100 = vector.shape_cast %99 : vector<1xf32> to vector<1x1xf32>
    %101 = vector.broadcast %100 : vector<1x1xf32> to vector<1x512xf32>
    %102 = arith.subf %98, %101 : vector<1x512xf32>
    %103 = math.exp %102 : vector<1x512xf32>
    %cst_56 = arith.constant dense<0.000000e+00> : vector<1xf32>
    %104 = vector.multi_reduction <add>, %103, %cst_56 [1] : vector<1x512xf32> to vector<1xf32>
    %105 = vector.shape_cast %104 : vector<1xf32> to vector<1x1xf32>
    %106 = math.log %105 : vector<1x1xf32>
    %107 = vector.broadcast %106 : vector<1x1xf32> to vector<1x512xf32>
    %108 = arith.subf %102, %107 : vector<1x512xf32>
    %109 = arith.index_cast %arg0 : i32 to index
    %c0_57 = arith.constant 0 : index
    %110 = vector.load %arg17[%109, %c0_57] : memref<4x512xf32, #tpu.memory_space<vmem>>, vector<1x512xf32>
    tpu.vector_store %arg17[%109, %c0_57], %108 {strides = array<i32>} : memref<4x512xf32, #tpu.memory_space<vmem>>, vector<1x512xf32>,
    return
  }
  func.func @transform_0(%arg0: i32, %arg1: memref<4xi32, #tpu.memory_space<smem>>) -> (i32, i32, i32) {
    %0 = arith.index_cast %arg0 : i32 to index
    %1 = memref.load %arg1[%0] : memref<4xi32, #tpu.memory_space<smem>>
    %c0_i32 = arith.constant 0 : i32
    %c0_i32_0 = arith.constant 0 : i32
    %c0_i32_1 = arith.constant 0 : i32
    return %1, %c0_i32, %c0_i32_0 : i32, i32, i32
  }
  func.func @transform_1(%arg0: i32, %arg1: memref<4xi32, #tpu.memory_space<smem>>) -> (i32, i32) {
    %c0_i32 = arith.constant 0 : i32
    %c0_i32_0 = arith.constant 0 : i32
    %c0_i32_1 = arith.constant 0 : i32
    return %c0_i32, %c0_i32_0 : i32, i32
  }
  func.func @transform_2(%arg0: i32, %arg1: memref<4xi32, #tpu.memory_space<smem>>) -> (i32, i32) {
    %c0_i32 = arith.constant 0 : i32
    %c0_i32_0 = arith.constant 0 : i32
    %c0_i32_1 = arith.constant 0 : i32
    return %c0_i32, %c0_i32_0 : i32, i32
  }
  func.func @transform_3(%arg0: i32, %arg1: memref<4xi32, #tpu.memory_space<smem>>) -> (i32, i32) {
    %c0_i32 = arith.constant 0 : i32
    %c0_i32_0 = arith.constant 0 : i32
    %c0_i32_1 = arith.constant 0 : i32
    return %c0_i32, %c0_i32_0 : i32, i32
  }
  func.func @transform_4(%arg0: i32, %arg1: memref<4xi32, #tpu.memory_space<smem>>) -> (i32, i32) {
    %c0_i32 = arith.constant 0 : i32
    %c0_i32_0 = arith.constant 0 : i32
    %c0_i32_1 = arith.constant 0 : i32
    return %c0_i32, %c0_i32_0 : i32, i32
  }
  func.func @transform_5(%arg0: i32, %arg1: memref<4xi32, #tpu.memory_space<smem>>) -> (i32, i32) {
    %c0_i32 = arith.constant 0 : i32
    %c0_i32_0 = arith.constant 0 : i32
    %c0_i32_1 = arith.constant 0 : i32
    return %c0_i32, %c0_i32_0 : i32, i32
  }
  func.func @transform_6(%arg0: i32, %arg1: memref<4xi32, #tpu.memory_space<smem>>) -> (i32, i32) {
    %c0_i32 = arith.constant 0 : i32
    %c0_i32_0 = arith.constant 0 : i32
    %c0_i32_1 = arith.constant 0 : i32
    return %c0_i32, %c0_i32_0 : i32, i32
  }
  func.func @transform_7(%arg0: i32, %arg1: memref<4xi32, #tpu.memory_space<smem>>) -> (i32, i32) {
    %c0_i32 = arith.constant 0 : i32
    %c0_i32_0 = arith.constant 0 : i32
    %c0_i32_1 = arith.constant 0 : i32
    return %c0_i32, %c0_i32_0 : i32, i32
  }
  func.func @transform_8(%arg0: i32, %arg1: memref<4xi32, #tpu.memory_space<smem>>) -> (i32, i32) {
    %c0_i32 = arith.constant 0 : i32
    %c0_i32_0 = arith.constant 0 : i32
    %c0_i32_1 = arith.constant 0 : i32
    return %c0_i32, %c0_i32_0 : i32, i32
  }
  func.func @transform_9(%arg0: i32, %arg1: memref<4xi32, #tpu.memory_space<smem>>) -> (i32, i32) {
    %c0_i32 = arith.constant 0 : i32
    %c0_i32_0 = arith.constant 0 : i32
    %c0_i32_1 = arith.constant 0 : i32
    return %c0_i32, %c0_i32_0 : i32, i32
  }
  func.func @transform_10(%arg0: i32, %arg1: memref<4xi32, #tpu.memory_space<smem>>) -> (i32, i32) {
    %c0_i32 = arith.constant 0 : i32
    %c0_i32_0 = arith.constant 0 : i32
    %c0_i32_1 = arith.constant 0 : i32
    return %c0_i32, %c0_i32_0 : i32, i32
  }
  func.func @transform_11(%arg0: i32, %arg1: memref<4xi32, #tpu.memory_space<smem>>) -> (i32, i32) {
    %c0_i32 = arith.constant 0 : i32
    %c0_i32_0 = arith.constant 0 : i32
    %c0_i32_1 = arith.constant 0 : i32
    return %c0_i32, %c0_i32_0 : i32, i32
  }
  func.func @transform_12(%arg0: i32, %arg1: memref<4xi32, #tpu.memory_space<smem>>) -> (i32, i32) {
    %c0_i32 = arith.constant 0 : i32
    %c0_i32_0 = arith.constant 0 : i32
    %c0_i32_1 = arith.constant 0 : i32
    return %c0_i32, %c0_i32_0 : i32, i32
  }
  func.func @transform_13(%arg0: i32, %arg1: memref<4xi32, #tpu.memory_space<smem>>) -> (i32, i32) {
    %c0_i32 = arith.constant 0 : i32
    %c0_i32_0 = arith.constant 0 : i32
    %c0_i32_1 = arith.constant 0 : i32
    return %c0_i32, %c0_i32_0 : i32, i32
  }
  func.func @transform_14(%arg0: i32, %arg1: memref<4xi32, #tpu.memory_space<smem>>) -> (i32, i32) {
    %c0_i32 = arith.constant 0 : i32
    %c0_i32_0 = arith.constant 0 : i32
    %c0_i32_1 = arith.constant 0 : i32
    return %c0_i32, %c0_i32_0 : i32, i32
  }
  func.func @transform_15(%arg0: i32, %arg1: memref<4xi32, #tpu.memory_space<smem>>) -> (i32, i32) {
    %c0_i32 = arith.constant 0 : i32
    %c0_i32_0 = arith.constant 0 : i32
    %c0_i32_1 = arith.constant 0 : i32
    return %c0_i32, %c0_i32_0 : i32, i32
  }
  func.func @transform_16(%arg0: i32, %arg1: memref<4xi32, #tpu.memory_space<smem>>) -> (i32, i32) {
    %c0_i32 = arith.constant 0 : i32
    %c0_i32_0 = arith.constant 0 : i32
    %c0_i32_1 = arith.constant 0 : i32
    return %c0_i32, %c0_i32_0 : i32, i32
  }
  func.func @transform_17(%arg0: i32, %arg1: memref<4xi32, #tpu.memory_space<smem>>) -> (i32, i32) {
    %c0_i32 = arith.constant 0 : i32
    %c0_i32_0 = arith.constant 0 : i32
    %c0_i32_1 = arith.constant 0 : i32
    return %c0_i32, %c0_i32_0 : i32, i32
  }
  func.func @transform_18(%arg0: i32, %arg1: memref<4xi32, #tpu.memory_space<smem>>) -> (i32, i32, i32) {
    %c0_i32 = arith.constant 0 : i32
    %c0_i32_0 = arith.constant 0 : i32
    %c0_i32_1 = arith.constant 0 : i32
    %c0_i32_2 = arith.constant 0 : i32
    return %c0_i32, %c0_i32_0, %c0_i32_1 : i32, i32, i32
  }
}

</mosaic_0001>

<llo_original>
// kernel: tpu_custom_call.1
$region0: #{tpu_custom_call.1}
  #allocation0 [shape = 'u32[]', space=smem, size = 0x4, offset = 0x4, fixed_abs, tag = 'smem constant byte address 0x4 - core index']
  #allocation1 [shape = 'u32[144,128]{1,0:T(1,128)}', space=vmem, size = 0x12000, scoped, tag = 'internal scratch']
  #allocation2 [shape = 'f32[1,256]{1,0:T(1,128)}', space=vmem, size = 0x400, scoped, tag = 'scratch operand']
  #allocation3 [shape = 'f32[1,256]{1,0:T(1,128)}', space=vmem, size = 0x400, scoped, tag = 'scratch operand']
  #allocation4 [shape = 's32[1]{0}', space=sflag, size = 0x4, scoped, tag = 'scoped memory for tpu_custom_call.1']
  #allocation5 [shape = 'u8[512]{0}', space=smem, size = 0x200, scoped, tag = 'prefetched SMEM operand 0']
  #allocation6 [shape = 'f32[1,1]{1,0:T(1,128)S(1)}', space=vmem, size = 0x200, scoped, tag = 'scoped memory for tpu_custom_call.1']
  %s0 = inlined_call_operand.hbm [shape: s32[4], index: 0, kind: input, shape index: {}]
  %s1 = inlined_call_operand.hbm [shape: f32[512,1,128], index: 1, kind: input, shape index: {}]
  %s2 = inlined_call_operand.hbm [shape: f32[16,256], index: 2, kind: input, shape index: {}]
  %s3 = inlined_call_operand.vmem [shape: f32[1,256], index: 3, kind: input, shape index: {}]
  %s4 = inlined_call_operand.vmem [shape: f32[1,256], index: 4, kind: input, shape index: {}]
  %s5 = inlined_call_operand.hbm [shape: bf16[256,256], index: 5, kind: input, shape index: {}]
  %s6 = inlined_call_operand.hbm [shape: bf16[256,256], index: 6, kind: input, shape index: {}]
  %s7 = inlined_call_operand.hbm [shape: f32[1,256], index: 7, kind: input, shape index: {}]
  %s8 = inlined_call_operand.hbm [shape: bf16[1,256], index: 8, kind: input, shape index: {}]
  %s9 = inlined_call_operand.<no memory space> [shape: f32[1,1], index: 9, kind: input, shape index: {}]
  %s10 = inlined_call_operand.hbm [shape: bf16[384,256], index: 10, kind: input, shape index: {}]
  %s11 = inlined_call_operand.vmem [shape: f32[1,256], index: 11, kind: input, shape index: {}]
  %s12 = inlined_call_operand.hbm [shape: bf16[512,1024], index: 12, kind: input, shape index: {}]
  %s13 = inlined_call_operand.vmem [shape: f32[1,1024], index: 13, kind: input, shape index: {}]
  %s14 = inlined_call_operand.hbm [shape: bf16[256,512], index: 14, kind: input, shape index: {}]
  %s15 = inlined_call_operand.vmem [shape: f32[1,512], index: 15, kind: input, shape index: {}]
  %s16 = inlined_call_operand.hbm [shape: f32[4,512], index: 16, kind: output, shape index: {0}]
  %s17 = inlined_call_operand.hbm [shape: f32[1,256], index: 17, kind: output, shape index: {1}]
  %s18 = inlined_call_operand.hbm [shape: f32[1,256], index: 18, kind: output, shape index: {2}]
  %s19 = inlined_call_operand.vmem [shape: f32[4,16,1], index: 19, kind: output, shape index: {3}]
  %20 = xla_tuple %s16, %s17, %s18, %s19
  %s21 = sld [smem:[#allocation0]]
  $region157: #{tpu_custom_call.1} parent=0
    _
  %s23 = ssub.s32 1, %s21
  %s24 = scalar_select 0, %s23, %s21
  %26 = dma.hbm_to_smem %s0, 16, [#allocation5], [#allocation4]
  %v27 = vstv %s9
  %28 = vst [vmem:[#allocation6] sm:$0x1] %v27
  %29 = dma.done [#allocation4], 16
  %30 = sfence
  $region1: #{tpu_custom_call.1} parent=0
    #allocation7 [shape = 'u8[1024]{0}', space=vmem, size = 0x400, scoped, tag = 'input window, operand 1']
    #allocation8 [shape = 's32[2]{0}', space=sflag, size = 0x8, scoped, tag = 'scoped memory for tpu_custom_call.1']
    #allocation9 [shape = 's32[2]{0}', space=sflag, size = 0x8, scoped, tag = 'scoped memory for tpu_custom_call.1']
    #allocation10 [shape = 'u8[16384]{0}', space=vmem, size = 0x4000, scoped, tag = 'input window, operand 2, single buffered']
    #allocation11 [shape = 's32[1]{0}', space=sflag, size = 0x4, scoped, tag = 'scoped memory for tpu_custom_call.1']
    #allocation12 [shape = 'u8[131072]{0}', space=vmem, size = 0x20000, scoped, tag = 'input window, operand 5, single buffered']
    #allocation13 [shape = 'u8[131072]{0}', space=vmem, size = 0x20000, scoped, tag = 'input window, operand 6, single buffered']
    #allocation14 [shape = 's32[1]{0}', space=sflag, size = 0x4, scoped, tag = 'scoped memory for tpu_custom_call.1']
    #allocation15 [shape = 'u8[1024]{0}', space=vmem, size = 0x400, scoped, tag = 'input window, operand 7, single buffered']
    #allocation16 [shape = 'u8[1024]{0}', space=vmem, size = 0x400, scoped, tag = 'input window, operand 8, single buffered']
    #allocation17 [shape = 's32[1]{0}', space=sflag, size = 0x4, scoped, tag = 'scoped memory for tpu_custom_call.1']
    #allocation18 [shape = 'u8[196608]{0}', space=vmem, size = 0x30000, scoped, tag = 'input window, operand 10, single buffered']
    #allocation19 [shape = 'u8[1048576]{0}', space=vmem, size = 0x100000, scoped, tag = 'input window, operand 12, single buffered']
    #allocation20 [shape = 's32[1]{0}', space=sflag, size = 0x4, scoped, tag = 'scoped memory for tpu_custom_call.1']
    #allocation21 [shape = 'u8[262144]{0}', space=vmem, size = 0x40000, scoped, tag = 'input window, operand 14, single buffered']
    #allocation22 [shape = 'u8[8192]{0}', space=vmem, size = 0x2000, scoped, tag = 'output window, operand 0, single buffered']
    #allocation23 [shape = 'u8[1024]{0}', space=vmem, size = 0x400, scoped, tag = 'output window, operand 1, single buffered']
    #allocation24 [shape = 's32[1]{0}', space=sflag, size = 0x4, scoped, tag = 'scoped memory for tpu_custom_call.1']
    #allocation25 [shape = 'u8[1024]{0}', space=vmem, size = 0x400, scoped, tag = 'output window, operand 2, single buffered']
    %31 = vsyncpa [#allocation8], 0
    %s32 = scalar_lea.sflag [#allocation8], 1
    %33 = vsyncpa %s32, 0
    %34 = vsyncpa [#allocation11], 0
    %35 = vsyncpa [#allocation14], 0
    %36 = vsyncpa [#allocation17], 0
    %37 = vsyncpa [#allocation20], 0
    %38 = vsyncpa [#allocation9], 0
    %39 = vsyncpa [#allocation24], 0
    loop: start=0, step=1, limit=6
    $region2: #{tpu_custom_call.1} parent=1 // loop_pre_header
      _
    $region3: #{tpu_custom_call.1} parent=1 // loop_header
      %s41 = sphi 0, %s45
      %p42 = scmp.ge.s32.totalorder %s41, 6
      %s53 = sphi 0, %s55
      %s56 = sphi 0, %s53
      %s57 = sphi 0, %s56
      %s73 = sphi 0, %s57
      %s77 = sphi 0, %s77
      %s79 = sphi 0, %s77
      %s80 = sphi 0, %s79
      %s94 = sphi 0, %s80
      %s98 = sphi 0, %s98
      %s100 = sphi 0, %s98
      %s101 = sphi 0, %s100
      %s115 = sphi 0, %s101
      %s119 = sphi 0, %s119
      %s121 = sphi 0, %s119
      %s122 = sphi 0, %s121
      %s136 = sphi 0, %s122
      %s140 = sphi 0, %s140
      %s142 = sphi 0, %s140
      %s143 = sphi 0, %s142
      %s157 = sphi 0, %s143
      %s161 = sphi 0, %s161
      %s163 = sphi 0, %s161
      %s164 = sphi 0, %s163
      %s178 = sphi 0, %s164
      %s182 = sphi 0, %s182
      %s184 = sphi 0, %s182
      %s185 = sphi 0, %s184
      %s199 = sphi 0, %s185
      %s203 = sphi 0, %s203
      %s205 = sphi 0, %s203
      %s206 = sphi 0, %s205
      %s220 = sphi 0, %s206
      %s224 = sphi 0, %s224
      %s226 = sphi 0, %s224
      %s227 = sphi 0, %s226
      %s241 = sphi 0, %s227
      %s245 = sphi 0, %s245
      %s247 = sphi 0, %s245
      %s248 = sphi 0, %s247
      %s262 = sphi 0, %s248
      %s266 = sphi 0, %s266
      %s268 = sphi 0, %s266
      %s269 = sphi 0, %s268
      %s283 = sphi 0, %s269
      %s287 = sphi 0, %s287
      %s289 = sphi 0, %s287
      %s290 = sphi 0, %s289
      %s304 = sphi 0, %s290
      %s308 = sphi 0, %s308
      %s310 = sphi 0, %s308
      %s311 = sphi 0, %s310
      %s325 = sphi 0, %s311
      %s329 = sphi 0, %s329
      %s331 = sphi 0, %s329
      %s332 = sphi 0, %s331
      %s346 = sphi 0, %s332
      %s350 = sphi 0, %s350
      %s352 = sphi 0, %s350
      %s353 = sphi 0, %s352
      %s367 = sphi 0, %s353
      %s371 = sphi 0, %s371
      %s373 = sphi 0, %s371
      %s374 = sphi 0, %s373
      %s388 = sphi 0, %s374
      %s392 = sphi 0, %s392
      %s394 = sphi 0, %s392
      %s395 = sphi 0, %s394
      %s409 = sphi 0, %s395
      %s413 = sphi 0, %s413
      %s415 = sphi 0, %s413
      %s416 = sphi 0, %s415
      %s430 = sphi 0, %s416
      %s434 = sphi 0, %s434
      %s436 = sphi 0, %s434
      %s437 = sphi 0, %s436
      %s451 = sphi 0, %s437
    $region4: #{tpu_custom_call.1} parent=1 // loop_header_branch
      %44 = sbr.rel (%p42) target = $region8
    $region5: #{tpu_custom_call.1} parent=1 // loop_body
      %s46 = ssub.s32 %s41, 1
      %s47 = ssub.s32 %s41, 2
      %s48 = sadd.s32 %s41, 1
      %s49 = sld [smem:[#allocation5 + %s41]]
      %s50 = sld [smem:[#allocation5 + %s48]]
      %s51 = ssub.s32 %s49, %s50
      %p52 = scmp.eq.s32.totalorder %s51, 0
      %s54 = sadd.s32 %s53, 1
      %s55 = scalar_select %p52, %s53, %s54
      %p58 = pneg %p52
      %p59 = scmp.eq.s32.totalorder %s41, 3
      %p60 = por %p58, %p59
      %p61 = scmp.ne.s32.totalorder %s53, %s56
      %p62 = scmp.eq.s32.totalorder %s41, 0
      %p63 = por %p61, %p62
      %p64 = scmp.ne.s32.totalorder %s53, %s56
      %p65 = scmp.eq.s32.totalorder %s46, 3
      %p66 = por %p64, %p65
      %p67 = scmp.ne.s32.totalorder %s56, %s57
      %p68 = scmp.eq.s32.totalorder %s46, 0
      %p69 = por %p67, %p68
      %p70 = scmp.ne.s32.totalorder %s56, %s57
      %p71 = scmp.eq.s32.totalorder %s47, 3
      %p72 = por %p70, %p71
      %p74 = scmp.ne.s32.totalorder %s57, %s73
      %p75 = scmp.eq.s32.totalorder %s47, 0
      %p76 = por %p74, %p75
      %s78 = sadd.s32 %s77, 1
      %p81 = scmp.eq.s32.totalorder %s41, 3
      %p82 = scmp.ne.s32.totalorder %s77, %s79
      %p83 = scmp.eq.s32.totalorder %s41, 0
      %p84 = por %p82, %p83
      %p85 = scmp.ne.s32.totalorder %s77, %s79
      %p86 = scmp.eq.s32.totalorder %s46, 3
      %p87 = por %p85, %p86
      %p88 = scmp.ne.s32.totalorder %s79, %s80
      %p89 = scmp.eq.s32.totalorder %s46, 0
      %p90 = por %p88, %p89
      %p91 = scmp.ne.s32.totalorder %s79, %s80
      %p92 = scmp.eq.s32.totalorder %s47, 3
      %p93 = por %p91, %p92
      %p95 = scmp.ne.s32.totalorder %s80, %s94
      %p96 = scmp.eq.s32.totalorder %s47, 0
      %p97 = por %p95, %p96
      %s99 = sadd.s32 %s98, 1
      %p102 = scmp.eq.s32.totalorder %s41, 3
      %p103 = scmp.ne.s32.totalorder %s98, %s100
      %p104 = scmp.eq.s32.totalorder %s41, 0
      %p105 = por %p103, %p104
      %p106 = scmp.ne.s32.totalorder %s98, %s100
      %p107 = scmp.eq.s32.totalorder %s46, 3
      %p108 = por %p106, %p107
      %p109 = scmp.ne.s32.totalorder %s100, %s101
      %p110 = scmp.eq.s32.totalorder %s46, 0
      %p111 = por %p109, %p110
      %p112 = scmp.ne.s32.totalorder %s100, %s101
      %p113 = scmp.eq.s32.totalorder %s47, 3
      %p114 = por %p112, %p113
      %p116 = scmp.ne.s32.totalorder %s101, %s115
      %p117 = scmp.eq.s32.totalorder %s47, 0
      %p118 = por %p116, %p117
      %s120 = sadd.s32 %s119, 1
      %p123 = scmp.eq.s32.totalorder %s41, 3
      %p124 = scmp.ne.s32.totalorder %s119, %s121
      %p125 = scmp.eq.s32.totalorder %s41, 0
      %p126 = por %p124, %p125
      %p127 = scmp.ne.s32.totalorder %s119, %s121
      %p128 = scmp.eq.s32.totalorder %s46, 3
      %p129 = por %p127, %p128
      %p130 = scmp.ne.s32.totalorder %s121, %s122
      %p131 = scmp.eq.s32.totalorder %s46, 0
      %p132 = por %p130, %p131
      %p133 = scmp.ne.s32.totalorder %s121, %s122
      %p134 = scmp.eq.s32.totalorder %s47, 3
      %p135 = por %p133, %p134
      %p137 = scmp.ne.s32.totalorder %s122, %s136
      %p138 = scmp.eq.s32.totalorder %s47, 0
      %p139 = por %p137, %p138
      %s141 = sadd.s32 %s140, 1
      %p144 = scmp.eq.s32.totalorder %s41, 3
      %p145 = scmp.ne.s32.totalorder %s140, %s142
      %p146 = scmp.eq.s32.totalorder %s41, 0
      %p147 = por %p145, %p146
      %p148 = scmp.ne.s32.totalorder %s140, %s142
      %p149 = scmp.eq.s32.totalorder %s46, 3
      %p150 = por %p148, %p149
      %p151 = scmp.ne.s32.totalorder %s142, %s143
      %p152 = scmp.eq.s32.totalorder %s46, 0
      %p153 = por %p151, %p152
      %p154 = scmp.ne.s32.totalorder %s142, %s143
      %p155 = scmp.eq.s32.totalorder %s47, 3
      %p156 = por %p154, %p155
      %p158 = scmp.ne.s32.totalorder %s143, %s157
      %p159 = scmp.eq.s32.totalorder %s47, 0
      %p160 = por %p158, %p159
      %s162 = sadd.s32 %s161, 1
      %p165 = scmp.eq.s32.totalorder %s41, 3
      %p166 = scmp.ne.s32.totalorder %s161, %s163
      %p167 = scmp.eq.s32.totalorder %s41, 0
      %p168 = por %p166, %p167
      %p169 = scmp.ne.s32.totalorder %s161, %s163
      %p170 = scmp.eq.s32.totalorder %s46, 3
      %p171 = por %p169, %p170
      %p172 = scmp.ne.s32.totalorder %s163, %s164
      %p173 = scmp.eq.s32.totalorder %s46, 0
      %p174 = por %p172, %p173
      %p175 = scmp.ne.s32.totalorder %s163, %s164
      %p176 = scmp.eq.s32.totalorder %s47, 3
      %p177 = por %p175, %p176
      %p179 = scmp.ne.s32.totalorder %s164, %s178
      %p180 = scmp.eq.s32.totalorder %s47, 0
      %p181 = por %p179, %p180
      %s183 = sadd.s32 %s182, 1
      %p186 = scmp.eq.s32.totalorder %s41, 3
      %p187 = scmp.ne.s32.totalorder %s182, %s184
      %p188 = scmp.eq.s32.totalorder %s41, 0
      %p189 = por %p187, %p188
      %p190 = scmp.ne.s32.totalorder %s182, %s184
      %p191 = scmp.eq.s32.totalorder %s46, 3
      %p192 = por %p190, %p191
      %p193 = scmp.ne.s32.totalorder %s184, %s185
      %p194 = scmp.eq.s32.totalorder %s46, 0
      %p195 = por %p193, %p194
      %p196 = scmp.ne.s32.totalorder %s184, %s185
      %p197 = scmp.eq.s32.totalorder %s47, 3
      %p198 = por %p196, %p197
      %p200 = scmp.ne.s32.totalorder %s185, %s199
      %p201 = scmp.eq.s32.totalorder %s47, 0
      %p202 = por %p200, %p201
      %s204 = sadd.s32 %s203, 1
      %p207 = scmp.eq.s32.totalorder %s41, 3
      %p208 = scmp.ne.s32.totalorder %s203, %s205
      %p209 = scmp.eq.s32.totalorder %s41, 0
      %p210 = por %p208, %p209
      %p211 = scmp.ne.s32.totalorder %s203, %s205
      %p212 = scmp.eq.s32.totalorder %s46, 3
      %p213 = por %p211, %p212
      %p214 = scmp.ne.s32.totalorder %s205, %s206
      %p215 = scmp.eq.s32.totalorder %s46, 0
      %p216 = por %p214, %p215
      %p217 = scmp.ne.s32.totalorder %s205, %s206
      %p218 = scmp.eq.s32.totalorder %s47, 3
      %p219 = por %p217, %p218
      %p221 = scmp.ne.s32.totalorder %s206, %s220
      %p222 = scmp.eq.s32.totalorder %s47, 0
      %p223 = por %p221, %p222
      %s225 = sadd.s32 %s224, 1
      %p228 = scmp.eq.s32.totalorder %s41, 3
      %p229 = scmp.ne.s32.totalorder %s224, %s226
      %p230 = scmp.eq.s32.totalorder %s41, 0
      %p231 = por %p229, %p230
      %p232 = scmp.ne.s32.totalorder %s224, %s226
      %p233 = scmp.eq.s32.totalorder %s46, 3
      %p234 = por %p232, %p233
      %p235 = scmp.ne.s32.totalorder %s226, %s227
      %p236 = scmp.eq.s32.totalorder %s46, 0
      %p237 = por %p235, %p236
      %p238 = scmp.ne.s32.totalorder %s226, %s227
      %p239 = scmp.eq.s32.totalorder %s47, 3
      %p240 = por %p238, %p239
      %p242 = scmp.ne.s32.totalorder %s227, %s241
      %p243 = scmp.eq.s32.totalorder %s47, 0
      %p244 = por %p242, %p243
      %s246 = sadd.s32 %s245, 1
      %p249 = scmp.eq.s32.totalorder %s41, 3
      %p250 = scmp.ne.s32.totalorder %s245, %s247
      %p251 = scmp.eq.s32.totalorder %s41, 0
      %p252 = por %p250, %p251
      %p253 = scmp.ne.s32.totalorder %s245, %s247
      %p254 = scmp.eq.s32.totalorder %s46, 3
      %p255 = por %p253, %p254
      %p256 = scmp.ne.s32.totalorder %s247, %s248
      %p257 = scmp.eq.s32.totalorder %s46, 0
      %p258 = por %p256, %p257
      %p259 = scmp.ne.s32.totalorder %s247, %s248
      %p260 = scmp.eq.s32.totalorder %s47, 3
      %p261 = por %p259, %p260
      %p263 = scmp.ne.s32.totalorder %s248, %s262
      %p264 = scmp.eq.s32.totalorder %s47, 0
      %p265 = por %p263, %p264
      %s267 = sadd.s32 %s266, 1
      %p270 = scmp.eq.s32.totalorder %s41, 3
      %p271 = scmp.ne.s32.totalorder %s266, %s268
      %p272 = scmp.eq.s32.totalorder %s41, 0
      %p273 = por %p271, %p272
      %p274 = scmp.ne.s32.totalorder %s266, %s268
      %p275 = scmp.eq.s32.totalorder %s46, 3
      %p276 = por %p274, %p275
      %p277 = scmp.ne.s32.totalorder %s268, %s269
      %p278 = scmp.eq.s32.totalorder %s46, 0
      %p279 = por %p277, %p278
      %p280 = scmp.ne.s32.totalorder %s268, %s269
      %p281 = scmp.eq.s32.totalorder %s47, 3
      %p282 = por %p280, %p281
      %p284 = scmp.ne.s32.totalorder %s269, %s283
      %p285 = scmp.eq.s32.totalorder %s47, 0
      %p286 = por %p284, %p285
      %s288 = sadd.s32 %s287, 1
      %p291 = scmp.eq.s32.totalorder %s41, 3
      %p292 = scmp.ne.s32.totalorder %s287, %s289
      %p293 = scmp.eq.s32.totalorder %s41, 0
      %p294 = por %p292, %p293
      %p295 = scmp.ne.s32.totalorder %s287, %s289
      %p296 = scmp.eq.s32.totalorder %s46, 3
      %p297 = por %p295, %p296
      %p298 = scmp.ne.s32.totalorder %s289, %s290
      %p299 = scmp.eq.s32.totalorder %s46, 0
      %p300 = por %p298, %p299
      %p301 = scmp.ne.s32.totalorder %s289, %s290
      %p302 = scmp.eq.s32.totalorder %s47, 3
      %p303 = por %p301, %p302
      %p305 = scmp.ne.s32.totalorder %s290, %s304
      %p306 = scmp.eq.s32.totalorder %s47, 0
      %p307 = por %p305, %p306
      %s309 = sadd.s32 %s308, 1
      %p312 = scmp.eq.s32.totalorder %s41, 3
      %p313 = scmp.ne.s32.totalorder %s308, %s310
      %p314 = scmp.eq.s32.totalorder %s41, 0
      %p315 = por %p313, %p314
      %p316 = scmp.ne.s32.totalorder %s308, %s310
      %p317 = scmp.eq.s32.totalorder %s46, 3
      %p318 = por %p316, %p317
      %p319 = scmp.ne.s32.totalorder %s310, %s311
      %p320 = scmp.eq.s32.totalorder %s46, 0
      %p321 = por %p319, %p320
      %p322 = scmp.ne.s32.totalorder %s310, %s311
      %p323 = scmp.eq.s32.totalorder %s47, 3
      %p324 = por %p322, %p323
      %p326 = scmp.ne.s32.totalorder %s311, %s325
      %p327 = scmp.eq.s32.totalorder %s47, 0
      %p328 = por %p326, %p327
      %s330 = sadd.s32 %s329, 1
      %p333 = scmp.eq.s32.totalorder %s41, 3
      %p334 = scmp.ne.s32.totalorder %s329, %s331
      %p335 = scmp.eq.s32.totalorder %s41, 0
      %p336 = por %p334, %p335
      %p337 = scmp.ne.s32.totalorder %s329, %s331
      %p338 = scmp.eq.s32.totalorder %s46, 3
      %p339 = por %p337, %p338
      %p340 = scmp.ne.s32.totalorder %s331, %s332
      %p341 = scmp.eq.s32.totalorder %s46, 0
      %p342 = por %p340, %p341
      %p343 = scmp.ne.s32.totalorder %s331, %s332
      %p344 = scmp.eq.s32.totalorder %s47, 3
      %p345 = por %p343, %p344
      %p347 = scmp.ne.s32.totalorder %s332, %s346
      %p348 = scmp.eq.s32.totalorder %s47, 0
      %p349 = por %p347, %p348
      %s351 = sadd.s32 %s350, 1
      %p354 = scmp.eq.s32.totalorder %s41, 3
      %p355 = scmp.ne.s32.totalorder %s350, %s352
      %p356 = scmp.eq.s32.totalorder %s41, 0
      %p357 = por %p355, %p356
      %p358 = scmp.ne.s32.totalorder %s350, %s352
      %p359 = scmp.eq.s32.totalorder %s46, 3
      %p360 = por %p358, %p359
      %p361 = scmp.ne.s32.totalorder %s352, %s353
      %p362 = scmp.eq.s32.totalorder %s46, 0
      %p363 = por %p361, %p362
      %p364 = scmp.ne.s32.totalorder %s352, %s353
      %p365 = scmp.eq.s32.totalorder %s47, 3
      %p366 = por %p364, %p365
      %p368 = scmp.ne.s32.totalorder %s353, %s367
      %p369 = scmp.eq.s32.totalorder %s47, 0
      %p370 = por %p368, %p369
      %s372 = sadd.s32 %s371, 1
      %p375 = scmp.eq.s32.totalorder %s41, 3
      %p376 = scmp.ne.s32.totalorder %s371, %s373
      %p377 = scmp.eq.s32.totalorder %s41, 0
      %p378 = por %p376, %p377
      %p379 = scmp.ne.s32.totalorder %s371, %s373
      %p380 = scmp.eq.s32.totalorder %s46, 3
      %p381 = por %p379, %p380
      %p382 = scmp.ne.s32.totalorder %s373, %s374
      %p383 = scmp.eq.s32.totalorder %s46, 0
      %p384 = por %p382, %p383
      %p385 = scmp.ne.s32.totalorder %s373, %s374
      %p386 = scmp.eq.s32.totalorder %s47, 3
      %p387 = por %p385, %p386
      %p389 = scmp.ne.s32.totalorder %s374, %s388
      %p390 = scmp.eq.s32.totalorder %s47, 0
      %p391 = por %p389, %p390
      %s393 = sadd.s32 %s392, 1
      %p396 = scmp.eq.s32.totalorder %s41, 3
      %p397 = scmp.ne.s32.totalorder %s392, %s394
      %p398 = scmp.eq.s32.totalorder %s41, 0
      %p399 = por %p397, %p398
      %p400 = scmp.ne.s32.totalorder %s392, %s394
      %p401 = scmp.eq.s32.totalorder %s46, 3
      %p402 = por %p400, %p401
      %p403 = scmp.ne.s32.totalorder %s394, %s395
      %p404 = scmp.eq.s32.totalorder %s46, 0
      %p405 = por %p403, %p404
      %p406 = scmp.ne.s32.totalorder %s394, %s395
      %p407 = scmp.eq.s32.totalorder %s47, 3
      %p408 = por %p406, %p407
      %p410 = scmp.ne.s32.totalorder %s395, %s409
      %p411 = scmp.eq.s32.totalorder %s47, 0
      %p412 = por %p410, %p411
      %s414 = sadd.s32 %s413, 1
      %p417 = scmp.eq.s32.totalorder %s41, 3
      %p418 = scmp.ne.s32.totalorder %s413, %s415
      %p419 = scmp.eq.s32.totalorder %s41, 0
      %p420 = por %p418, %p419
      %p421 = scmp.ne.s32.totalorder %s413, %s415
      %p422 = scmp.eq.s32.totalorder %s46, 3
      %p423 = por %p421, %p422
      %p424 = scmp.ne.s32.totalorder %s415, %s416
      %p425 = scmp.eq.s32.totalorder %s46, 0
      %p426 = por %p424, %p425
      %p427 = scmp.ne.s32.totalorder %s415, %s416
      %p428 = scmp.eq.s32.totalorder %s47, 3
      %p429 = por %p427, %p428
      %p431 = scmp.ne.s32.totalorder %s416, %s430
      %p432 = scmp.eq.s32.totalorder %s47, 0
      %p433 = por %p431, %p432
      %s435 = sadd.s32 %s434, 1
      %p438 = scmp.eq.s32.totalorder %s41, 3
      %p439 = scmp.ne.s32.totalorder %s434, %s436
      %p440 = scmp.eq.s32.totalorder %s41, 0
      %p441 = por %p439, %p440
      %p442 = scmp.ne.s32.totalorder %s434, %s436
      %p443 = scmp.eq.s32.totalorder %s46, 3
      %p444 = por %p442, %p443
      %p445 = scmp.ne.s32.totalorder %s436, %s437
      %p446 = scmp.eq.s32.totalorder %s46, 0
      %p447 = por %p445, %p446
      %p448 = scmp.ne.s32.totalorder %s436, %s437
      %p449 = scmp.eq.s32.totalorder %s47, 3
      %p450 = por %p448, %p449
      %p452 = scmp.ne.s32.totalorder %s437, %s451
      %p453 = scmp.eq.s32.totalorder %s47, 0
      %p454 = por %p452, %p453
      %p455 = scmp.le.s32.totalorder 1, %s41
      %p456 = scmp.lt.s32.totalorder %s41, 5
      %p457 = pnand %p455, %p456
      %p458 = pneg %p457
      // Predicated region
      $region9: #{tpu_custom_call.1} parent=5 // pred_check
        _
      $region10: #{tpu_custom_call.1} parent=5 // pred_check_branch
        %460 = sbr.rel (%p457) target = $region12
      $region11: #{tpu_custom_call.1} parent=5 // pred_region
        %s461 = ssub.s32 %s41, 1
        // Predicated region
        $region13: #{tpu_custom_call.1} parent=11 // pred_check
          %p462 = pneg %p90
        $region14: #{tpu_custom_call.1} parent=11 // pred_check_branch
          %464 = sbr.rel (%p462) target = $region16
        $region15: #{tpu_custom_call.1} parent=11 // pred_region
          %s466 = ssub.s32 512, 512
          %467 = vsyncadd [#allocation11], %s466
          %s468 = sshll.u32 [#allocation10], 4
          %s469 = int_to_ptr.vmem [resolvable:$true] %s468
          %474 = dma.hbm_to_vmem [thread:$0]  %s2, 512, %s469, [#allocation11], 256, 256, 16
        $region16: #{tpu_custom_call.1} parent=11 // pred_fallthru
          _
        // Predicated region
        $region17: #{tpu_custom_call.1} parent=11 // pred_check
          %p475 = pneg %p111
        $region18: #{tpu_custom_call.1} parent=11 // pred_check_branch
          %477 = sbr.rel (%p475) target = $region20
        $region19: #{tpu_custom_call.1} parent=11 // pred_region
          _
        $region20: #{tpu_custom_call.1} parent=11 // pred_fallthru
          _
        // Predicated region
        $region21: #{tpu_custom_call.1} parent=11 // pred_check
          %p478 = pneg %p132
        $region22: #{tpu_custom_call.1} parent=11 // pred_check_branch
          %480 = sbr.rel (%p478) target = $region24
        $region23: #{tpu_custom_call.1} parent=11 // pred_region
          _
        $region24: #{tpu_custom_call.1} parent=11 // pred_fallthru
          _
        // Predicated region
        $region25: #{tpu_custom_call.1} parent=11 // pred_check
          %p481 = pneg %p153
        $region26: #{tpu_custom_call.1} parent=11 // pred_check_branch
          %483 = sbr.rel (%p481) target = $region28
        $region27: #{tpu_custom_call.1} parent=11 // pred_region
          %s485 = ssub.s32 4096, 4096
          %486 = vsyncadd [#allocation11], %s485
          %s487 = sshll.u32 [#allocation12], 4
          %s488 = int_to_ptr.vmem [resolvable:$true] %s487
          %493 = dma.hbm_to_vmem [thread:$0]  %s5, 4096, %s488, [#allocation11], 128, 128, 8
        $region28: #{tpu_custom_call.1} parent=11 // pred_fallthru
          _
        // Predicated region
        $region29: #{tpu_custom_call.1} parent=11 // pred_check
          %p494 = pneg %p174
        $region30: #{tpu_custom_call.1} parent=11 // pred_check_branch
          %496 = sbr.rel (%p494) target = $region32
        $region31: #{tpu_custom_call.1} parent=11 // pred_region
          %s498 = ssub.s32 4096, 4096
          %499 = vsyncadd [#allocation14], %s498
          %s500 = sshll.u32 [#allocation13], 4
          %s501 = int_to_ptr.vmem [resolvable:$true] %s500
          %506 = dma.hbm_to_vmem [thread:$0]  %s6, 4096, %s501, [#allocation14], 128, 128, 8
        $region32: #{tpu_custom_call.1} parent=11 // pred_fallthru
          _
        // Predicated region
        $region33: #{tpu_custom_call.1} parent=11 // pred_check
          %p507 = pneg %p195
        $region34: #{tpu_custom_call.1} parent=11 // pred_check_branch
          %509 = sbr.rel (%p507) target = $region36
        $region35: #{tpu_custom_call.1} parent=11 // pred_region
          %s511 = ssub.s32 32, 32
          %512 = vsyncadd [#allocation14], %s511
          %s514 = sshll.u32 [#allocation15], 4
          %s515 = int_to_ptr.vmem [resolvable:$true] %s514
          %517 = dma.hbm_to_vmem [thread:$0]  %s7, 32, %s515, [#allocation14]
        $region36: #{tpu_custom_call.1} parent=11 // pred_fallthru
          _
        // Predicated region
        $region37: #{tpu_custom_call.1} parent=11 // pred_check
          %p518 = pneg %p216
        $region38: #{tpu_custom_call.1} parent=11 // pred_check_branch
          %520 = sbr.rel (%p518) target = $region40
        $region39: #{tpu_custom_call.1} parent=11 // pred_region
          %s522 = ssub.s32 32, 32
          %523 = vsyncadd [#allocation17], %s522
          %s525 = sshll.u32 [#allocation16], 4
          %s526 = int_to_ptr.vmem [resolvable:$true] %s525
          %528 = dma.hbm_to_vmem [thread:$0]  %s8, 32, %s526, [#allocation17]
        $region40: #{tpu_custom_call.1} parent=11 // pred_fallthru
          _
        // Predicated region
        $region41: #{tpu_custom_call.1} parent=11 // pred_check
          %p529 = pneg %p237
        $region42: #{tpu_custom_call.1} parent=11 // pred_check_branch
          %531 = sbr.rel (%p529) target = $region44
        $region43: #{tpu_custom_call.1} parent=11 // pred_region
          _
        $region44: #{tpu_custom_call.1} parent=11 // pred_fallthru
          _
        // Predicated region
        $region45: #{tpu_custom_call.1} parent=11 // pred_check
          %p532 = pneg %p258
        $region46: #{tpu_custom_call.1} parent=11 // pred_check_branch
          %534 = sbr.rel (%p532) target = $region48
        $region47: #{tpu_custom_call.1} parent=11 // pred_region
          %s536 = ssub.s32 6144, 6144
          %537 = vsyncadd [#allocation17], %s536
          %s538 = sshll.u32 [#allocation18], 4
          %s539 = int_to_ptr.vmem [resolvable:$true] %s538
          %544 = dma.hbm_to_vmem [thread:$0]  %s10, 6144, %s539, [#allocation17], 128, 128, 8
        $region48: #{tpu_custom_call.1} parent=11 // pred_fallthru
          _
        // Predicated region
        $region49: #{tpu_custom_call.1} parent=11 // pred_check
          %p545 = pneg %p279
        $region50: #{tpu_custom_call.1} parent=11 // pred_check_branch
          %547 = sbr.rel (%p545) target = $region52
        $region51: #{tpu_custom_call.1} parent=11 // pred_region
          _
        $region52: #{tpu_custom_call.1} parent=11 // pred_fallthru
          _
        // Predicated region
        $region53: #{tpu_custom_call.1} parent=11 // pred_check
          %p548 = pneg %p300
        $region54: #{tpu_custom_call.1} parent=11 // pred_check_branch
          %550 = sbr.rel (%p548) target = $region56
        $region55: #{tpu_custom_call.1} parent=11 // pred_region
          %s552 = ssub.s32 32768, 32768
          %553 = vsyncadd [#allocation20], %s552
          %s554 = sshll.u32 [#allocation19], 4
          %s555 = int_to_ptr.vmem [resolvable:$true] %s554
          %560 = dma.hbm_to_vmem [thread:$0]  %s12, 32768, %s555, [#allocation20], 512, 512, 32
        $region56: #{tpu_custom_call.1} parent=11 // pred_fallthru
          _
        // Predicated region
        $region57: #{tpu_custom_call.1} parent=11 // pred_check
          %p561 = pneg %p321
        $region58: #{tpu_custom_call.1} parent=11 // pred_check_branch
          %563 = sbr.rel (%p561) target = $region60
        $region59: #{tpu_custom_call.1} parent=11 // pred_region
          _
        $region60: #{tpu_custom_call.1} parent=11 // pred_fallthru
          _
        // Predicated region
        $region61: #{tpu_custom_call.1} parent=11 // pred_check
          %p564 = pneg %p342
        $region62: #{tpu_custom_call.1} parent=11 // pred_check_branch
          %566 = sbr.rel (%p564) target = $region64
        $region63: #{tpu_custom_call.1} parent=11 // pred_region
          %s568 = ssub.s32 8192, 8192
          %569 = vsyncadd [#allocation20], %s568
          %s570 = sshll.u32 [#allocation21], 4
          %s571 = int_to_ptr.vmem [resolvable:$true] %s570
          %576 = dma.hbm_to_vmem [thread:$0]  %s14, 8192, %s571, [#allocation20], 256, 256, 16
        $region64: #{tpu_custom_call.1} parent=11 // pred_fallthru
          _
        // Predicated region
        $region65: #{tpu_custom_call.1} parent=11 // pred_check
          %p577 = pneg %p363
        $region66: #{tpu_custom_call.1} parent=11 // pred_check_branch
          %579 = sbr.rel (%p577) target = $region68
        $region67: #{tpu_custom_call.1} parent=11 // pred_region
          _
        $region68: #{tpu_custom_call.1} parent=11 // pred_fallthru
          _
      $region12: #{tpu_custom_call.1} parent=5 // pred_fallthru
        _
      %p580 = scmp.lt.s32.totalorder %s41, 4
      // Predicated region
      $region69: #{tpu_custom_call.1} parent=5 // pred_check
        %p581 = pneg %p580
      $region70: #{tpu_custom_call.1} parent=5 // pred_check_branch
        %583 = sbr.rel (%p581) target = $region72
      $region71: #{tpu_custom_call.1} parent=5 // pred_region
        // Predicated region
        $region73: #{tpu_custom_call.1} parent=71 // pred_check
          %p584 = pneg %p63
        $region74: #{tpu_custom_call.1} parent=71 // pred_check_branch
          %586 = sbr.rel (%p584) target = $region76
        $region75: #{tpu_custom_call.1} parent=71 // pred_region
          %s587 = sand.u32 %s53, 1
          %s588 = scalar_lea.sflag [#allocation8], %s587
          %s589 = sand.u32 %s53, 1
          %s590 = scalar_lea.vmem [#allocation7], %s589
          %s591 = sld [smem:[#allocation5 + %s41]]
          %s593 = ssub.s32 16, 16
          %594 = vsyncadd %s588, %s593
          %s595 = smul.addr %s591, 16
          %s596 = scalar_lea.hbm %s1, %s595
          %s598 = sshll.u32 %s590, 4
          %s599 = int_to_ptr.vmem [resolvable:$true] %s598
          %601 = dma.hbm_to_vmem [thread:$0]  %s596, 16, %s599, %s588
        $region76: #{tpu_custom_call.1} parent=71 // pred_fallthru
          _
      $region72: #{tpu_custom_call.1} parent=5 // pred_fallthru
        _
      %p602 = scmp.le.s32.totalorder 1, %s41
      %p603 = scmp.lt.s32.totalorder %s41, 5
      %p604 = pnand %p602, %p603
      %p605 = pneg %p604
      // Predicated region
      $region77: #{tpu_custom_call.1} parent=5 // pred_check
        _
      $region78: #{tpu_custom_call.1} parent=5 // pred_check_branch
        %607 = sbr.rel (%p604) target = $region80
      $region79: #{tpu_custom_call.1} parent=5 // pred_region
        %s608 = ssub.s32 %s41, 1
        %s609 = sand.u32 %s56, 1
        %s610 = scalar_lea.sflag [#allocation8], %s609
        %s611 = sand.u32 %s56, 1
        %s612 = scalar_lea.vmem [#allocation7], %s611
        // Predicated region
        $region81: #{tpu_custom_call.1} parent=79 // pred_check
          %p613 = pneg %p69
        $region82: #{tpu_custom_call.1} parent=79 // pred_check_branch
          %615 = sbr.rel (%p613) target = $region84
        $region83: #{tpu_custom_call.1} parent=79 // pred_region
          %616 = dma.done %s610, 16
        $region84: #{tpu_custom_call.1} parent=79 // pred_fallthru
          _
        // Predicated region
        $region85: #{tpu_custom_call.1} parent=79 // pred_check
          %p617 = pneg %p90
        $region86: #{tpu_custom_call.1} parent=79 // pred_check_branch
          %619 = sbr.rel (%p617) target = $region88
        $region87: #{tpu_custom_call.1} parent=79 // pred_region
          %620 = dma.done [#allocation11], 512
        $region88: #{tpu_custom_call.1} parent=79 // pred_fallthru
          _
        // Predicated region
        $region89: #{tpu_custom_call.1} parent=79 // pred_check
          %p621 = pneg %p153
        $region90: #{tpu_custom_call.1} parent=79 // pred_check_branch
          %623 = sbr.rel (%p621) target = $region92
        $region91: #{tpu_custom_call.1} parent=79 // pred_region
          %624 = dma.done [#allocation11], 4096
        $region92: #{tpu_custom_call.1} parent=79 // pred_fallthru
          _
        // Predicated region
        $region93: #{tpu_custom_call.1} parent=79 // pred_check
          %p625 = pneg %p174
        $region94: #{tpu_custom_call.1} parent=79 // pred_check_branch
          %627 = sbr.rel (%p625) target = $region96
        $region95: #{tpu_custom_call.1} parent=79 // pred_region
          %628 = dma.done [#allocation14], 4096
        $region96: #{tpu_custom_call.1} parent=79 // pred_fallthru
          _
        // Predicated region
        $region97: #{tpu_custom_call.1} parent=79 // pred_check
          %p629 = pneg %p195
        $region98: #{tpu_custom_call.1} parent=79 // pred_check_branch
          %631 = sbr.rel (%p629) target = $region100
        $region99: #{tpu_custom_call.1} parent=79 // pred_region
          %632 = dma.done [#allocation14], 32
        $region100: #{tpu_custom_call.1} parent=79 // pred_fallthru
          _
        // Predicated region
        $region101: #{tpu_custom_call.1} parent=79 // pred_check
          %p633 = pneg %p216
        $region102: #{tpu_custom_call.1} parent=79 // pred_check_branch
          %635 = sbr.rel (%p633) target = $region104
        $region103: #{tpu_custom_call.1} parent=79 // pred_region
          %636 = dma.done [#allocation17], 32
        $region104: #{tpu_custom_call.1} parent=79 // pred_fallthru
          _
        // Predicated region
        $region105: #{tpu_custom_call.1} parent=79 // pred_check
          %p637 = pneg %p258
        $region106: #{tpu_custom_call.1} parent=79 // pred_check_branch
          %639 = sbr.rel (%p637) target = $region108
        $region107: #{tpu_custom_call.1} parent=79 // pred_region
          %640 = dma.done [#allocation17], 6144
        $region108: #{tpu_custom_call.1} parent=79 // pred_fallthru
          _
        // Predicated region
        $region109: #{tpu_custom_call.1} parent=79 // pred_check
          %p641 = pneg %p300
        $region110: #{tpu_custom_call.1} parent=79 // pred_check_branch
          %643 = sbr.rel (%p641) target = $region112
        $region111: #{tpu_custom_call.1} parent=79 // pred_region
          %644 = dma.done [#allocation20], 32768
        $region112: #{tpu_custom_call.1} parent=79 // pred_fallthru
          _
        // Predicated region
        $region113: #{tpu_custom_call.1} parent=79 // pred_check
          %p645 = pneg %p342
        $region114: #{tpu_custom_call.1} parent=79 // pred_check_branch
          %647 = sbr.rel (%p645) target = $region116
        $region115: #{tpu_custom_call.1} parent=79 // pred_region
          %648 = dma.done [#allocation20], 8192
        $region116: #{tpu_custom_call.1} parent=79 // pred_fallthru
          _
        %s649 = sand.u32 %s56, 1
        %s650 = scalar_lea.sflag [#allocation8], %s649
        %s651 = sand.u32 %s56, 1
        %s652 = scalar_lea.vmem [#allocation7], %s651
        %p653 = pneg %p69
        %p654 = pneg %p66
        %p655 = pneg %p90
        %p656 = pneg %p87
        %p657 = pneg %p111
        %p658 = pneg %p108
        %p659 = pneg %p132
        %p660 = pneg %p129
        %p661 = pneg %p153
        %p662 = pneg %p150
        %p663 = pneg %p174
        %p664 = pneg %p171
        %p665 = pneg %p195
        %p666 = pneg %p192
        %p667 = pneg %p216
        %p668 = pneg %p213
        %p669 = pneg %p237
        %p670 = pneg %p234
        %p671 = pneg %p258
        %p672 = pneg %p255
        %p673 = pneg %p279
        %p674 = pneg %p276
        %p675 = pneg %p300
        %p676 = pneg %p297
        %p677 = pneg %p321
        %p678 = pneg %p318
        %p679 = pneg %p342
        %p680 = pneg %p339
        %p681 = pneg %p363
        %p682 = pneg %p360
        %p683 = pneg %p384
        %p684 = pneg %p381
        %p685 = pneg %p405
        %p686 = pneg %p402
        %p687 = pneg %p426
        %p688 = pneg %p423
        %p689 = pneg %p447
        %p690 = pneg %p444
        %s691 = sld [smem:[#allocation5 + %s46]]
        %p693 = scmp.eq.s32.totalorder %s46, 0
        // Predicated region
        $region117: #{tpu_custom_call.1} parent=79 // pred_check
          %p694 = pneg %p693
        $region118: #{tpu_custom_call.1} parent=79 // pred_check_branch
          %696 = sbr.rel (%p694) target = $region120
        $region119: #{tpu_custom_call.1} parent=79 // pred_region
          %v697 = vld [vmem:[%s3] sm:$0x3]
          %v698 = vlaneseq
          %vm699 = vcmp.ge.s32.totalorder %v698, 0
          %vm700 = vcmp.lt.s32.totalorder %v698, 256
          %vm701 = vmand %vm699, %vm700
          %702 = vst.msk [vmem:[#allocation2] sm:$0x3] %vm701, %v697
          %v703 = vld [vmem:[%s4] sm:$0x3]
          %704 = vst.msk [vmem:[#allocation3] sm:$0x3] %vm701, %v703
        $region120: #{tpu_custom_call.1} parent=79 // pred_fallthru
          _
        %v705 = vld [vmem:[#allocation2] sm:$0x3]
        %v706 = vld [vmem:[#allocation3] sm:$0x3]
        %v707 = vld [vmem:[%s612] sm:$0x1]
        %v708 = vld [vmem:[#allocation10] sm:$0xff]
        %v709 = vld [vmem:[#allocation10 + $0x8] sm:$0xff]
        %v710 = vld [vmem:[#allocation10 + $0x10] sm:$0xff]
        %v711 = vld [vmem:[#allocation10 + $0x18] sm:$0xff]
        %v712 = vpack.c.bf16 %v710, %v708
        %v713 = vpack.c.bf16 %v711, %v709
        %v714 = vld [vmem:[#allocation12] sm:$0xff]
        %v715 = vld [vmem:[#allocation12 + $0x8] sm:$0xff]
        %v716 = vld [vmem:[#allocation12 + $0x10] sm:$0xff]
        %v717 = vld [vmem:[#allocation12 + $0x18] sm:$0xff]
        %v718 = vld [vmem:[#allocation12 + $0x20] sm:$0xff]
        %v719 = vld [vmem:[#allocation12 + $0x28] sm:$0xff]
        %v720 = vld [vmem:[#allocation12 + $0x30] sm:$0xff]
        %v721 = vld [vmem:[#allocation12 + $0x38] sm:$0xff]
        %v722 = vld [vmem:[#allocation12 + $0x40] sm:$0xff]
        %v723 = vld [vmem:[#allocation12 + $0x48] sm:$0xff]
        %v724 = vld [vmem:[#allocation12 + $0x50] sm:$0xff]
        %v725 = vld [vmem:[#allocation12 + $0x58] sm:$0xff]
        %v726 = vld [vmem:[#allocation12 + $0x60] sm:$0xff]
        %v727 = vld [vmem:[#allocation12 + $0x68] sm:$0xff]
        %v728 = vld [vmem:[#allocation12 + $0x70] sm:$0xff]
        %v729 = vld [vmem:[#allocation12 + $0x78] sm:$0xff]
        %v730 = vld [vmem:[#allocation12 + $0x80] sm:$0xff]
        %v731 = vld [vmem:[#allocation12 + $0x88] sm:$0xff]
        %v732 = vld [vmem:[#allocation12 + $0x90] sm:$0xff]
        %v733 = vld [vmem:[#allocation12 + $0x98] sm:$0xff]
        %v734 = vld [vmem:[#allocation12 + $0xa0] sm:$0xff]
        %v735 = vld [vmem:[#allocation12 + $0xa8] sm:$0xff]
        %v736 = vld [vmem:[#allocation12 + $0xb0] sm:$0xff]
        %v737 = vld [vmem:[#allocation12 + $0xb8] sm:$0xff]
        %v738 = vld [vmem:[#allocation12 + $0xc0] sm:$0xff]
        %v739 = vld [vmem:[#allocation12 + $0xc8] sm:$0xff]
        %v740 = vld [vmem:[#allocation12 + $0xd0] sm:$0xff]
        %v741 = vld [vmem:[#allocation12 + $0xd8] sm:$0xff]
        %v742 = vld [vmem:[#allocation12 + $0xe0] sm:$0xff]
        %v743 = vld [vmem:[#allocation12 + $0xe8] sm:$0xff]
        %v744 = vld [vmem:[#allocation12 + $0xf0] sm:$0xff]
        %v745 = vld [vmem:[#allocation12 + $0xf8] sm:$0xff]
        %v747 = vlaneseq
        %v748 = vshrl.u32 %v747, 7
        %v749 = vsub.s32 0, %v748
        %v750 = vrot.slane %v705, %v749
        %v751 = vlaneseq
        %v752 = vshrl.u32 %v751, 7
        %v753 = vsub.s32 1, %v752
        %v754 = vrot.slane %v705, %v753
        %v757 = vpack.c.bf16 %v750, %v750
        %v758 = vpack.c.bf16 %v754, %v754
        %v759 = vld [vmem:[#allocation13] sm:$0xff]
        %v760 = vld [vmem:[#allocation13 + $0x8] sm:$0xff]
        %v761 = vld [vmem:[#allocation13 + $0x10] sm:$0xff]
        %v762 = vld [vmem:[#allocation13 + $0x18] sm:$0xff]
        %v763 = vld [vmem:[#allocation13 + $0x20] sm:$0xff]
        %v764 = vld [vmem:[#allocation13 + $0x28] sm:$0xff]
        %v765 = vld [vmem:[#allocation13 + $0x30] sm:$0xff]
        %v766 = vld [vmem:[#allocation13 + $0x38] sm:$0xff]
        %v767 = vld [vmem:[#allocation13 + $0x40] sm:$0xff]
        %v768 = vld [vmem:[#allocation13 + $0x48] sm:$0xff]
        %v769 = vld [vmem:[#allocation13 + $0x50] sm:$0xff]
        %v770 = vld [vmem:[#allocation13 + $0x58] sm:$0xff]
        %v771 = vld [vmem:[#allocation13 + $0x60] sm:$0xff]
        %v772 = vld [vmem:[#allocation13 + $0x68] sm:$0xff]
        %v773 = vld [vmem:[#allocation13 + $0x70] sm:$0xff]
        %v774 = vld [vmem:[#allocation13 + $0x78] sm:$0xff]
        %v775 = vld [vmem:[#allocation13 + $0x80] sm:$0xff]
        %v776 = vld [vmem:[#allocation13 + $0x88] sm:$0xff]
        %v777 = vld [vmem:[#allocation13 + $0x90] sm:$0xff]
        %v778 = vld [vmem:[#allocation13 + $0x98] sm:$0xff]
        %v779 = vld [vmem:[#allocation13 + $0xa0] sm:$0xff]
        %v780 = vld [vmem:[#allocation13 + $0xa8] sm:$0xff]
        %v781 = vld [vmem:[#allocation13 + $0xb0] sm:$0xff]
        %v782 = vld [vmem:[#allocation13 + $0xb8] sm:$0xff]
        %v783 = vld [vmem:[#allocation13 + $0xc0] sm:$0xff]
        %v784 = vld [vmem:[#allocation13 + $0xc8] sm:$0xff]
        %v785 = vld [vmem:[#allocation13 + $0xd0] sm:$0xff]
        %v786 = vld [vmem:[#allocation13 + $0xd8] sm:$0xff]
        %v787 = vld [vmem:[#allocation13 + $0xe0] sm:$0xff]
        %v788 = vld [vmem:[#allocation13 + $0xe8] sm:$0xff]
        %v789 = vld [vmem:[#allocation13 + $0xf0] sm:$0xff]
        %v790 = vld [vmem:[#allocation13 + $0xf8] sm:$0xff]
        %v823 = vunpack.c.l.b16 %v759
        %v824 = vunpack.c.h.b16 %v759
        %v825 = vunpack.c.l.b16 %v760
        %v826 = vunpack.c.h.b16 %v760
        %v827 = vunpack.c.l.b16 %v761
        %v828 = vunpack.c.h.b16 %v761
        %v829 = vunpack.c.l.b16 %v762
        %v830 = vunpack.c.h.b16 %v762
        %v831 = vunpack.c.l.b16 %v763
        %v832 = vunpack.c.h.b16 %v763
        %v833 = vunpack.c.l.b16 %v764
        %v834 = vunpack.c.h.b16 %v764
        %v835 = vunpack.c.l.b16 %v765
        %v836 = vunpack.c.h.b16 %v765
        %v837 = vunpack.c.l.b16 %v766
        %v838 = vunpack.c.h.b16 %v766
        %v839 = vunpack.c.l.b16 %v767
        %v840 = vunpack.c.h.b16 %v767
        %v841 = vunpack.c.l.b16 %v768
        %v842 = vunpack.c.h.b16 %v768
        %v843 = vunpack.c.l.b16 %v769
        %v844 = vunpack.c.h.b16 %v769
        %v845 = vunpack.c.l.b16 %v770
        %v846 = vunpack.c.h.b16 %v770
        %v847 = vunpack.c.l.b16 %v771
        %v848 = vunpack.c.h.b16 %v771
        %v849 = vunpack.c.l.b16 %v772
        %v850 = vunpack.c.h.b16 %v772
        %v851 = vunpack.c.l.b16 %v773
        %v852 = vunpack.c.h.b16 %v773
        %v853 = vunpack.c.l.b16 %v774
        %v854 = vunpack.c.h.b16 %v774
        %v855 = vunpack.c.l.b16 %v775
        %v856 = vunpack.c.h.b16 %v775
        %v857 = vunpack.c.l.b16 %v776
        %v858 = vunpack.c.h.b16 %v776
        %v859 = vunpack.c.l.b16 %v777
        %v860 = vunpack.c.h.b16 %v777
        %v861 = vunpack.c.l.b16 %v778
        %v862 = vunpack.c.h.b16 %v778
        %v863 = vunpack.c.l.b16 %v779
        %v864 = vunpack.c.h.b16 %v779
        %v865 = vunpack.c.l.b16 %v780
        %v866 = vunpack.c.h.b16 %v780
        %v867 = vunpack.c.l.b16 %v781
        %v868 = vunpack.c.h.b16 %v781
        %v869 = vunpack.c.l.b16 %v782
        %v870 = vunpack.c.h.b16 %v782
        %v871 = vunpack.c.l.b16 %v783
        %v872 = vunpack.c.h.b16 %v783
        %v873 = vunpack.c.l.b16 %v784
        %v874 = vunpack.c.h.b16 %v784
        %v875 = vunpack.c.l.b16 %v785
        %v876 = vunpack.c.h.b16 %v785
        %v877 = vunpack.c.l.b16 %v786
        %v878 = vunpack.c.h.b16 %v786
        %v879 = vunpack.c.l.b16 %v787
        %v880 = vunpack.c.h.b16 %v787
        %v881 = vunpack.c.l.b16 %v788
        %v882 = vunpack.c.h.b16 %v788
        %v883 = vunpack.c.l.b16 %v789
        %v884 = vunpack.c.h.b16 %v789
        %v885 = vunpack.c.l.b16 %v790
        %v886 = vunpack.c.h.b16 %v790
        %v887 = vpack.c.b16 %v825, %v823
        %v888 = vpack.c.b16 %v826, %v824
        %v889 = vpack.c.b16 %v829, %v827
        %v890 = vpack.c.b16 %v830, %v828
        %v891 = vpack.c.b16 %v833, %v831
        %v892 = vpack.c.b16 %v834, %v832
        %v893 = vpack.c.b16 %v837, %v835
        %v894 = vpack.c.b16 %v838, %v836
        %v895 = vpack.c.b16 %v841, %v839
        %v896 = vpack.c.b16 %v842, %v840
        %v897 = vpack.c.b16 %v845, %v843
        %v898 = vpack.c.b16 %v846, %v844
        %v899 = vpack.c.b16 %v849, %v847
        %v900 = vpack.c.b16 %v850, %v848
        %v901 = vpack.c.b16 %v853, %v851
        %v902 = vpack.c.b16 %v854, %v852
        %v903 = vpack.c.b16 %v857, %v855
        %v904 = vpack.c.b16 %v858, %v856
        %v905 = vpack.c.b16 %v861, %v859
        %v906 = vpack.c.b16 %v862, %v860
        %v907 = vpack.c.b16 %v865, %v863
        %v908 = vpack.c.b16 %v866, %v864
        %v909 = vpack.c.b16 %v869, %v867
        %v910 = vpack.c.b16 %v870, %v868
        %v911 = vpack.c.b16 %v873, %v871
        %v912 = vpack.c.b16 %v874, %v872
        %v913 = vpack.c.b16 %v877, %v875
        %v914 = vpack.c.b16 %v878, %v876
        %v915 = vpack.c.b16 %v881, %v879
        %v916 = vpack.c.b16 %v882, %v880
        %v917 = vpack.c.b16 %v885, %v883
        %v918 = vpack.c.b16 %v886, %v884
        %951 = vmatprep.subr.bf16.mxu0 %v902
        %952 = vmatpush1.bf16.msra.mxu0 %v901
        %953 = vmatprep.subr.bf16.mxu0 %v900
        %954 = vmatpush1.bf16.msra.mxu0 %v899
        %955 = vmatprep.subr.bf16.mxu0 %v898
        %956 = vmatpush1.bf16.msra.mxu0 %v897
        %957 = vmatprep.subr.bf16.mxu0 %v896
        %958 = vmatpush1.bf16.msra.mxu0 %v895
        %959 = vmatprep.subr.bf16.mxu0 %v894
        %960 = vmatpush1.bf16.msra.mxu0 %v893
        %961 = vmatprep.subr.bf16.mxu0 %v892
        %962 = vmatpush1.bf16.msra.mxu0 %v891
        %963 = vmatprep.subr.bf16.mxu0 %v890
        %964 = vmatpush1.bf16.msra.mxu0 %v889
        %965 = vmatprep.subr.bf16.mxu0 %v888
        %966 = vmatpush1.bf16.msra.mxu0 %v887
        %967 = vmatprep.subr.bf16.mxu0 %v918
        %968 = vmatpush2.bf16.msra.mxu0 %v917
        %969 = vmatprep.subr.bf16.mxu0 %v916
        %970 = vmatpush2.bf16.msra.mxu0 %v915
        %971 = vmatprep.subr.bf16.mxu0 %v914
        %972 = vmatpush2.bf16.msra.mxu0 %v913
        %973 = vmatprep.subr.bf16.mxu0 %v912
        %974 = vmatpush2.bf16.msra.mxu0 %v911
        %975 = vmatprep.subr.bf16.mxu0 %v910
        %976 = vmatpush2.bf16.msra.mxu0 %v909
        %977 = vmatprep.subr.bf16.mxu0 %v908
        %978 = vmatpush2.bf16.msra.mxu0 %v907
        %979 = vmatprep.subr.bf16.mxu0 %v906
        %980 = vmatpush2.bf16.msra.mxu0 %v905
        %981 = vmatprep.subr.bf16.mxu0 %v904
        %982 = vmatpush2.bf16.msra.mxu0 %v903
        %983 = vmatprep.mubr.bf16.mxu0 %v758
        %984 = vmatmul.mubr.bf16.gmra.mxu0 %v757
        %v985 = vpop.f32.mrf.mxu0
        %v986 = vadd.f32 0.0, %v985
        %v987 = vpop.f32.mrf.mxu0
        %v988 = vadd.f32 0.0, %v987
        %v989 = vpop.f32.mrf.mxu0
        %v990 = vpop.f32.mrf.mxu0
        %991 = vdwg.mxu0
        %v992 = vlaneseq
        %v993 = vshrl.u32 %v992, 7
        %v994 = vsub.s32 0, %v993
        %v995 = vrot.slane %v986, %v994
        %v996 = vlaneseq
        %v997 = vshrl.u32 %v996, 7
        %v998 = vsub.s32 0, %v997
        %v999 = vrot.slane %v988, %v998
        %v1032 = vunpack.c.l.b16 %v714
        %v1033 = vunpack.c.h.b16 %v714
        %v1034 = vunpack.c.l.b16 %v715
        %v1035 = vunpack.c.h.b16 %v715
        %v1036 = vunpack.c.l.b16 %v716
        %v1037 = vunpack.c.h.b16 %v716
        %v1038 = vunpack.c.l.b16 %v717
        %v1039 = vunpack.c.h.b16 %v717
        %v1040 = vunpack.c.l.b16 %v718
        %v1041 = vunpack.c.h.b16 %v718
        %v1042 = vunpack.c.l.b16 %v719
        %v1043 = vunpack.c.h.b16 %v719
        %v1044 = vunpack.c.l.b16 %v720
        %v1045 = vunpack.c.h.b16 %v720
        %v1046 = vunpack.c.l.b16 %v721
        %v1047 = vunpack.c.h.b16 %v721
        %v1048 = vunpack.c.l.b16 %v722
        %v1049 = vunpack.c.h.b16 %v722
        %v1050 = vunpack.c.l.b16 %v723
        %v1051 = vunpack.c.h.b16 %v723
        %v1052 = vunpack.c.l.b16 %v724
        %v1053 = vunpack.c.h.b16 %v724
        %v1054 = vunpack.c.l.b16 %v725
        %v1055 = vunpack.c.h.b16 %v725
        %v1056 = vunpack.c.l.b16 %v726
        %v1057 = vunpack.c.h.b16 %v726
        %v1058 = vunpack.c.l.b16 %v727
        %v1059 = vunpack.c.h.b16 %v727
        %v1060 = vunpack.c.l.b16 %v728
        %v1061 = vunpack.c.h.b16 %v728
        %v1062 = vunpack.c.l.b16 %v729
        %v1063 = vunpack.c.h.b16 %v729
        %v1064 = vunpack.c.l.b16 %v730
        %v1065 = vunpack.c.h.b16 %v730
        %v1066 = vunpack.c.l.b16 %v731
        %v1067 = vunpack.c.h.b16 %v731
        %v1068 = vunpack.c.l.b16 %v732
        %v1069 = vunpack.c.h.b16 %v732
        %v1070 = vunpack.c.l.b16 %v733
        %v1071 = vunpack.c.h.b16 %v733
        %v1072 = vunpack.c.l.b16 %v734
        %v1073 = vunpack.c.h.b16 %v734
        %v1074 = vunpack.c.l.b16 %v735
        %v1075 = vunpack.c.h.b16 %v735
        %v1076 = vunpack.c.l.b16 %v736
        %v1077 = vunpack.c.h.b16 %v736
        %v1078 = vunpack.c.l.b16 %v737
        %v1079 = vunpack.c.h.b16 %v737
        %v1080 = vunpack.c.l.b16 %v738
        %v1081 = vunpack.c.h.b16 %v738
        %v1082 = vunpack.c.l.b16 %v739
        %v1083 = vunpack.c.h.b16 %v739
        %v1084 = vunpack.c.l.b16 %v740
        %v1085 = vunpack.c.h.b16 %v740
        %v1086 = vunpack.c.l.b16 %v741
        %v1087 = vunpack.c.h.b16 %v741
        %v1088 = vunpack.c.l.b16 %v742
        %v1089 = vunpack.c.h.b16 %v742
        %v1090 = vunpack.c.l.b16 %v743
        %v1091 = vunpack.c.h.b16 %v743
        %v1092 = vunpack.c.l.b16 %v744
        %v1093 = vunpack.c.h.b16 %v744
        %v1094 = vunpack.c.l.b16 %v745
        %v1095 = vunpack.c.h.b16 %v745
        %v1096 = vpack.c.b16 %v1034, %v1032
        %v1097 = vpack.c.b16 %v1035, %v1033
        %v1098 = vpack.c.b16 %v1038, %v1036
        %v1099 = vpack.c.b16 %v1039, %v1037
        %v1100 = vpack.c.b16 %v1042, %v1040
        %v1101 = vpack.c.b16 %v1043, %v1041
        %v1102 = vpack.c.b16 %v1046, %v1044
        %v1103 = vpack.c.b16 %v1047, %v1045
        %v1104 = vpack.c.b16 %v1050, %v1048
        %v1105 = vpack.c.b16 %v1051, %v1049
        %v1106 = vpack.c.b16 %v1054, %v1052
        %v1107 = vpack.c.b16 %v1055, %v1053
        %v1108 = vpack.c.b16 %v1058, %v1056
        %v1109 = vpack.c.b16 %v1059, %v1057
        %v1110 = vpack.c.b16 %v1062, %v1060
        %v1111 = vpack.c.b16 %v1063, %v1061
        %v1112 = vpack.c.b16 %v1066, %v1064
        %v1113 = vpack.c.b16 %v1067, %v1065
        %v1114 = vpack.c.b16 %v1070, %v1068
        %v1115 = vpack.c.b16 %v1071, %v1069
        %v1116 = vpack.c.b16 %v1074, %v1072
        %v1117 = vpack.c.b16 %v1075, %v1073
        %v1118 = vpack.c.b16 %v1078, %v1076
        %v1119 = vpack.c.b16 %v1079, %v1077
        %v1120 = vpack.c.b16 %v1082, %v1080
        %v1121 = vpack.c.b16 %v1083, %v1081
        %v1122 = vpack.c.b16 %v1086, %v1084
        %v1123 = vpack.c.b16 %v1087, %v1085
        %v1124 = vpack.c.b16 %v1090, %v1088
        %v1125 = vpack.c.b16 %v1091, %v1089
        %v1126 = vpack.c.b16 %v1094, %v1092
        %v1127 = vpack.c.b16 %v1095, %v1093
        %1160 = vmatprep.subr.bf16.mxu0 %v1111
        %1161 = vmatpush1.bf16.msra.mxu0 %v1110
        %1162 = vmatprep.subr.bf16.mxu0 %v1109
        %1163 = vmatpush1.bf16.msra.mxu0 %v1108
        %1164 = vmatprep.subr.bf16.mxu0 %v1107
        %1165 = vmatpush1.bf16.msra.mxu0 %v1106
        %1166 = vmatprep.subr.bf16.mxu0 %v1105
        %1167 = vmatpush1.bf16.msra.mxu0 %v1104
        %1168 = vmatprep.subr.bf16.mxu0 %v1103
        %1169 = vmatpush1.bf16.msra.mxu0 %v1102
        %1170 = vmatprep.subr.bf16.mxu0 %v1101
        %1171 = vmatpush1.bf16.msra.mxu0 %v1100
        %1172 = vmatprep.subr.bf16.mxu0 %v1099
        %1173 = vmatpush1.bf16.msra.mxu0 %v1098
        %1174 = vmatprep.subr.bf16.mxu0 %v1097
        %1175 = vmatpush1.bf16.msra.mxu0 %v1096
        %1176 = vmatprep.subr.bf16.mxu0 %v1127
        %1177 = vmatpush2.bf16.msra.mxu0 %v1126
        %1178 = vmatprep.subr.bf16.mxu0 %v1125
        %1179 = vmatpush2.bf16.msra.mxu0 %v1124
        %1180 = vmatprep.subr.bf16.mxu0 %v1123
        %1181 = vmatpush2.bf16.msra.mxu0 %v1122
        %1182 = vmatprep.subr.bf16.mxu0 %v1121
        %1183 = vmatpush2.bf16.msra.mxu0 %v1120
        %1184 = vmatprep.subr.bf16.mxu0 %v1119
        %1185 = vmatpush2.bf16.msra.mxu0 %v1118
        %1186 = vmatprep.subr.bf16.mxu0 %v1117
        %1187 = vmatpush2.bf16.msra.mxu0 %v1116
        %1188 = vmatprep.subr.bf16.mxu0 %v1115
        %1189 = vmatpush2.bf16.msra.mxu0 %v1114
        %1190 = vmatprep.subr.bf16.mxu0 %v1113
        %1191 = vmatpush2.bf16.msra.mxu0 %v1112
        %1192 = vmatprep.mubr.bf16.mxu0 %v713
        %1193 = vmatmul.mubr.bf16.gmra.mxu0 %v712
        %v1194 = vpop.f32.mrf.mxu0
        %v1195 = vadd.f32 %v995, %v1194
        %v1196 = vpop.f32.mrf.mxu0
        %v1197 = vadd.f32 %v999, %v1196
        %v1198 = vpop.f32.mrf.mxu0
        %v1199 = vadd.f32 %v995, %v1198
        %v1200 = vpop.f32.mrf.mxu0
        %v1201 = vadd.f32 %v999, %v1200
        %1202 = vdwg.mxu0
        %v1203 = vld [vmem:[#allocation15] sm:$0x3]
        %v1205 = vlaneseq
        %v1206 = vshrl.u32 %v1205, 7
        %v1207 = vsub.s32 0, %v1206
        %v1208 = vrot.slane %v1203, %v1207
        %v1209 = vlaneseq
        %v1210 = vshrl.u32 %v1209, 7
        %v1211 = vsub.s32 1, %v1210
        %v1212 = vrot.slane %v1203, %v1211
        %v1215 = vadd.f32 %v1195, %v1208
        %v1216 = vadd.f32 %v1197, %v1212
        %v1217 = vadd.f32 %v1199, %v1208
        %v1218 = vadd.f32 %v1201, %v1212
        %v1219 = vmax.f32 %v1215, 0.0
        %v1220 = vmax.f32 %v1216, 0.0
        %v1221 = vmax.f32 %v1217, 0.0
        %v1222 = vmax.f32 %v1218, 0.0
        %v1223 = vld [vmem:[#allocation16] sm:$0x3]
        %v1224 = vunpack.c.l.bf16 %v1223
        %v1226 = vlaneseq
        %v1227 = vshrl.u32 %v1226, 7
        %v1228 = vsub.s32 0, %v1227
        %v1229 = vrot.slane %v1224, %v1228
        %v1230 = vlaneseq
        %v1231 = vshrl.u32 %v1230, 7
        %v1232 = vsub.s32 2, %v1231
        %v1233 = vrot.slane %v1224, %v1232
        %v1236 = vlaneseq
        %v1237 = vshrl.u32 %v1236, 7
        %v1238 = vsub.s32 0, %v1237
        %v1239 = vrot.slane %v1229, %v1238
        %v1240 = vlaneseq
        %v1241 = vshrl.u32 %v1240, 7
        %v1242 = vsub.s32 0, %v1241
        %v1243 = vrot.slane %v1233, %v1242
        %v1244 = vmul.f32 %v1219, %v1239
        %v1245 = vmul.f32 %v1220, %v1243
        %v1246 = vmul.f32 %v1221, %v1239
        %v1247 = vmul.f32 %v1222, %v1243
        %v1248 = vadd.f32 %v1244, %v1245
        %1249 = vadd.xlane.f32.xlu0 %v1248
        %v1250 = vpop.xlane.xlu0 %1249
        %v1251 = vadd.f32 %v1246, %v1247
        %1252 = vadd.xlane.f32.xlu0 %v1251
        %v1253 = vpop.xlane.xlu0 %1252
        %v1254 = vld [vmem:[#allocation6] sm:$0x1]
        %v1256 = vlaneseq
        %v1257 = vshrl.u32 %v1256, 7
        %v1258 = vsub.s32 0, %v1257
        %v1259 = vrot.slane %v1254, %v1258
        %v1261 = vadd.f32 %v1250, %v1259
        %v1262 = vadd.f32 %v1253, %v1259
        %v1263 = vlaneseq
        %v1264 = vshrl.u32 %v1263, 7
        %v1265 = vadd.s32 %v1264, 8
        %vm1266 = vcmp.lt.s32.totalorder %v1264, 15
        %vm1267 = vcmp.lt.s32.totalorder %v1265, 15
        %v1268 = vsel %vm1266, %v1261, -1e+30
        %v1269 = vsel %vm1267, %v1262, -1e+30
        %vm1270 = vcmask 7168
        %v1271 = vsel %vm1270, %v1268, -inf
        %v1272 = vsel %vm1270, %v1269, -inf
        %v1273 = vmax.f32 %v1271, %v1272
        %v1274 = vrot.slane %v1273, 4
        %v1275 = vmax.f32 %v1273, %v1274
        %v1276 = vrot.slane %v1275, 2
        %v1277 = vmax.f32 %v1275, %v1276
        %v1278 = vrot.slane %v1277, 1
        %v1279 = vmax.f32 %v1277, %v1278
        %v1280 = vsub.f32 %v1268, %v1279
        %v1281 = vsub.f32 %v1269, %v1279
        %v1282 = vmul.f32 %v1280, 1.442695
        %v1283 = vpow.pop %v1282
        %v1284 = vmul.f32 %v1281, 1.442695
        %v1285 = vpow.pop %v1284
        %v1286 = vsel %vm1270, %v1283, 0.0
        %v1287 = vsel %vm1270, %v1285, 0.0
        %v1288 = vadd.f32 %v1286, %v1287
        %v1289 = vrot.slane %v1288, 4
        %v1290 = vadd.f32 %v1288, %v1289
        %v1291 = vrot.slane %v1290, 2
        %v1292 = vadd.f32 %v1290, %v1291
        %v1293 = vrot.slane %v1292, 1
        %v1294 = vadd.f32 %v1292, %v1293
        %v1295 = vrcp.pop %v1294
        %v1296 = vmul.f32 %v1283, %v1295
        %v1297 = vmul.f32 %v1285, %v1295
        %s1298 = smul.u32 %s46, 16
        %s1299 = scalar_lea.vmem %s19, %s1298
        %1300 = vst.msk [vmem:[%s1299] sm:$0xff] %vm1270, %v1296
        %1301 = vst.msk [vmem:[%s1299 + $0x8] sm:$0xff] %vm1270, %v1297
        %1303 = vset.pattern.permute.xlu0 0
        %1304 = vperm.xlu0 %1303, %v1296
        %v1305 = vpop.permute.xlu0 %1304
        %1308 = vset.pattern.permute.xlu0 0
        %1309 = vperm.xlu0 %1308, %v1297
        %v1310 = vpop.permute.xlu0 %1309
        %v1312 = vmul.f32 %v1305, %v708
        %v1313 = vmul.f32 %v1305, %v709
        %v1314 = vmul.f32 %v1310, %v710
        %v1315 = vmul.f32 %v1310, %v711
        %v1316 = vadd.f32 %v1312, %v1314
        %v1317 = vrot.slane %v1316, 4
        %v1318 = vadd.f32 %v1316, %v1317
        %v1319 = vrot.slane %v1318, 2
        %v1320 = vadd.f32 %v1318, %v1319
        %v1321 = vrot.slane %v1320, 1
        %v1322 = vadd.f32 %v1320, %v1321
        %v1323 = vadd.f32 %v1313, %v1315
        %v1324 = vrot.slane %v1323, 4
        %v1325 = vadd.f32 %v1323, %v1324
        %v1326 = vrot.slane %v1325, 2
        %v1327 = vadd.f32 %v1325, %v1326
        %v1328 = vrot.slane %v1327, 1
        %v1329 = vadd.f32 %v1327, %v1328
        %v1330 = vpack.c.bf16 %v707, %v707
        %v1331 = vpack.c.bf16 %v1322, %v1322
        %v1332 = vpack.c.bf16 %v1329, %v1329
        %v1333 = vld [vmem:[#allocation18] sm:$0xff]
        %v1334 = vld [vmem:[#allocation18 + $0x8] sm:$0xff]
        %v1335 = vld [vmem:[#allocation18 + $0x10] sm:$0xff]
        %v1336 = vld [vmem:[#allocation18 + $0x18] sm:$0xff]
        %v1337 = vld [vmem:[#allocation18 + $0x20] sm:$0xff]
        %v1338 = vld [vmem:[#allocation18 + $0x28] sm:$0xff]
        %v1339 = vld [vmem:[#allocation18 + $0x30] sm:$0xff]
        %v1340 = vld [vmem:[#allocation18 + $0x38] sm:$0xff]
        %v1341 = vld [vmem:[#allocation18 + $0x40] sm:$0xff]
        %v1342 = vld [vmem:[#allocation18 + $0x48] sm:$0xff]
        %v1343 = vld [vmem:[#allocation18 + $0x50] sm:$0xff]
        %v1344 = vld [vmem:[#allocation18 + $0x58] sm:$0xff]
        %v1345 = vld [vmem:[#allocation18 + $0x60] sm:$0xff]
        %v1346 = vld [vmem:[#allocation18 + $0x68] sm:$0xff]
        %v1347 = vld [vmem:[#allocation18 + $0x70] sm:$0xff]
        %v1348 = vld [vmem:[#allocation18 + $0x78] sm:$0xff]
        %v1349 = vld [vmem:[#allocation18 + $0x80] sm:$0xff]
        %v1350 = vld [vmem:[#allocation18 + $0x88] sm:$0xff]
        %v1351 = vld [vmem:[#allocation18 + $0x90] sm:$0xff]
        %v1352 = vld [vmem:[#allocation18 + $0x98] sm:$0xff]
        %v1353 = vld [vmem:[#allocation18 + $0xa0] sm:$0xff]
        %v1354 = vld [vmem:[#allocation18 + $0xa8] sm:$0xff]
        %v1355 = vld [vmem:[#allocation18 + $0xb0] sm:$0xff]
        %v1356 = vld [vmem:[#allocation18 + $0xb8] sm:$0xff]
        %v1357 = vld [vmem:[#allocation18 + $0xc0] sm:$0xff]
        %v1358 = vld [vmem:[#allocation18 + $0xc8] sm:$0xff]
        %v1359 = vld [vmem:[#allocation18 + $0xd0] sm:$0xff]
        %v1360 = vld [vmem:[#allocation18 + $0xd8] sm:$0xff]
        %v1361 = vld [vmem:[#allocation18 + $0xe0] sm:$0xff]
        %v1362 = vld [vmem:[#allocation18 + $0xe8] sm:$0xff]
        %v1363 = vld [vmem:[#allocation18 + $0xf0] sm:$0xff]
        %v1364 = vld [vmem:[#allocation18 + $0xf8] sm:$0xff]
        %v1365 = vld [vmem:[#allocation18 + $0x100] sm:$0xff]
        %v1366 = vld [vmem:[#allocation18 + $0x108] sm:$0xff]
        %v1367 = vld [vmem:[#allocation18 + $0x110] sm:$0xff]
        %v1368 = vld [vmem:[#allocation18 + $0x118] sm:$0xff]
        %v1369 = vld [vmem:[#allocation18 + $0x120] sm:$0xff]
        %v1370 = vld [vmem:[#allocation18 + $0x128] sm:$0xff]
        %v1371 = vld [vmem:[#allocation18 + $0x130] sm:$0xff]
        %v1372 = vld [vmem:[#allocation18 + $0x138] sm:$0xff]
        %v1373 = vld [vmem:[#allocation18 + $0x140] sm:$0xff]
        %v1374 = vld [vmem:[#allocation18 + $0x148] sm:$0xff]
        %v1375 = vld [vmem:[#allocation18 + $0x150] sm:$0xff]
        %v1376 = vld [vmem:[#allocation18 + $0x158] sm:$0xff]
        %v1377 = vld [vmem:[#allocation18 + $0x160] sm:$0xff]
        %v1378 = vld [vmem:[#allocation18 + $0x168] sm:$0xff]
        %v1379 = vld [vmem:[#allocation18 + $0x170] sm:$0xff]
        %v1380 = vld [vmem:[#allocation18 + $0x178] sm:$0xff]
        %v1381 = vld [vmem:[%s11] sm:$0x3]
        %v1430 = vunpack.c.l.b16 %v1333
        %v1431 = vunpack.c.h.b16 %v1333
        %v1432 = vunpack.c.l.b16 %v1334
        %v1433 = vunpack.c.h.b16 %v1334
        %v1434 = vunpack.c.l.b16 %v1335
        %v1435 = vunpack.c.h.b16 %v1335
        %v1436 = vunpack.c.l.b16 %v1336
        %v1437 = vunpack.c.h.b16 %v1336
        %v1438 = vunpack.c.l.b16 %v1337
        %v1439 = vunpack.c.h.b16 %v1337
        %v1440 = vunpack.c.l.b16 %v1338
        %v1441 = vunpack.c.h.b16 %v1338
        %v1442 = vunpack.c.l.b16 %v1339
        %v1443 = vunpack.c.h.b16 %v1339
        %v1444 = vunpack.c.l.b16 %v1340
        %v1445 = vunpack.c.h.b16 %v1340
        %v1446 = vunpack.c.l.b16 %v1341
        %v1447 = vunpack.c.h.b16 %v1341
        %v1448 = vunpack.c.l.b16 %v1342
        %v1449 = vunpack.c.h.b16 %v1342
        %v1450 = vunpack.c.l.b16 %v1343
        %v1451 = vunpack.c.h.b16 %v1343
        %v1452 = vunpack.c.l.b16 %v1344
        %v1453 = vunpack.c.h.b16 %v1344
        %v1454 = vunpack.c.l.b16 %v1345
        %v1455 = vunpack.c.h.b16 %v1345
        %v1456 = vunpack.c.l.b16 %v1346
        %v1457 = vunpack.c.h.b16 %v1346
        %v1458 = vunpack.c.l.b16 %v1347
        %v1459 = vunpack.c.h.b16 %v1347
        %v1460 = vunpack.c.l.b16 %v1348
        %v1461 = vunpack.c.h.b16 %v1348
        %v1462 = vunpack.c.l.b16 %v1349
        %v1463 = vunpack.c.h.b16 %v1349
        %v1464 = vunpack.c.l.b16 %v1350
        %v1465 = vunpack.c.h.b16 %v1350
        %v1466 = vunpack.c.l.b16 %v1351
        %v1467 = vunpack.c.h.b16 %v1351
        %v1468 = vunpack.c.l.b16 %v1352
        %v1469 = vunpack.c.h.b16 %v1352
        %v1470 = vunpack.c.l.b16 %v1353
        %v1471 = vunpack.c.h.b16 %v1353
        %v1472 = vunpack.c.l.b16 %v1354
        %v1473 = vunpack.c.h.b16 %v1354
        %v1474 = vunpack.c.l.b16 %v1355
        %v1475 = vunpack.c.h.b16 %v1355
        %v1476 = vunpack.c.l.b16 %v1356
        %v1477 = vunpack.c.h.b16 %v1356
        %v1478 = vunpack.c.l.b16 %v1357
        %v1479 = vunpack.c.h.b16 %v1357
        %v1480 = vunpack.c.l.b16 %v1358
        %v1481 = vunpack.c.h.b16 %v1358
        %v1482 = vunpack.c.l.b16 %v1359
        %v1483 = vunpack.c.h.b16 %v1359
        %v1484 = vunpack.c.l.b16 %v1360
        %v1485 = vunpack.c.h.b16 %v1360
        %v1486 = vunpack.c.l.b16 %v1361
        %v1487 = vunpack.c.h.b16 %v1361
        %v1488 = vunpack.c.l.b16 %v1362
        %v1489 = vunpack.c.h.b16 %v1362
        %v1490 = vunpack.c.l.b16 %v1363
        %v1491 = vunpack.c.h.b16 %v1363
        %v1492 = vunpack.c.l.b16 %v1364
        %v1493 = vunpack.c.h.b16 %v1364
        %v1494 = vunpack.c.l.b16 %v1365
        %v1495 = vunpack.c.h.b16 %v1365
        %v1496 = vunpack.c.l.b16 %v1366
        %v1497 = vunpack.c.h.b16 %v1366
        %v1498 = vunpack.c.l.b16 %v1367
        %v1499 = vunpack.c.h.b16 %v1367
        %v1500 = vunpack.c.l.b16 %v1368
        %v1501 = vunpack.c.h.b16 %v1368
        %v1502 = vunpack.c.l.b16 %v1369
        %v1503 = vunpack.c.h.b16 %v1369
        %v1504 = vunpack.c.l.b16 %v1370
        %v1505 = vunpack.c.h.b16 %v1370
        %v1506 = vunpack.c.l.b16 %v1371
        %v1507 = vunpack.c.h.b16 %v1371
        %v1508 = vunpack.c.l.b16 %v1372
        %v1509 = vunpack.c.h.b16 %v1372
        %v1510 = vunpack.c.l.b16 %v1373
        %v1511 = vunpack.c.h.b16 %v1373
        %v1512 = vunpack.c.l.b16 %v1374
        %v1513 = vunpack.c.h.b16 %v1374
        %v1514 = vunpack.c.l.b16 %v1375
        %v1515 = vunpack.c.h.b16 %v1375
        %v1516 = vunpack.c.l.b16 %v1376
        %v1517 = vunpack.c.h.b16 %v1376
        %v1518 = vunpack.c.l.b16 %v1377
        %v1519 = vunpack.c.h.b16 %v1377
        %v1520 = vunpack.c.l.b16 %v1378
        %v1521 = vunpack.c.h.b16 %v1378
        %v1522 = vunpack.c.l.b16 %v1379
        %v1523 = vunpack.c.h.b16 %v1379
        %v1524 = vunpack.c.l.b16 %v1380
        %v1525 = vunpack.c.h.b16 %v1380
        %v1526 = vpack.c.b16 %v1432, %v1430
        %v1527 = vpack.c.b16 %v1433, %v1431
        %v1528 = vpack.c.b16 %v1436, %v1434
        %v1529 = vpack.c.b16 %v1437, %v1435
        %v1530 = vpack.c.b16 %v1440, %v1438
        %v1531 = vpack.c.b16 %v1441, %v1439
        %v1532 = vpack.c.b16 %v1444, %v1442
        %v1533 = vpack.c.b16 %v1445, %v1443
        %v1534 = vpack.c.b16 %v1448, %v1446
        %v1535 = vpack.c.b16 %v1449, %v1447
        %v1536 = vpack.c.b16 %v1452, %v1450
        %v1537 = vpack.c.b16 %v1453, %v1451
        %v1538 = vpack.c.b16 %v1456, %v1454
        %v1539 = vpack.c.b16 %v1457, %v1455
        %v1540 = vpack.c.b16 %v1460, %v1458
        %v1541 = vpack.c.b16 %v1461, %v1459
        %v1542 = vpack.c.b16 %v1464, %v1462
        %v1543 = vpack.c.b16 %v1465, %v1463
        %v1544 = vpack.c.b16 %v1468, %v1466
        %v1545 = vpack.c.b16 %v1469, %v1467
        %v1546 = vpack.c.b16 %v1472, %v1470
        %v1547 = vpack.c.b16 %v1473, %v1471
        %v1548 = vpack.c.b16 %v1476, %v1474
        %v1549 = vpack.c.b16 %v1477, %v1475
        %v1550 = vpack.c.b16 %v1480, %v1478
        %v1551 = vpack.c.b16 %v1481, %v1479
        %v1552 = vpack.c.b16 %v1484, %v1482
        %v1553 = vpack.c.b16 %v1485, %v1483
        %v1554 = vpack.c.b16 %v1488, %v1486
        %v1555 = vpack.c.b16 %v1489, %v1487
        %v1556 = vpack.c.b16 %v1492, %v1490
        %v1557 = vpack.c.b16 %v1493, %v1491
        %v1558 = vpack.c.b16 %v1496, %v1494
        %v1559 = vpack.c.b16 %v1497, %v1495
        %v1560 = vpack.c.b16 %v1500, %v1498
        %v1561 = vpack.c.b16 %v1501, %v1499
        %v1562 = vpack.c.b16 %v1504, %v1502
        %v1563 = vpack.c.b16 %v1505, %v1503
        %v1564 = vpack.c.b16 %v1508, %v1506
        %v1565 = vpack.c.b16 %v1509, %v1507
        %v1566 = vpack.c.b16 %v1512, %v1510
        %v1567 = vpack.c.b16 %v1513, %v1511
        %v1568 = vpack.c.b16 %v1516, %v1514
        %v1569 = vpack.c.b16 %v1517, %v1515
        %v1570 = vpack.c.b16 %v1520, %v1518
        %v1571 = vpack.c.b16 %v1521, %v1519
        %v1572 = vpack.c.b16 %v1524, %v1522
        %v1573 = vpack.c.b16 %v1525, %v1523
        %v1623 = vlaneseq
        %v1624 = vshrl.u32 %v1623, 7
        %v1625 = vsub.s32 0, %v1624
        %v1626 = vrot.slane %v1381, %v1625
        %v1627 = vlaneseq
        %v1628 = vshrl.u32 %v1627, 7
        %v1629 = vsub.s32 1, %v1628
        %v1630 = vrot.slane %v1381, %v1629
        %1633 = vmatprep.subr.bf16.mxu0 %v1541
        %1634 = vmatpush1.bf16.msra.mxu0 %v1540
        %1635 = vmatprep.subr.bf16.mxu0 %v1539
        %1636 = vmatpush1.bf16.msra.mxu0 %v1538
        %1637 = vmatprep.subr.bf16.mxu0 %v1537
        %1638 = vmatpush1.bf16.msra.mxu0 %v1536
        %1639 = vmatprep.subr.bf16.mxu0 %v1535
        %1640 = vmatpush1.bf16.msra.mxu0 %v1534
        %1641 = vmatprep.subr.bf16.mxu0 %v1533
        %1642 = vmatpush1.bf16.msra.mxu0 %v1532
        %1643 = vmatprep.subr.bf16.mxu0 %v1531
        %1644 = vmatpush1.bf16.msra.mxu0 %v1530
        %1645 = vmatprep.subr.bf16.mxu0 %v1529
        %1646 = vmatpush1.bf16.msra.mxu0 %v1528
        %1647 = vmatprep.subr.bf16.mxu0 %v1527
        %1648 = vmatpush1.bf16.msra.mxu0 %v1526
        %1649 = vmatprep.subr.bf16.mxu0 %v1557
        %1650 = vmatpush2.bf16.msra.mxu0 %v1556
        %1651 = vmatprep.subr.bf16.mxu0 %v1555
        %1652 = vmatpush2.bf16.msra.mxu0 %v1554
        %1653 = vmatprep.subr.bf16.mxu0 %v1553
        %1654 = vmatpush2.bf16.msra.mxu0 %v1552
        %1655 = vmatprep.subr.bf16.mxu0 %v1551
        %1656 = vmatpush2.bf16.msra.mxu0 %v1550
        %1657 = vmatprep.subr.bf16.mxu0 %v1549
        %1658 = vmatpush2.bf16.msra.mxu0 %v1548
        %1659 = vmatprep.subr.bf16.mxu0 %v1547
        %1660 = vmatpush2.bf16.msra.mxu0 %v1546
        %1661 = vmatprep.subr.bf16.mxu0 %v1545
        %1662 = vmatpush2.bf16.msra.mxu0 %v1544
        %1663 = vmatprep.subr.bf16.mxu0 %v1543
        %1664 = vmatpush2.bf16.msra.mxu0 %v1542
        %1665 = vmatprep.mubr.bf16.mxu0 %v1331
        %1666 = vmatmul.mubr.bf16.gmra.mxu0 %v1330
        %v1667 = vpop.f32.mrf.mxu0
        %v1668 = vadd.f32 %v1626, %v1667
        %v1669 = vpop.f32.mrf.mxu0
        %v1670 = vadd.f32 %v1630, %v1669
        %v1671 = vpop.f32.mrf.mxu0
        %v1672 = vpop.f32.mrf.mxu0
        %1673 = vdwg.mxu0
        %1674 = vmatprep.subr.bf16.mxu0 %v1573
        %1675 = vmatpush1.bf16.msra.mxu0 %v1572
        %1676 = vmatprep.subr.bf16.mxu0 %v1571
        %1677 = vmatpush1.bf16.msra.mxu0 %v1570
        %1678 = vmatprep.subr.bf16.mxu0 %v1569
        %1679 = vmatpush1.bf16.msra.mxu0 %v1568
        %1680 = vmatprep.subr.bf16.mxu0 %v1567
        %1681 = vmatpush1.bf16.msra.mxu0 %v1566
        %1682 = vmatprep.subr.bf16.mxu0 %v1565
        %1683 = vmatpush1.bf16.msra.mxu0 %v1564
        %1684 = vmatprep.subr.bf16.mxu0 %v1563
        %1685 = vmatpush1.bf16.msra.mxu0 %v1562
        %1686 = vmatprep.subr.bf16.mxu0 %v1561
        %1687 = vmatpush1.bf16.msra.mxu0 %v1560
        %1688 = vmatprep.subr.bf16.mxu0 %v1559
        %1689 = vmatpush1.bf16.msra.mxu0 %v1558
        %1690 = vmatprep.subr.bf16.mxu0 0
        %1691 = vmatpush2.bf16.msra.mxu0 0
        %1692 = vmatprep.subr.bf16.mxu0 0
        %1693 = vmatpush2.bf16.msra.mxu0 0
        %1694 = vmatprep.subr.bf16.mxu0 0
        %1695 = vmatpush2.bf16.msra.mxu0 0
        %1696 = vmatprep.subr.bf16.mxu0 0
        %1697 = vmatpush2.bf16.msra.mxu0 0
        %1698 = vmatprep.subr.bf16.mxu0 0
        %1699 = vmatpush2.bf16.msra.mxu0 0
        %1700 = vmatprep.subr.bf16.mxu0 0
        %1701 = vmatpush2.bf16.msra.mxu0 0
        %1702 = vmatprep.subr.bf16.mxu0 0
        %1703 = vmatpush2.bf16.msra.mxu0 0
        %1704 = vmatprep.subr.bf16.mxu0 0
        %1705 = vmatpush2.bf16.msra.mxu0 0
        %1706 = vmatprep.mubr.bf16.mxu0 0
        %1707 = vmatmul.mubr.bf16.gmra.mxu0 %v1332
        %v1708 = vpop.f32.mrf.mxu0
        %v1709 = vadd.f32 %v1668, %v1708
        %v1710 = vpop.f32.mrf.mxu0
        %v1711 = vadd.f32 %v1670, %v1710
        %v1712 = vpop.f32.mrf.mxu0
        %v1713 = vpop.f32.mrf.mxu0
        %1714 = vdwg.mxu0
        %v1715 = vmax.f32 %v1709, 0.0
        %v1716 = vmax.f32 %v1711, 0.0
        %v1717 = vpack.c.bf16 %v1715, %v1715
        %v1718 = vpack.c.bf16 %v1716, %v1716
        %v1719 = vld [vmem:[#allocation19] sm:$0xff]
        %v1720 = vld [vmem:[#allocation19 + $0x8] sm:$0xff]
        %v1721 = vld [vmem:[#allocation19 + $0x10] sm:$0xff]
        %v1722 = vld [vmem:[#allocation19 + $0x18] sm:$0xff]
        %v1723 = vld [vmem:[#allocation19 + $0x20] sm:$0xff]
        %v1724 = vld [vmem:[#allocation19 + $0x28] sm:$0xff]
        %v1725 = vld [vmem:[#allocation19 + $0x30] sm:$0xff]
        %v1726 = vld [vmem:[#allocation19 + $0x38] sm:$0xff]
        %v1727 = vld [vmem:[#allocation19 + $0x40] sm:$0xff]
        %v1728 = vld [vmem:[#allocation19 + $0x48] sm:$0xff]
        %v1729 = vld [vmem:[#allocation19 + $0x50] sm:$0xff]
        %v1730 = vld [vmem:[#allocation19 + $0x58] sm:$0xff]
        %v1731 = vld [vmem:[#allocation19 + $0x60] sm:$0xff]
        %v1732 = vld [vmem:[#allocation19 + $0x68] sm:$0xff]
        %v1733 = vld [vmem:[#allocation19 + $0x70] sm:$0xff]
        %v1734 = vld [vmem:[#allocation19 + $0x78] sm:$0xff]
        %v1735 = vld [vmem:[#allocation19 + $0x80] sm:$0xff]
        %v1736 = vld [vmem:[#allocation19 + $0x88] sm:$0xff]
        %v1737 = vld [vmem:[#allocation19 + $0x90] sm:$0xff]
        %v1738 = vld [vmem:[#allocation19 + $0x98] sm:$0xff]
        %v1739 = vld [vmem:[#allocation19 + $0xa0] sm:$0xff]
        %v1740 = vld [vmem:[#allocation19 + $0xa8] sm:$0xff]
        %v1741 = vld [vmem:[#allocation19 + $0xb0] sm:$0xff]
        %v1742 = vld [vmem:[#allocation19 + $0xb8] sm:$0xff]
        %v1743 = vld [vmem:[#allocation19 + $0xc0] sm:$0xff]
        %v1744 = vld [vmem:[#allocation19 + $0xc8] sm:$0xff]
        %v1745 = vld [vmem:[#allocation19 + $0xd0] sm:$0xff]
        %v1746 = vld [vmem:[#allocation19 + $0xd8] sm:$0xff]
        %v1747 = vld [vmem:[#allocation19 + $0xe0] sm:$0xff]
        %v1748 = vld [vmem:[#allocation19 + $0xe8] sm:$0xff]
        %v1749 = vld [vmem:[#allocation19 + $0xf0] sm:$0xff]
        %v1750 = vld [vmem:[#allocation19 + $0xf8] sm:$0xff]
        %v1751 = vld [vmem:[#allocation19 + $0x100] sm:$0xff]
        %v1752 = vld [vmem:[#allocation19 + $0x108] sm:$0xff]
        %v1753 = vld [vmem:[#allocation19 + $0x110] sm:$0xff]
        %v1754 = vld [vmem:[#allocation19 + $0x118] sm:$0xff]
        %v1755 = vld [vmem:[#allocation19 + $0x120] sm:$0xff]
        %v1756 = vld [vmem:[#allocation19 + $0x128] sm:$0xff]
        %v1757 = vld [vmem:[#allocation19 + $0x130] sm:$0xff]
        %v1758 = vld [vmem:[#allocation19 + $0x138] sm:$0xff]
        %v1759 = vld [vmem:[#allocation19 + $0x140] sm:$0xff]
        %v1760 = vld [vmem:[#allocation19 + $0x148] sm:$0xff]
        %v1761 = vld [vmem:[#allocation19 + $0x150] sm:$0xff]
        %v1762 = vld [vmem:[#allocation19 + $0x158] sm:$0xff]
        %v1763 = vld [vmem:[#allocation19 + $0x160] sm:$0xff]
        %v1764 = vld [vmem:[#allocation19 + $0x168] sm:$0xff]
        %v1765 = vld [vmem:[#allocation19 + $0x170] sm:$0xff]
        %v1766 = vld [vmem:[#allocation19 + $0x178] sm:$0xff]
        %v1767 = vld [vmem:[#allocation19 + $0x180] sm:$0xff]
        %v1768 = vld [vmem:[#allocation19 + $0x188] sm:$0xff]
        %v1769 = vld [vmem:[#allocation19 + $0x190] sm:$0xff]
        %v1770 = vld [vmem:[#allocation19 + $0x198] sm:$0xff]
        %v1771 = vld [vmem:[#allocation19 + $0x1a0] sm:$0xff]
        %v1772 = vld [vmem:[#allocation19 + $0x1a8] sm:$0xff]
        %v1773 = vld [vmem:[#allocation19 + $0x1b0] sm:$0xff]
        %v1774 = vld [vmem:[#allocation19 + $0x1b8] sm:$0xff]
        %v1775 = vld [vmem:[#allocation19 + $0x1c0] sm:$0xff]
        %v1776 = vld [vmem:[#allocation19 + $0x1c8] sm:$0xff]
        %v1777 = vld [vmem:[#allocation19 + $0x1d0] sm:$0xff]
        %v1778 = vld [vmem:[#allocation19 + $0x1d8] sm:$0xff]
        %v1779 = vld [vmem:[#allocation19 + $0x1e0] sm:$0xff]
        %v1780 = vld [vmem:[#allocation19 + $0x1e8] sm:$0xff]
        %v1781 = vld [vmem:[#allocation19 + $0x1f0] sm:$0xff]
        %v1782 = vld [vmem:[#allocation19 + $0x1f8] sm:$0xff]
        %v1783 = vld [vmem:[#allocation19 + $0x200] sm:$0xff]
        %v1784 = vld [vmem:[#allocation19 + $0x208] sm:$0xff]
        %v1785 = vld [vmem:[#allocation19 + $0x210] sm:$0xff]
        %v1786 = vld [vmem:[#allocation19 + $0x218] sm:$0xff]
        %v1787 = vld [vmem:[#allocation19 + $0x220] sm:$0xff]
        %v1788 = vld [vmem:[#allocation19 + $0x228] sm:$0xff]
        %v1789 = vld [vmem:[#allocation19 + $0x230] sm:$0xff]
        %v1790 = vld [vmem:[#allocation19 + $0x238] sm:$0xff]
        %v1791 = vld [vmem:[#allocation19 + $0x240] sm:$0xff]
        %v1792 = vld [vmem:[#allocation19 + $0x248] sm:$0xff]
        %v1793 = vld [vmem:[#allocation19 + $0x250] sm:$0xff]
        %v1794 = vld [vmem:[#allocation19 + $0x258] sm:$0xff]
        %v1795 = vld [vmem:[#allocation19 + $0x260] sm:$0xff]
        %v1796 = vld [vmem:[#allocation19 + $0x268] sm:$0xff]
        %v1797 = vld [vmem:[#allocation19 + $0x270] sm:$0xff]
        %v1798 = vld [vmem:[#allocation19 + $0x278] sm:$0xff]
        %v1799 = vld [vmem:[#allocation19 + $0x280] sm:$0xff]
        %v1800 = vld [vmem:[#allocation19 + $0x288] sm:$0xff]
        %v1801 = vld [vmem:[#allocation19 + $0x290] sm:$0xff]
        %v1802 = vld [vmem:[#allocation19 + $0x298] sm:$0xff]
        %v1803 = vld [vmem:[#allocation19 + $0x2a0] sm:$0xff]
        %v1804 = vld [vmem:[#allocation19 + $0x2a8] sm:$0xff]
        %v1805 = vld [vmem:[#allocation19 + $0x2b0] sm:$0xff]
        %v1806 = vld [vmem:[#allocation19 + $0x2b8] sm:$0xff]
        %v1807 = vld [vmem:[#allocation19 + $0x2c0] sm:$0xff]
        %v1808 = vld [vmem:[#allocation19 + $0x2c8] sm:$0xff]
        %v1809 = vld [vmem:[#allocation19 + $0x2d0] sm:$0xff]
        %v1810 = vld [vmem:[#allocation19 + $0x2d8] sm:$0xff]
        %v1811 = vld [vmem:[#allocation19 + $0x2e0] sm:$0xff]
        %v1812 = vld [vmem:[#allocation19 + $0x2e8] sm:$0xff]
        %v1813 = vld [vmem:[#allocation19 + $0x2f0] sm:$0xff]
        %v1814 = vld [vmem:[#allocation19 + $0x2f8] sm:$0xff]
        %v1815 = vld [vmem:[#allocation19 + $0x300] sm:$0xff]
        %v1816 = vld [vmem:[#allocation19 + $0x308] sm:$0xff]
        %v1817 = vld [vmem:[#allocation19 + $0x310] sm:$0xff]
        %v1818 = vld [vmem:[#allocation19 + $0x318] sm:$0xff]
        %v1819 = vld [vmem:[#allocation19 + $0x320] sm:$0xff]
        %v1820 = vld [vmem:[#allocation19 + $0x328] sm:$0xff]
        %v1821 = vld [vmem:[#allocation19 + $0x330] sm:$0xff]
        %v1822 = vld [vmem:[#allocation19 + $0x338] sm:$0xff]
        %v1823 = vld [vmem:[#allocation19 + $0x340] sm:$0xff]
        %v1824 = vld [vmem:[#allocation19 + $0x348] sm:$0xff]
        %v1825 = vld [vmem:[#allocation19 + $0x350] sm:$0xff]
        %v1826 = vld [vmem:[#allocation19 + $0x358] sm:$0xff]
        %v1827 = vld [vmem:[#allocation19 + $0x360] sm:$0xff]
        %v1828 = vld [vmem:[#allocation19 + $0x368] sm:$0xff]
        %v1829 = vld [vmem:[#allocation19 + $0x370] sm:$0xff]
        %v1830 = vld [vmem:[#allocation19 + $0x378] sm:$0xff]
        %v1831 = vld [vmem:[#allocation19 + $0x380] sm:$0xff]
        %v1832 = vld [vmem:[#allocation19 + $0x388] sm:$0xff]
        %v1833 = vld [vmem:[#allocation19 + $0x390] sm:$0xff]
        %v1834 = vld [vmem:[#allocation19 + $0x398] sm:$0xff]
        %v1835 = vld [vmem:[#allocation19 + $0x3a0] sm:$0xff]
        %v1836 = vld [vmem:[#allocation19 + $0x3a8] sm:$0xff]
        %v1837 = vld [vmem:[#allocation19 + $0x3b0] sm:$0xff]
        %v1838 = vld [vmem:[#allocation19 + $0x3b8] sm:$0xff]
        %v1839 = vld [vmem:[#allocation19 + $0x3c0] sm:$0xff]
        %v1840 = vld [vmem:[#allocation19 + $0x3c8] sm:$0xff]
        %v1841 = vld [vmem:[#allocation19 + $0x3d0] sm:$0xff]
        %v1842 = vld [vmem:[#allocation19 + $0x3d8] sm:$0xff]
        %v1843 = vld [vmem:[#allocation19 + $0x3e0] sm:$0xff]
        %v1844 = vld [vmem:[#allocation19 + $0x3e8] sm:$0xff]
        %v1845 = vld [vmem:[#allocation19 + $0x3f0] sm:$0xff]
        %v1846 = vld [vmem:[#allocation19 + $0x3f8] sm:$0xff]
        %v1847 = vld [vmem:[#allocation19 + $0x400] sm:$0xff]
        %v1848 = vld [vmem:[#allocation19 + $0x408] sm:$0xff]
        %v1849 = vld [vmem:[#allocation19 + $0x410] sm:$0xff]
        %v1850 = vld [vmem:[#allocation19 + $0x418] sm:$0xff]
        %v1851 = vld [vmem:[#allocation19 + $0x420] sm:$0xff]
        %v1852 = vld [vmem:[#allocation19 + $0x428] sm:$0xff]
        %v1853 = vld [vmem:[#allocation19 + $0x430] sm:$0xff]
        %v1854 = vld [vmem:[#allocation19 + $0x438] sm:$0xff]
        %v1855 = vld [vmem:[#allocation19 + $0x440] sm:$0xff]
        %v1856 = vld [vmem:[#allocation19 + $0x448] sm:$0xff]
        %v1857 = vld [vmem:[#allocation19 + $0x450] sm:$0xff]
        %v1858 = vld [vmem:[#allocation19 + $0x458] sm:$0xff]
        %v1859 = vld [vmem:[#allocation19 + $0x460] sm:$0xff]
        %v1860 = vld [vmem:[#allocation19 + $0x468] sm:$0xff]
        %v1861 = vld [vmem:[#allocation19 + $0x470] sm:$0xff]
        %v1862 = vld [vmem:[#allocation19 + $0x478] sm:$0xff]
        %v1863 = vld [vmem:[#allocation19 + $0x480] sm:$0xff]
        %v1864 = vld [vmem:[#allocation19 + $0x488] sm:$0xff]
        %v1865 = vld [vmem:[#allocation19 + $0x490] sm:$0xff]
        %v1866 = vld [vmem:[#allocation19 + $0x498] sm:$0xff]
        %v1867 = vld [vmem:[#allocation19 + $0x4a0] sm:$0xff]
        %v1868 = vld [vmem:[#allocation19 + $0x4a8] sm:$0xff]
        %v1869 = vld [vmem:[#allocation19 + $0x4b0] sm:$0xff]
        %v1870 = vld [vmem:[#allocation19 + $0x4b8] sm:$0xff]
        %v1871 = vld [vmem:[#allocation19 + $0x4c0] sm:$0xff]
        %v1872 = vld [vmem:[#allocation19 + $0x4c8] sm:$0xff]
        %v1873 = vld [vmem:[#allocation19 + $0x4d0] sm:$0xff]
        %v1874 = vld [vmem:[#allocation19 + $0x4d8] sm:$0xff]
        %v1875 = vld [vmem:[#allocation19 + $0x4e0] sm:$0xff]
        %v1876 = vld [vmem:[#allocation19 + $0x4e8] sm:$0xff]
        %v1877 = vld [vmem:[#allocation19 + $0x4f0] sm:$0xff]
        %v1878 = vld [vmem:[#allocation19 + $0x4f8] sm:$0xff]
        %v1879 = vld [vmem:[#allocation19 + $0x500] sm:$0xff]
        %v1880 = vld [vmem:[#allocation19 + $0x508] sm:$0xff]
        %v1881 = vld [vmem:[#allocation19 + $0x510] sm:$0xff]
        %v1882 = vld [vmem:[#allocation19 + $0x518] sm:$0xff]
        %v1883 = vld [vmem:[#allocation19 + $0x520] sm:$0xff]
        %v1884 = vld [vmem:[#allocation19 + $0x528] sm:$0xff]
        %v1885 = vld [vmem:[#allocation19 + $0x530] sm:$0xff]
        %v1886 = vld [vmem:[#allocation19 + $0x538] sm:$0xff]
        %v1887 = vld [vmem:[#allocation19 + $0x540] sm:$0xff]
        %v1888 = vld [vmem:[#allocation19 + $0x548] sm:$0xff]
        %v1889 = vld [vmem:[#allocation19 + $0x550] sm:$0xff]
        %v1890 = vld [vmem:[#allocation19 + $0x558] sm:$0xff]
        %v1891 = vld [vmem:[#allocation19 + $0x560] sm:$0xff]
        %v1892 = vld [vmem:[#allocation19 + $0x568] sm:$0xff]
        %v1893 = vld [vmem:[#allocation19 + $0x570] sm:$0xff]
        %v1894 = vld [vmem:[#allocation19 + $0x578] sm:$0xff]
        %v1895 = vld [vmem:[#allocation19 + $0x580] sm:$0xff]
        %v1896 = vld [vmem:[#allocation19 + $0x588] sm:$0xff]
        %v1897 = vld [vmem:[#allocation19 + $0x590] sm:$0xff]
        %v1898 = vld [vmem:[#allocation19 + $0x598] sm:$0xff]
        %v1899 = vld [vmem:[#allocation19 + $0x5a0] sm:$0xff]
        %v1900 = vld [vmem:[#allocation19 + $0x5a8] sm:$0xff]
        %v1901 = vld [vmem:[#allocation19 + $0x5b0] sm:$0xff]
        %v1902 = vld [vmem:[#allocation19 + $0x5b8] sm:$0xff]
        %v1903 = vld [vmem:[#allocation19 + $0x5c0] sm:$0xff]
        %v1904 = vld [vmem:[#allocation19 + $0x5c8] sm:$0xff]
        %v1905 = vld [vmem:[#allocation19 + $0x5d0] sm:$0xff]
        %v1906 = vld [vmem:[#allocation19 + $0x5d8] sm:$0xff]
        %v1907 = vld [vmem:[#allocation19 + $0x5e0] sm:$0xff]
        %v1908 = vld [vmem:[#allocation19 + $0x5e8] sm:$0xff]
        %v1909 = vld [vmem:[#allocation19 + $0x5f0] sm:$0xff]
        %v1910 = vld [vmem:[#allocation19 + $0x5f8] sm:$0xff]
        %v1911 = vld [vmem:[#allocation19 + $0x600] sm:$0xff]
        %v1912 = vld [vmem:[#allocation19 + $0x608] sm:$0xff]
        %v1913 = vld [vmem:[#allocation19 + $0x610] sm:$0xff]
        %v1914 = vld [vmem:[#allocation19 + $0x618] sm:$0xff]
        %v1915 = vld [vmem:[#allocation19 + $0x620] sm:$0xff]
        %v1916 = vld [vmem:[#allocation19 + $0x628] sm:$0xff]
        %v1917 = vld [vmem:[#allocation19 + $0x630] sm:$0xff]
        %v1918 = vld [vmem:[#allocation19 + $0x638] sm:$0xff]
        %v1919 = vld [vmem:[#allocation19 + $0x640] sm:$0xff]
        %v1920 = vld [vmem:[#allocation19 + $0x648] sm:$0xff]
        %v1921 = vld [vmem:[#allocation19 + $0x650] sm:$0xff]
        %v1922 = vld [vmem:[#allocation19 + $0x658] sm:$0xff]
        %v1923 = vld [vmem:[#allocation19 + $0x660] sm:$0xff]
        %v1924 = vld [vmem:[#allocation19 + $0x668] sm:$0xff]
        %v1925 = vld [vmem:[#allocation19 + $0x670] sm:$0xff]
        %v1926 = vld [vmem:[#allocation19 + $0x678] sm:$0xff]
        %v1927 = vld [vmem:[#allocation19 + $0x680] sm:$0xff]
        %v1928 = vld [vmem:[#allocation19 + $0x688] sm:$0xff]
        %v1929 = vld [vmem:[#allocation19 + $0x690] sm:$0xff]
        %v1930 = vld [vmem:[#allocation19 + $0x698] sm:$0xff]
        %v1931 = vld [vmem:[#allocation19 + $0x6a0] sm:$0xff]
        %v1932 = vld [vmem:[#allocation19 + $0x6a8] sm:$0xff]
        %v1933 = vld [vmem:[#allocation19 + $0x6b0] sm:$0xff]
        %v1934 = vld [vmem:[#allocation19 + $0x6b8] sm:$0xff]
        %v1935 = vld [vmem:[#allocation19 + $0x6c0] sm:$0xff]
        %v1936 = vld [vmem:[#allocation19 + $0x6c8] sm:$0xff]
        %v1937 = vld [vmem:[#allocation19 + $0x6d0] sm:$0xff]
        %v1938 = vld [vmem:[#allocation19 + $0x6d8] sm:$0xff]
        %v1939 = vld [vmem:[#allocation19 + $0x6e0] sm:$0xff]
        %v1940 = vld [vmem:[#allocation19 + $0x6e8] sm:$0xff]
        %v1941 = vld [vmem:[#allocation19 + $0x6f0] sm:$0xff]
        %v1942 = vld [vmem:[#allocation19 + $0x6f8] sm:$0xff]
        %v1943 = vld [vmem:[#allocation19 + $0x700] sm:$0xff]
        %v1944 = vld [vmem:[#allocation19 + $0x708] sm:$0xff]
        %v1945 = vld [vmem:[#allocation19 + $0x710] sm:$0xff]
        %v1946 = vld [vmem:[#allocation19 + $0x718] sm:$0xff]
        %v1947 = vld [vmem:[#allocation19 + $0x720] sm:$0xff]
        %v1948 = vld [vmem:[#allocation19 + $0x728] sm:$0xff]
        %v1949 = vld [vmem:[#allocation19 + $0x730] sm:$0xff]
        %v1950 = vld [vmem:[#allocation19 + $0x738] sm:$0xff]
        %v1951 = vld [vmem:[#allocation19 + $0x740] sm:$0xff]
        %v1952 = vld [vmem:[#allocation19 + $0x748] sm:$0xff]
        %v1953 = vld [vmem:[#allocation19 + $0x750] sm:$0xff]
        %v1954 = vld [vmem:[#allocation19 + $0x758] sm:$0xff]
        %v1955 = vld [vmem:[#allocation19 + $0x760] sm:$0xff]
        %v1956 = vld [vmem:[#allocation19 + $0x768] sm:$0xff]
        %v1957 = vld [vmem:[#allocation19 + $0x770] sm:$0xff]
        %v1958 = vld [vmem:[#allocation19 + $0x778] sm:$0xff]
        %v1959 = vld [vmem:[#allocation19 + $0x780] sm:$0xff]
        %v1960 = vld [vmem:[#allocation19 + $0x788] sm:$0xff]
        %v1961 = vld [vmem:[#allocation19 + $0x790] sm:$0xff]
        %v1962 = vld [vmem:[#allocation19 + $0x798] sm:$0xff]
        %v1963 = vld [vmem:[#allocation19 + $0x7a0] sm:$0xff]
        %v1964 = vld [vmem:[#allocation19 + $0x7a8] sm:$0xff]
        %v1965 = vld [vmem:[#allocation19 + $0x7b0] sm:$0xff]
        %v1966 = vld [vmem:[#allocation19 + $0x7b8] sm:$0xff]
        %v1967 = vld [vmem:[#allocation19 + $0x7c0] sm:$0xff]
        %v1968 = vld [vmem:[#allocation19 + $0x7c8] sm:$0xff]
        %v1969 = vld [vmem:[#allocation19 + $0x7d0] sm:$0xff]
        %v1970 = vld [vmem:[#allocation19 + $0x7d8] sm:$0xff]
        %v1971 = vld [vmem:[#allocation19 + $0x7e0] sm:$0xff]
        %v1972 = vld [vmem:[#allocation19 + $0x7e8] sm:$0xff]
        %v1973 = vld [vmem:[#allocation19 + $0x7f0] sm:$0xff]
        %v1974 = vld [vmem:[#allocation19 + $0x7f8] sm:$0xff]
        %v1975 = vld [vmem:[%s13] sm:$0xff]
        %v2232 = vunpack.c.l.b16 %v1719
        %v2233 = vunpack.c.h.b16 %v1719
        %v2234 = vunpack.c.l.b16 %v1720
        %v2235 = vunpack.c.h.b16 %v1720
        %v2236 = vunpack.c.l.b16 %v1721
        %v2237 = vunpack.c.h.b16 %v1721
        %v2238 = vunpack.c.l.b16 %v1722
        %v2239 = vunpack.c.h.b16 %v1722
        %v2240 = vunpack.c.l.b16 %v1723
        %v2241 = vunpack.c.h.b16 %v1723
        %v2242 = vunpack.c.l.b16 %v1724
        %v2243 = vunpack.c.h.b16 %v1724
        %v2244 = vunpack.c.l.b16 %v1725
        %v2245 = vunpack.c.h.b16 %v1725
        %v2246 = vunpack.c.l.b16 %v1726
        %v2247 = vunpack.c.h.b16 %v1726
        %v2248 = vunpack.c.l.b16 %v1727
        %v2249 = vunpack.c.h.b16 %v1727
        %v2250 = vunpack.c.l.b16 %v1728
        %v2251 = vunpack.c.h.b16 %v1728
        %v2252 = vunpack.c.l.b16 %v1729
        %v2253 = vunpack.c.h.b16 %v1729
        %v2254 = vunpack.c.l.b16 %v1730
        %v2255 = vunpack.c.h.b16 %v1730
        %v2256 = vunpack.c.l.b16 %v1731
        %v2257 = vunpack.c.h.b16 %v1731
        %v2258 = vunpack.c.l.b16 %v1732
        %v2259 = vunpack.c.h.b16 %v1732
        %v2260 = vunpack.c.l.b16 %v1733
        %v2261 = vunpack.c.h.b16 %v1733
        %v2262 = vunpack.c.l.b16 %v1734
        %v2263 = vunpack.c.h.b16 %v1734
        %v2264 = vunpack.c.l.b16 %v1735
        %v2265 = vunpack.c.h.b16 %v1735
        %v2266 = vunpack.c.l.b16 %v1736
        %v2267 = vunpack.c.h.b16 %v1736
        %v2268 = vunpack.c.l.b16 %v1737
        %v2269 = vunpack.c.h.b16 %v1737
        %v2270 = vunpack.c.l.b16 %v1738
        %v2271 = vunpack.c.h.b16 %v1738
        %v2272 = vunpack.c.l.b16 %v1739
        %v2273 = vunpack.c.h.b16 %v1739
        %v2274 = vunpack.c.l.b16 %v1740
        %v2275 = vunpack.c.h.b16 %v1740
        %v2276 = vunpack.c.l.b16 %v1741
        %v2277 = vunpack.c.h.b16 %v1741
        %v2278 = vunpack.c.l.b16 %v1742
        %v2279 = vunpack.c.h.b16 %v1742
        %v2280 = vunpack.c.l.b16 %v1743
        %v2281 = vunpack.c.h.b16 %v1743
        %v2282 = vunpack.c.l.b16 %v1744
        %v2283 = vunpack.c.h.b16 %v1744
        %v2284 = vunpack.c.l.b16 %v1745
        %v2285 = vunpack.c.h.b16 %v1745
        %v2286 = vunpack.c.l.b16 %v1746
        %v2287 = vunpack.c.h.b16 %v1746
        %v2288 = vunpack.c.l.b16 %v1747
        %v2289 = vunpack.c.h.b16 %v1747
        %v2290 = vunpack.c.l.b16 %v1748
        %v2291 = vunpack.c.h.b16 %v1748
        %v2292 = vunpack.c.l.b16 %v1749
        %v2293 = vunpack.c.h.b16 %v1749
        %v2294 = vunpack.c.l.b16 %v1750
        %v2295 = vunpack.c.h.b16 %v1750
        %v2296 = vunpack.c.l.b16 %v1751
        %v2297 = vunpack.c.h.b16 %v1751
        %v2298 = vunpack.c.l.b16 %v1752
        %v2299 = vunpack.c.h.b16 %v1752
        %v2300 = vunpack.c.l.b16 %v1753
        %v2301 = vunpack.c.h.b16 %v1753
        %v2302 = vunpack.c.l.b16 %v1754
        %v2303 = vunpack.c.h.b16 %v1754
        %v2304 = vunpack.c.l.b16 %v1755
        %v2305 = vunpack.c.h.b16 %v1755
        %v2306 = vunpack.c.l.b16 %v1756
        %v2307 = vunpack.c.h.b16 %v1756
        %v2308 = vunpack.c.l.b16 %v1757
        %v2309 = vunpack.c.h.b16 %v1757
        %v2310 = vunpack.c.l.b16 %v1758
        %v2311 = vunpack.c.h.b16 %v1758
        %v2312 = vunpack.c.l.b16 %v1759
        %v2313 = vunpack.c.h.b16 %v1759
        %v2314 = vunpack.c.l.b16 %v1760
        %v2315 = vunpack.c.h.b16 %v1760
        %v2316 = vunpack.c.l.b16 %v1761
        %v2317 = vunpack.c.h.b16 %v1761
        %v2318 = vunpack.c.l.b16 %v1762
        %v2319 = vunpack.c.h.b16 %v1762
        %v2320 = vunpack.c.l.b16 %v1763
        %v2321 = vunpack.c.h.b16 %v1763
        %v2322 = vunpack.c.l.b16 %v1764
        %v2323 = vunpack.c.h.b16 %v1764
        %v2324 = vunpack.c.l.b16 %v1765
        %v2325 = vunpack.c.h.b16 %v1765
        %v2326 = vunpack.c.l.b16 %v1766
        %v2327 = vunpack.c.h.b16 %v1766
        %v2328 = vunpack.c.l.b16 %v1767
        %v2329 = vunpack.c.h.b16 %v1767
        %v2330 = vunpack.c.l.b16 %v1768
        %v2331 = vunpack.c.h.b16 %v1768
        %v2332 = vunpack.c.l.b16 %v1769
        %v2333 = vunpack.c.h.b16 %v1769
        %v2334 = vunpack.c.l.b16 %v1770
        %v2335 = vunpack.c.h.b16 %v1770
        %v2336 = vunpack.c.l.b16 %v1771
        %v2337 = vunpack.c.h.b16 %v1771
        %v2338 = vunpack.c.l.b16 %v1772
        %v2339 = vunpack.c.h.b16 %v1772
        %v2340 = vunpack.c.l.b16 %v1773
        %v2341 = vunpack.c.h.b16 %v1773
        %v2342 = vunpack.c.l.b16 %v1774
        %v2343 = vunpack.c.h.b16 %v1774
        %v2344 = vunpack.c.l.b16 %v1775
        %v2345 = vunpack.c.h.b16 %v1775
        %v2346 = vunpack.c.l.b16 %v1776
        %v2347 = vunpack.c.h.b16 %v1776
        %v2348 = vunpack.c.l.b16 %v1777
        %v2349 = vunpack.c.h.b16 %v1777
        %v2350 = vunpack.c.l.b16 %v1778
        %v2351 = vunpack.c.h.b16 %v1778
        %v2352 = vunpack.c.l.b16 %v1779
        %v2353 = vunpack.c.h.b16 %v1779
        %v2354 = vunpack.c.l.b16 %v1780
        %v2355 = vunpack.c.h.b16 %v1780
        %v2356 = vunpack.c.l.b16 %v1781
        %v2357 = vunpack.c.h.b16 %v1781
        %v2358 = vunpack.c.l.b16 %v1782
        %v2359 = vunpack.c.h.b16 %v1782
        %v2360 = vunpack.c.l.b16 %v1783
        %v2361 = vunpack.c.h.b16 %v1783
        %v2362 = vunpack.c.l.b16 %v1784
        %v2363 = vunpack.c.h.b16 %v1784
        %v2364 = vunpack.c.l.b16 %v1785
        %v2365 = vunpack.c.h.b16 %v1785
        %v2366 = vunpack.c.l.b16 %v1786
        %v2367 = vunpack.c.h.b16 %v1786
        %v2368 = vunpack.c.l.b16 %v1787
        %v2369 = vunpack.c.h.b16 %v1787
        %v2370 = vunpack.c.l.b16 %v1788
        %v2371 = vunpack.c.h.b16 %v1788
        %v2372 = vunpack.c.l.b16 %v1789
        %v2373 = vunpack.c.h.b16 %v1789
        %v2374 = vunpack.c.l.b16 %v1790
        %v2375 = vunpack.c.h.b16 %v1790
        %v2376 = vunpack.c.l.b16 %v1791
        %v2377 = vunpack.c.h.b16 %v1791
        %v2378 = vunpack.c.l.b16 %v1792
        %v2379 = vunpack.c.h.b16 %v1792
        %v2380 = vunpack.c.l.b16 %v1793
        %v2381 = vunpack.c.h.b16 %v1793
        %v2382 = vunpack.c.l.b16 %v1794
        %v2383 = vunpack.c.h.b16 %v1794
        %v2384 = vunpack.c.l.b16 %v1795
        %v2385 = vunpack.c.h.b16 %v1795
        %v2386 = vunpack.c.l.b16 %v1796
        %v2387 = vunpack.c.h.b16 %v1796
        %v2388 = vunpack.c.l.b16 %v1797
        %v2389 = vunpack.c.h.b16 %v1797
        %v2390 = vunpack.c.l.b16 %v1798
        %v2391 = vunpack.c.h.b16 %v1798
        %v2392 = vunpack.c.l.b16 %v1799
        %v2393 = vunpack.c.h.b16 %v1799
        %v2394 = vunpack.c.l.b16 %v1800
        %v2395 = vunpack.c.h.b16 %v1800
        %v2396 = vunpack.c.l.b16 %v1801
        %v2397 = vunpack.c.h.b16 %v1801
        %v2398 = vunpack.c.l.b16 %v1802
        %v2399 = vunpack.c.h.b16 %v1802
        %v2400 = vunpack.c.l.b16 %v1803
        %v2401 = vunpack.c.h.b16 %v1803
        %v2402 = vunpack.c.l.b16 %v1804
        %v2403 = vunpack.c.h.b16 %v1804
        %v2404 = vunpack.c.l.b16 %v1805
        %v2405 = vunpack.c.h.b16 %v1805
        %v2406 = vunpack.c.l.b16 %v1806
        %v2407 = vunpack.c.h.b16 %v1806
        %v2408 = vunpack.c.l.b16 %v1807
        %v2409 = vunpack.c.h.b16 %v1807
        %v2410 = vunpack.c.l.b16 %v1808
        %v2411 = vunpack.c.h.b16 %v1808
        %v2412 = vunpack.c.l.b16 %v1809
        %v2413 = vunpack.c.h.b16 %v1809
        %v2414 = vunpack.c.l.b16 %v1810
        %v2415 = vunpack.c.h.b16 %v1810
        %v2416 = vunpack.c.l.b16 %v1811
        %v2417 = vunpack.c.h.b16 %v1811
        %v2418 = vunpack.c.l.b16 %v1812
        %v2419 = vunpack.c.h.b16 %v1812
        %v2420 = vunpack.c.l.b16 %v1813
        %v2421 = vunpack.c.h.b16 %v1813
        %v2422 = vunpack.c.l.b16 %v1814
        %v2423 = vunpack.c.h.b16 %v1814
        %v2424 = vunpack.c.l.b16 %v1815
        %v2425 = vunpack.c.h.b16 %v1815
        %v2426 = vunpack.c.l.b16 %v1816
        %v2427 = vunpack.c.h.b16 %v1816
        %v2428 = vunpack.c.l.b16 %v1817
        %v2429 = vunpack.c.h.b16 %v1817
        %v2430 = vunpack.c.l.b16 %v1818
        %v2431 = vunpack.c.h.b16 %v1818
        %v2432 = vunpack.c.l.b16 %v1819
        %v2433 = vunpack.c.h.b16 %v1819
        %v2434 = vunpack.c.l.b16 %v1820
        %v2435 = vunpack.c.h.b16 %v1820
        %v2436 = vunpack.c.l.b16 %v1821
        %v2437 = vunpack.c.h.b16 %v1821
        %v2438 = vunpack.c.l.b16 %v1822
        %v2439 = vunpack.c.h.b16 %v1822
        %v2440 = vunpack.c.l.b16 %v1823
        %v2441 = vunpack.c.h.b16 %v1823
        %v2442 = vunpack.c.l.b16 %v1824
        %v2443 = vunpack.c.h.b16 %v1824
        %v2444 = vunpack.c.l.b16 %v1825
        %v2445 = vunpack.c.h.b16 %v1825
        %v2446 = vunpack.c.l.b16 %v1826
        %v2447 = vunpack.c.h.b16 %v1826
        %v2448 = vunpack.c.l.b16 %v1827
        %v2449 = vunpack.c.h.b16 %v1827
        %v2450 = vunpack.c.l.b16 %v1828
        %v2451 = vunpack.c.h.b16 %v1828
        %v2452 = vunpack.c.l.b16 %v1829
        %v2453 = vunpack.c.h.b16 %v1829
        %v2454 = vunpack.c.l.b16 %v1830
        %v2455 = vunpack.c.h.b16 %v1830
        %v2456 = vunpack.c.l.b16 %v1831
        %v2457 = vunpack.c.h.b16 %v1831
        %v2458 = vunpack.c.l.b16 %v1832
        %v2459 = vunpack.c.h.b16 %v1832
        %v2460 = vunpack.c.l.b16 %v1833
        %v2461 = vunpack.c.h.b16 %v1833
        %v2462 = vunpack.c.l.b16 %v1834
        %v2463 = vunpack.c.h.b16 %v1834
        %v2464 = vunpack.c.l.b16 %v1835
        %v2465 = vunpack.c.h.b16 %v1835
        %v2466 = vunpack.c.l.b16 %v1836
        %v2467 = vunpack.c.h.b16 %v1836
        %v2468 = vunpack.c.l.b16 %v1837
        %v2469 = vunpack.c.h.b16 %v1837
        %v2470 = vunpack.c.l.b16 %v1838
        %v2471 = vunpack.c.h.b16 %v1838
        %v2472 = vunpack.c.l.b16 %v1839
        %v2473 = vunpack.c.h.b16 %v1839
        %v2474 = vunpack.c.l.b16 %v1840
        %v2475 = vunpack.c.h.b16 %v1840
        %v2476 = vunpack.c.l.b16 %v1841
        %v2477 = vunpack.c.h.b16 %v1841
        %v2478 = vunpack.c.l.b16 %v1842
        %v2479 = vunpack.c.h.b16 %v1842
        %v2480 = vunpack.c.l.b16 %v1843
        %v2481 = vunpack.c.h.b16 %v1843
        %v2482 = vunpack.c.l.b16 %v1844
        %v2483 = vunpack.c.h.b16 %v1844
        %v2484 = vunpack.c.l.b16 %v1845
        %v2485 = vunpack.c.h.b16 %v1845
        %v2486 = vunpack.c.l.b16 %v1846
        %v2487 = vunpack.c.h.b16 %v1846
        %v2488 = vunpack.c.l.b16 %v1847
        %v2489 = vunpack.c.h.b16 %v1847
        %v2490 = vunpack.c.l.b16 %v1848
        %v2491 = vunpack.c.h.b16 %v1848
        %v2492 = vunpack.c.l.b16 %v1849
        %v2493 = vunpack.c.h.b16 %v1849
        %v2494 = vunpack.c.l.b16 %v1850
        %v2495 = vunpack.c.h.b16 %v1850
        %v2496 = vunpack.c.l.b16 %v1851
        %v2497 = vunpack.c.h.b16 %v1851
        %v2498 = vunpack.c.l.b16 %v1852
        %v2499 = vunpack.c.h.b16 %v1852
        %v2500 = vunpack.c.l.b16 %v1853
        %v2501 = vunpack.c.h.b16 %v1853
        %v2502 = vunpack.c.l.b16 %v1854
        %v2503 = vunpack.c.h.b16 %v1854
        %v2504 = vunpack.c.l.b16 %v1855
        %v2505 = vunpack.c.h.b16 %v1855
        %v2506 = vunpack.c.l.b16 %v1856
        %v2507 = vunpack.c.h.b16 %v1856
        %v2508 = vunpack.c.l.b16 %v1857
        %v2509 = vunpack.c.h.b16 %v1857
        %v2510 = vunpack.c.l.b16 %v1858
        %v2511 = vunpack.c.h.b16 %v1858
        %v2512 = vunpack.c.l.b16 %v1859
        %v2513 = vunpack.c.h.b16 %v1859
        %v2514 = vunpack.c.l.b16 %v1860
        %v2515 = vunpack.c.h.b16 %v1860
        %v2516 = vunpack.c.l.b16 %v1861
        %v2517 = vunpack.c.h.b16 %v1861
        %v2518 = vunpack.c.l.b16 %v1862
        %v2519 = vunpack.c.h.b16 %v1862
        %v2520 = vunpack.c.l.b16 %v1863
        %v2521 = vunpack.c.h.b16 %v1863
        %v2522 = vunpack.c.l.b16 %v1864
        %v2523 = vunpack.c.h.b16 %v1864
        %v2524 = vunpack.c.l.b16 %v1865
        %v2525 = vunpack.c.h.b16 %v1865
        %v2526 = vunpack.c.l.b16 %v1866
        %v2527 = vunpack.c.h.b16 %v1866
        %v2528 = vunpack.c.l.b16 %v1867
        %v2529 = vunpack.c.h.b16 %v1867
        %v2530 = vunpack.c.l.b16 %v1868
        %v2531 = vunpack.c.h.b16 %v1868
        %v2532 = vunpack.c.l.b16 %v1869
        %v2533 = vunpack.c.h.b16 %v1869
        %v2534 = vunpack.c.l.b16 %v1870
        %v2535 = vunpack.c.h.b16 %v1870
        %v2536 = vunpack.c.l.b16 %v1871
        %v2537 = vunpack.c.h.b16 %v1871
        %v2538 = vunpack.c.l.b16 %v1872
        %v2539 = vunpack.c.h.b16 %v1872
        %v2540 = vunpack.c.l.b16 %v1873
        %v2541 = vunpack.c.h.b16 %v1873
        %v2542 = vunpack.c.l.b16 %v1874
        %v2543 = vunpack.c.h.b16 %v1874
        %v2544 = vunpack.c.l.b16 %v1875
        %v2545 = vunpack.c.h.b16 %v1875
        %v2546 = vunpack.c.l.b16 %v1876
        %v2547 = vunpack.c.h.b16 %v1876
        %v2548 = vunpack.c.l.b16 %v1877
        %v2549 = vunpack.c.h.b16 %v1877
        %v2550 = vunpack.c.l.b16 %v1878
        %v2551 = vunpack.c.h.b16 %v1878
        %v2552 = vunpack.c.l.b16 %v1879
        %v2553 = vunpack.c.h.b16 %v1879
        %v2554 = vunpack.c.l.b16 %v1880
        %v2555 = vunpack.c.h.b16 %v1880
        %v2556 = vunpack.c.l.b16 %v1881
        %v2557 = vunpack.c.h.b16 %v1881
        %v2558 = vunpack.c.l.b16 %v1882
        %v2559 = vunpack.c.h.b16 %v1882
        %v2560 = vunpack.c.l.b16 %v1883
        %v2561 = vunpack.c.h.b16 %v1883
        %v2562 = vunpack.c.l.b16 %v1884
        %v2563 = vunpack.c.h.b16 %v1884
        %v2564 = vunpack.c.l.b16 %v1885
        %v2565 = vunpack.c.h.b16 %v1885
        %v2566 = vunpack.c.l.b16 %v1886
        %v2567 = vunpack.c.h.b16 %v1886
        %v2568 = vunpack.c.l.b16 %v1887
        %v2569 = vunpack.c.h.b16 %v1887
        %v2570 = vunpack.c.l.b16 %v1888
        %v2571 = vunpack.c.h.b16 %v1888
        %v2572 = vunpack.c.l.b16 %v1889
        %v2573 = vunpack.c.h.b16 %v1889
        %v2574 = vunpack.c.l.b16 %v1890
        %v2575 = vunpack.c.h.b16 %v1890
        %v2576 = vunpack.c.l.b16 %v1891
        %v2577 = vunpack.c.h.b16 %v1891
        %v2578 = vunpack.c.l.b16 %v1892
        %v2579 = vunpack.c.h.b16 %v1892
        %v2580 = vunpack.c.l.b16 %v1893
        %v2581 = vunpack.c.h.b16 %v1893
        %v2582 = vunpack.c.l.b16 %v1894
        %v2583 = vunpack.c.h.b16 %v1894
        %v2584 = vunpack.c.l.b16 %v1895
        %v2585 = vunpack.c.h.b16 %v1895
        %v2586 = vunpack.c.l.b16 %v1896
        %v2587 = vunpack.c.h.b16 %v1896
        %v2588 = vunpack.c.l.b16 %v1897
        %v2589 = vunpack.c.h.b16 %v1897
        %v2590 = vunpack.c.l.b16 %v1898
        %v2591 = vunpack.c.h.b16 %v1898
        %v2592 = vunpack.c.l.b16 %v1899
        %v2593 = vunpack.c.h.b16 %v1899
        %v2594 = vunpack.c.l.b16 %v1900
        %v2595 = vunpack.c.h.b16 %v1900
        %v2596 = vunpack.c.l.b16 %v1901
        %v2597 = vunpack.c.h.b16 %v1901
        %v2598 = vunpack.c.l.b16 %v1902
        %v2599 = vunpack.c.h.b16 %v1902
        %v2600 = vunpack.c.l.b16 %v1903
        %v2601 = vunpack.c.h.b16 %v1903
        %v2602 = vunpack.c.l.b16 %v1904
        %v2603 = vunpack.c.h.b16 %v1904
        %v2604 = vunpack.c.l.b16 %v1905
        %v2605 = vunpack.c.h.b16 %v1905
        %v2606 = vunpack.c.l.b16 %v1906
        %v2607 = vunpack.c.h.b16 %v1906
        %v2608 = vunpack.c.l.b16 %v1907
        %v2609 = vunpack.c.h.b16 %v1907
        %v2610 = vunpack.c.l.b16 %v1908
        %v2611 = vunpack.c.h.b16 %v1908
        %v2612 = vunpack.c.l.b16 %v1909
        %v2613 = vunpack.c.h.b16 %v1909
        %v2614 = vunpack.c.l.b16 %v1910
        %v2615 = vunpack.c.h.b16 %v1910
        %v2616 = vunpack.c.l.b16 %v1911
        %v2617 = vunpack.c.h.b16 %v1911
        %v2618 = vunpack.c.l.b16 %v1912
        %v2619 = vunpack.c.h.b16 %v1912
        %v2620 = vunpack.c.l.b16 %v1913
        %v2621 = vunpack.c.h.b16 %v1913
        %v2622 = vunpack.c.l.b16 %v1914
        %v2623 = vunpack.c.h.b16 %v1914
        %v2624 = vunpack.c.l.b16 %v1915
        %v2625 = vunpack.c.h.b16 %v1915
        %v2626 = vunpack.c.l.b16 %v1916
        %v2627 = vunpack.c.h.b16 %v1916
        %v2628 = vunpack.c.l.b16 %v1917
        %v2629 = vunpack.c.h.b16 %v1917
        %v2630 = vunpack.c.l.b16 %v1918
        %v2631 = vunpack.c.h.b16 %v1918
        %v2632 = vunpack.c.l.b16 %v1919
        %v2633 = vunpack.c.h.b16 %v1919
        %v2634 = vunpack.c.l.b16 %v1920
        %v2635 = vunpack.c.h.b16 %v1920
        %v2636 = vunpack.c.l.b16 %v1921
        %v2637 = vunpack.c.h.b16 %v1921
        %v2638 = vunpack.c.l.b16 %v1922
        %v2639 = vunpack.c.h.b16 %v1922
        %v2640 = vunpack.c.l.b16 %v1923
        %v2641 = vunpack.c.h.b16 %v1923
        %v2642 = vunpack.c.l.b16 %v1924
        %v2643 = vunpack.c.h.b16 %v1924
        %v2644 = vunpack.c.l.b16 %v1925
        %v2645 = vunpack.c.h.b16 %v1925
        %v2646 = vunpack.c.l.b16 %v1926
        %v2647 = vunpack.c.h.b16 %v1926
        %v2648 = vunpack.c.l.b16 %v1927
        %v2649 = vunpack.c.h.b16 %v1927
        %v2650 = vunpack.c.l.b16 %v1928
        %v2651 = vunpack.c.h.b16 %v1928
        %v2652 = vunpack.c.l.b16 %v1929
        %v2653 = vunpack.c.h.b16 %v1929
        %v2654 = vunpack.c.l.b16 %v1930
        %v2655 = vunpack.c.h.b16 %v1930
        %v2656 = vunpack.c.l.b16 %v1931
        %v2657 = vunpack.c.h.b16 %v1931
        %v2658 = vunpack.c.l.b16 %v1932
        %v2659 = vunpack.c.h.b16 %v1932
        %v2660 = vunpack.c.l.b16 %v1933
        %v2661 = vunpack.c.h.b16 %v1933
        %v2662 = vunpack.c.l.b16 %v1934
        %v2663 = vunpack.c.h.b16 %v1934
        %v2664 = vunpack.c.l.b16 %v1935
        %v2665 = vunpack.c.h.b16 %v1935
        %v2666 = vunpack.c.l.b16 %v1936
        %v2667 = vunpack.c.h.b16 %v1936
        %v2668 = vunpack.c.l.b16 %v1937
        %v2669 = vunpack.c.h.b16 %v1937
        %v2670 = vunpack.c.l.b16 %v1938
        %v2671 = vunpack.c.h.b16 %v1938
        %v2672 = vunpack.c.l.b16 %v1939
        %v2673 = vunpack.c.h.b16 %v1939
        %v2674 = vunpack.c.l.b16 %v1940
        %v2675 = vunpack.c.h.b16 %v1940
        %v2676 = vunpack.c.l.b16 %v1941
        %v2677 = vunpack.c.h.b16 %v1941
        %v2678 = vunpack.c.l.b16 %v1942
        %v2679 = vunpack.c.h.b16 %v1942
        %v2680 = vunpack.c.l.b16 %v1943
        %v2681 = vunpack.c.h.b16 %v1943
        %v2682 = vunpack.c.l.b16 %v1944
        %v2683 = vunpack.c.h.b16 %v1944
        %v2684 = vunpack.c.l.b16 %v1945
        %v2685 = vunpack.c.h.b16 %v1945
        %v2686 = vunpack.c.l.b16 %v1946
        %v2687 = vunpack.c.h.b16 %v1946
        %v2688 = vunpack.c.l.b16 %v1947
        %v2689 = vunpack.c.h.b16 %v1947
        %v2690 = vunpack.c.l.b16 %v1948
        %v2691 = vunpack.c.h.b16 %v1948
        %v2692 = vunpack.c.l.b16 %v1949
        %v2693 = vunpack.c.h.b16 %v1949
        %v2694 = vunpack.c.l.b16 %v1950
        %v2695 = vunpack.c.h.b16 %v1950
        %v2696 = vunpack.c.l.b16 %v1951
        %v2697 = vunpack.c.h.b16 %v1951
        %v2698 = vunpack.c.l.b16 %v1952
        %v2699 = vunpack.c.h.b16 %v1952
        %v2700 = vunpack.c.l.b16 %v1953
        %v2701 = vunpack.c.h.b16 %v1953
        %v2702 = vunpack.c.l.b16 %v1954
        %v2703 = vunpack.c.h.b16 %v1954
        %v2704 = vunpack.c.l.b16 %v1955
        %v2705 = vunpack.c.h.b16 %v1955
        %v2706 = vunpack.c.l.b16 %v1956
        %v2707 = vunpack.c.h.b16 %v1956
        %v2708 = vunpack.c.l.b16 %v1957
        %v2709 = vunpack.c.h.b16 %v1957
        %v2710 = vunpack.c.l.b16 %v1958
        %v2711 = vunpack.c.h.b16 %v1958
        %v2712 = vunpack.c.l.b16 %v1959
        %v2713 = vunpack.c.h.b16 %v1959
        %v2714 = vunpack.c.l.b16 %v1960
        %v2715 = vunpack.c.h.b16 %v1960
        %v2716 = vunpack.c.l.b16 %v1961
        %v2717 = vunpack.c.h.b16 %v1961
        %v2718 = vunpack.c.l.b16 %v1962
        %v2719 = vunpack.c.h.b16 %v1962
        %v2720 = vunpack.c.l.b16 %v1963
        %v2721 = vunpack.c.h.b16 %v1963
        %v2722 = vunpack.c.l.b16 %v1964
        %v2723 = vunpack.c.h.b16 %v1964
        %v2724 = vunpack.c.l.b16 %v1965
        %v2725 = vunpack.c.h.b16 %v1965
        %v2726 = vunpack.c.l.b16 %v1966
        %v2727 = vunpack.c.h.b16 %v1966
        %v2728 = vunpack.c.l.b16 %v1967
        %v2729 = vunpack.c.h.b16 %v1967
        %v2730 = vunpack.c.l.b16 %v1968
        %v2731 = vunpack.c.h.b16 %v1968
        %v2732 = vunpack.c.l.b16 %v1969
        %v2733 = vunpack.c.h.b16 %v1969
        %v2734 = vunpack.c.l.b16 %v1970
        %v2735 = vunpack.c.h.b16 %v1970
        %v2736 = vunpack.c.l.b16 %v1971
        %v2737 = vunpack.c.h.b16 %v1971
        %v2738 = vunpack.c.l.b16 %v1972
        %v2739 = vunpack.c.h.b16 %v1972
        %v2740 = vunpack.c.l.b16 %v1973
        %v2741 = vunpack.c.h.b16 %v1973
        %v2742 = vunpack.c.l.b16 %v1974
        %v2743 = vunpack.c.h.b16 %v1974
        %v2744 = vpack.c.b16 %v2240, %v2232
        %v2745 = vpack.c.b16 %v2241, %v2233
        %v2746 = vpack.c.b16 %v2242, %v2234
        %v2747 = vpack.c.b16 %v2243, %v2235
        %v2748 = vpack.c.b16 %v2244, %v2236
        %v2749 = vpack.c.b16 %v2245, %v2237
        %v2750 = vpack.c.b16 %v2246, %v2238
        %v2751 = vpack.c.b16 %v2247, %v2239
        %v2752 = vpack.c.b16 %v2256, %v2248
        %v2753 = vpack.c.b16 %v2257, %v2249
        %v2754 = vpack.c.b16 %v2258, %v2250
        %v2755 = vpack.c.b16 %v2259, %v2251
        %v2756 = vpack.c.b16 %v2260, %v2252
        %v2757 = vpack.c.b16 %v2261, %v2253
        %v2758 = vpack.c.b16 %v2262, %v2254
        %v2759 = vpack.c.b16 %v2263, %v2255
        %v2760 = vpack.c.b16 %v2272, %v2264
        %v2761 = vpack.c.b16 %v2273, %v2265
        %v2762 = vpack.c.b16 %v2274, %v2266
        %v2763 = vpack.c.b16 %v2275, %v2267
        %v2764 = vpack.c.b16 %v2276, %v2268
        %v2765 = vpack.c.b16 %v2277, %v2269
        %v2766 = vpack.c.b16 %v2278, %v2270
        %v2767 = vpack.c.b16 %v2279, %v2271
        %v2768 = vpack.c.b16 %v2288, %v2280
        %v2769 = vpack.c.b16 %v2289, %v2281
        %v2770 = vpack.c.b16 %v2290, %v2282
        %v2771 = vpack.c.b16 %v2291, %v2283
        %v2772 = vpack.c.b16 %v2292, %v2284
        %v2773 = vpack.c.b16 %v2293, %v2285
        %v2774 = vpack.c.b16 %v2294, %v2286
        %v2775 = vpack.c.b16 %v2295, %v2287
        %v2776 = vpack.c.b16 %v2304, %v2296
        %v2777 = vpack.c.b16 %v2305, %v2297
        %v2778 = vpack.c.b16 %v2306, %v2298
        %v2779 = vpack.c.b16 %v2307, %v2299
        %v2780 = vpack.c.b16 %v2308, %v2300
        %v2781 = vpack.c.b16 %v2309, %v2301
        %v2782 = vpack.c.b16 %v2310, %v2302
        %v2783 = vpack.c.b16 %v2311, %v2303
        %v2784 = vpack.c.b16 %v2320, %v2312
        %v2785 = vpack.c.b16 %v2321, %v2313
        %v2786 = vpack.c.b16 %v2322, %v2314
        %v2787 = vpack.c.b16 %v2323, %v2315
        %v2788 = vpack.c.b16 %v2324, %v2316
        %v2789 = vpack.c.b16 %v2325, %v2317
        %v2790 = vpack.c.b16 %v2326, %v2318
        %v2791 = vpack.c.b16 %v2327, %v2319
        %v2792 = vpack.c.b16 %v2336, %v2328
        %v2793 = vpack.c.b16 %v2337, %v2329
        %v2794 = vpack.c.b16 %v2338, %v2330
        %v2795 = vpack.c.b16 %v2339, %v2331
        %v2796 = vpack.c.b16 %v2340, %v2332
        %v2797 = vpack.c.b16 %v2341, %v2333
        %v2798 = vpack.c.b16 %v2342, %v2334
        %v2799 = vpack.c.b16 %v2343, %v2335
        %v2800 = vpack.c.b16 %v2352, %v2344
        %v2801 = vpack.c.b16 %v2353, %v2345
        %v2802 = vpack.c.b16 %v2354, %v2346
        %v2803 = vpack.c.b16 %v2355, %v2347
        %v2804 = vpack.c.b16 %v2356, %v2348
        %v2805 = vpack.c.b16 %v2357, %v2349
        %v2806 = vpack.c.b16 %v2358, %v2350
        %v2807 = vpack.c.b16 %v2359, %v2351
        %v2808 = vpack.c.b16 %v2368, %v2360
        %v2809 = vpack.c.b16 %v2369, %v2361
        %v2810 = vpack.c.b16 %v2370, %v2362
        %v2811 = vpack.c.b16 %v2371, %v2363
        %v2812 = vpack.c.b16 %v2372, %v2364
        %v2813 = vpack.c.b16 %v2373, %v2365
        %v2814 = vpack.c.b16 %v2374, %v2366
        %v2815 = vpack.c.b16 %v2375, %v2367
        %v2816 = vpack.c.b16 %v2384, %v2376
        %v2817 = vpack.c.b16 %v2385, %v2377
        %v2818 = vpack.c.b16 %v2386, %v2378
        %v2819 = vpack.c.b16 %v2387, %v2379
        %v2820 = vpack.c.b16 %v2388, %v2380
        %v2821 = vpack.c.b16 %v2389, %v2381
        %v2822 = vpack.c.b16 %v2390, %v2382
        %v2823 = vpack.c.b16 %v2391, %v2383
        %v2824 = vpack.c.b16 %v2400, %v2392
        %v2825 = vpack.c.b16 %v2401, %v2393
        %v2826 = vpack.c.b16 %v2402, %v2394
        %v2827 = vpack.c.b16 %v2403, %v2395
        %v2828 = vpack.c.b16 %v2404, %v2396
        %v2829 = vpack.c.b16 %v2405, %v2397
        %v2830 = vpack.c.b16 %v2406, %v2398
        %v2831 = vpack.c.b16 %v2407, %v2399
        %v2832 = vpack.c.b16 %v2416, %v2408
        %v2833 = vpack.c.b16 %v2417, %v2409
        %v2834 = vpack.c.b16 %v2418, %v2410
        %v2835 = vpack.c.b16 %v2419, %v2411
        %v2836 = vpack.c.b16 %v2420, %v2412
        %v2837 = vpack.c.b16 %v2421, %v2413
        %v2838 = vpack.c.b16 %v2422, %v2414
        %v2839 = vpack.c.b16 %v2423, %v2415
        %v2840 = vpack.c.b16 %v2432, %v2424
        %v2841 = vpack.c.b16 %v2433, %v2425
        %v2842 = vpack.c.b16 %v2434, %v2426
        %v2843 = vpack.c.b16 %v2435, %v2427
        %v2844 = vpack.c.b16 %v2436, %v2428
        %v2845 = vpack.c.b16 %v2437, %v2429
        %v2846 = vpack.c.b16 %v2438, %v2430
        %v2847 = vpack.c.b16 %v2439, %v2431
        %v2848 = vpack.c.b16 %v2448, %v2440
        %v2849 = vpack.c.b16 %v2449, %v2441
        %v2850 = vpack.c.b16 %v2450, %v2442
        %v2851 = vpack.c.b16 %v2451, %v2443
        %v2852 = vpack.c.b16 %v2452, %v2444
        %v2853 = vpack.c.b16 %v2453, %v2445
        %v2854 = vpack.c.b16 %v2454, %v2446
        %v2855 = vpack.c.b16 %v2455, %v2447
        %v2856 = vpack.c.b16 %v2464, %v2456
        %v2857 = vpack.c.b16 %v2465, %v2457
        %v2858 = vpack.c.b16 %v2466, %v2458
        %v2859 = vpack.c.b16 %v2467, %v2459
        %v2860 = vpack.c.b16 %v2468, %v2460
        %v2861 = vpack.c.b16 %v2469, %v2461
        %v2862 = vpack.c.b16 %v2470, %v2462
        %v2863 = vpack.c.b16 %v2471, %v2463
        %v2864 = vpack.c.b16 %v2480, %v2472
        %v2865 = vpack.c.b16 %v2481, %v2473
        %v2866 = vpack.c.b16 %v2482, %v2474
        %v2867 = vpack.c.b16 %v2483, %v2475
        %v2868 = vpack.c.b16 %v2484, %v2476
        %v2869 = vpack.c.b16 %v2485, %v2477
        %v2870 = vpack.c.b16 %v2486, %v2478
        %v2871 = vpack.c.b16 %v2487, %v2479
        %v2872 = vpack.c.b16 %v2496, %v2488
        %v2873 = vpack.c.b16 %v2497, %v2489
        %v2874 = vpack.c.b16 %v2498, %v2490
        %v2875 = vpack.c.b16 %v2499, %v2491
        %v2876 = vpack.c.b16 %v2500, %v2492
        %v2877 = vpack.c.b16 %v2501, %v2493
        %v2878 = vpack.c.b16 %v2502, %v2494
        %v2879 = vpack.c.b16 %v2503, %v2495
        %v2880 = vpack.c.b16 %v2512, %v2504
        %v2881 = vpack.c.b16 %v2513, %v2505
        %v2882 = vpack.c.b16 %v2514, %v2506
        %v2883 = vpack.c.b16 %v2515, %v2507
        %v2884 = vpack.c.b16 %v2516, %v2508
        %v2885 = vpack.c.b16 %v2517, %v2509
        %v2886 = vpack.c.b16 %v2518, %v2510
        %v2887 = vpack.c.b16 %v2519, %v2511
        %v2888 = vpack.c.b16 %v2528, %v2520
        %v2889 = vpack.c.b16 %v2529, %v2521
        %v2890 = vpack.c.b16 %v2530, %v2522
        %v2891 = vpack.c.b16 %v2531, %v2523
        %v2892 = vpack.c.b16 %v2532, %v2524
        %v2893 = vpack.c.b16 %v2533, %v2525
        %v2894 = vpack.c.b16 %v2534, %v2526
        %v2895 = vpack.c.b16 %v2535, %v2527
        %v2896 = vpack.c.b16 %v2544, %v2536
        %v2897 = vpack.c.b16 %v2545, %v2537
        %v2898 = vpack.c.b16 %v2546, %v2538
        %v2899 = vpack.c.b16 %v2547, %v2539
        %v2900 = vpack.c.b16 %v2548, %v2540
        %v2901 = vpack.c.b16 %v2549, %v2541
        %v2902 = vpack.c.b16 %v2550, %v2542
        %v2903 = vpack.c.b16 %v2551, %v2543
        %v2904 = vpack.c.b16 %v2560, %v2552
        %v2905 = vpack.c.b16 %v2561, %v2553
        %v2906 = vpack.c.b16 %v2562, %v2554
        %v2907 = vpack.c.b16 %v2563, %v2555
        %v2908 = vpack.c.b16 %v2564, %v2556
        %v2909 = vpack.c.b16 %v2565, %v2557
        %v2910 = vpack.c.b16 %v2566, %v2558
        %v2911 = vpack.c.b16 %v2567, %v2559
        %v2912 = vpack.c.b16 %v2576, %v2568
        %v2913 = vpack.c.b16 %v2577, %v2569
        %v2914 = vpack.c.b16 %v2578, %v2570
        %v2915 = vpack.c.b16 %v2579, %v2571
        %v2916 = vpack.c.b16 %v2580, %v2572
        %v2917 = vpack.c.b16 %v2581, %v2573
        %v2918 = vpack.c.b16 %v2582, %v2574
        %v2919 = vpack.c.b16 %v2583, %v2575
        %v2920 = vpack.c.b16 %v2592, %v2584
        %v2921 = vpack.c.b16 %v2593, %v2585
        %v2922 = vpack.c.b16 %v2594, %v2586
        %v2923 = vpack.c.b16 %v2595, %v2587
        %v2924 = vpack.c.b16 %v2596, %v2588
        %v2925 = vpack.c.b16 %v2597, %v2589
        %v2926 = vpack.c.b16 %v2598, %v2590
        %v2927 = vpack.c.b16 %v2599, %v2591
        %v2928 = vpack.c.b16 %v2608, %v2600
        %v2929 = vpack.c.b16 %v2609, %v2601
        %v2930 = vpack.c.b16 %v2610, %v2602
        %v2931 = vpack.c.b16 %v2611, %v2603
        %v2932 = vpack.c.b16 %v2612, %v2604
        %v2933 = vpack.c.b16 %v2613, %v2605
        %v2934 = vpack.c.b16 %v2614, %v2606
        %v2935 = vpack.c.b16 %v2615, %v2607
        %v2936 = vpack.c.b16 %v2624, %v2616
        %v2937 = vpack.c.b16 %v2625, %v2617
        %v2938 = vpack.c.b16 %v2626, %v2618
        %v2939 = vpack.c.b16 %v2627, %v2619
        %v2940 = vpack.c.b16 %v2628, %v2620
        %v2941 = vpack.c.b16 %v2629, %v2621
        %v2942 = vpack.c.b16 %v2630, %v2622
        %v2943 = vpack.c.b16 %v2631, %v2623
        %v2944 = vpack.c.b16 %v2640, %v2632
        %v2945 = vpack.c.b16 %v2641, %v2633
        %v2946 = vpack.c.b16 %v2642, %v2634
        %v2947 = vpack.c.b16 %v2643, %v2635
        %v2948 = vpack.c.b16 %v2644, %v2636
        %v2949 = vpack.c.b16 %v2645, %v2637
        %v2950 = vpack.c.b16 %v2646, %v2638
        %v2951 = vpack.c.b16 %v2647, %v2639
        %v2952 = vpack.c.b16 %v2656, %v2648
        %v2953 = vpack.c.b16 %v2657, %v2649
        %v2954 = vpack.c.b16 %v2658, %v2650
        %v2955 = vpack.c.b16 %v2659, %v2651
        %v2956 = vpack.c.b16 %v2660, %v2652
        %v2957 = vpack.c.b16 %v2661, %v2653
        %v2958 = vpack.c.b16 %v2662, %v2654
        %v2959 = vpack.c.b16 %v2663, %v2655
        %v2960 = vpack.c.b16 %v2672, %v2664
        %v2961 = vpack.c.b16 %v2673, %v2665
        %v2962 = vpack.c.b16 %v2674, %v2666
        %v2963 = vpack.c.b16 %v2675, %v2667
        %v2964 = vpack.c.b16 %v2676, %v2668
        %v2965 = vpack.c.b16 %v2677, %v2669
        %v2966 = vpack.c.b16 %v2678, %v2670
        %v2967 = vpack.c.b16 %v2679, %v2671
        %v2968 = vpack.c.b16 %v2688, %v2680
        %v2969 = vpack.c.b16 %v2689, %v2681
        %v2970 = vpack.c.b16 %v2690, %v2682
        %v2971 = vpack.c.b16 %v2691, %v2683
        %v2972 = vpack.c.b16 %v2692, %v2684
        %v2973 = vpack.c.b16 %v2693, %v2685
        %v2974 = vpack.c.b16 %v2694, %v2686
        %v2975 = vpack.c.b16 %v2695, %v2687
        %v2976 = vpack.c.b16 %v2704, %v2696
        %v2977 = vpack.c.b16 %v2705, %v2697
        %v2978 = vpack.c.b16 %v2706, %v2698
        %v2979 = vpack.c.b16 %v2707, %v2699
        %v2980 = vpack.c.b16 %v2708, %v2700
        %v2981 = vpack.c.b16 %v2709, %v2701
        %v2982 = vpack.c.b16 %v2710, %v2702
        %v2983 = vpack.c.b16 %v2711, %v2703
        %v2984 = vpack.c.b16 %v2720, %v2712
        %v2985 = vpack.c.b16 %v2721, %v2713
        %v2986 = vpack.c.b16 %v2722, %v2714
        %v2987 = vpack.c.b16 %v2723, %v2715
        %v2988 = vpack.c.b16 %v2724, %v2716
        %v2989 = vpack.c.b16 %v2725, %v2717
        %v2990 = vpack.c.b16 %v2726, %v2718
        %v2991 = vpack.c.b16 %v2727, %v2719
        %v2992 = vpack.c.b16 %v2736, %v2728
        %v2993 = vpack.c.b16 %v2737, %v2729
        %v2994 = vpack.c.b16 %v2738, %v2730
        %v2995 = vpack.c.b16 %v2739, %v2731
        %v2996 = vpack.c.b16 %v2740, %v2732
        %v2997 = vpack.c.b16 %v2741, %v2733
        %v2998 = vpack.c.b16 %v2742, %v2734
        %v2999 = vpack.c.b16 %v2743, %v2735
        %v3257 = vlaneseq
        %v3258 = vshrl.u32 %v3257, 7
        %v3259 = vsub.s32 0, %v3258
        %v3260 = vrot.slane %v1975, %v3259
        %v3261 = vlaneseq
        %v3262 = vshrl.u32 %v3261, 7
        %v3263 = vsub.s32 1, %v3262
        %v3264 = vrot.slane %v1975, %v3263
        %v3265 = vlaneseq
        %v3266 = vshrl.u32 %v3265, 7
        %v3267 = vsub.s32 2, %v3266
        %v3268 = vrot.slane %v1975, %v3267
        %v3269 = vlaneseq
        %v3270 = vshrl.u32 %v3269, 7
        %v3271 = vsub.s32 3, %v3270
        %v3272 = vrot.slane %v1975, %v3271
        %v3273 = vlaneseq
        %v3274 = vshrl.u32 %v3273, 7
        %v3275 = vsub.s32 4, %v3274
        %v3276 = vrot.slane %v1975, %v3275
        %v3277 = vlaneseq
        %v3278 = vshrl.u32 %v3277, 7
        %v3279 = vsub.s32 5, %v3278
        %v3280 = vrot.slane %v1975, %v3279
        %v3281 = vlaneseq
        %v3282 = vshrl.u32 %v3281, 7
        %v3283 = vsub.s32 6, %v3282
        %v3284 = vrot.slane %v1975, %v3283
        %v3285 = vlaneseq
        %v3286 = vshrl.u32 %v3285, 7
        %v3287 = vsub.s32 7, %v3286
        %v3288 = vrot.slane %v1975, %v3287
        %3297 = vmatprep.subr.bf16.mxu0 %v2801
        %3298 = vmatpush1.bf16.msra.mxu0 %v2800
        %3299 = vmatprep.subr.bf16.mxu0 %v2793
        %3300 = vmatpush1.bf16.msra.mxu0 %v2792
        %3301 = vmatprep.subr.bf16.mxu0 %v2785
        %3302 = vmatpush1.bf16.msra.mxu0 %v2784
        %3303 = vmatprep.subr.bf16.mxu0 %v2777
        %3304 = vmatpush1.bf16.msra.mxu0 %v2776
        %3305 = vmatprep.subr.bf16.mxu0 %v2769
        %3306 = vmatpush1.bf16.msra.mxu0 %v2768
        %3307 = vmatprep.subr.bf16.mxu0 %v2761
        %3308 = vmatpush1.bf16.msra.mxu0 %v2760
        %3309 = vmatprep.subr.bf16.mxu0 %v2753
        %3310 = vmatpush1.bf16.msra.mxu0 %v2752
        %3311 = vmatprep.subr.bf16.mxu0 %v2745
        %3312 = vmatpush1.bf16.msra.mxu0 %v2744
        %3313 = vmatprep.subr.bf16.mxu0 %v2865
        %3314 = vmatpush2.bf16.msra.mxu0 %v2864
        %3315 = vmatprep.subr.bf16.mxu0 %v2857
        %3316 = vmatpush2.bf16.msra.mxu0 %v2856
        %3317 = vmatprep.subr.bf16.mxu0 %v2849
        %3318 = vmatpush2.bf16.msra.mxu0 %v2848
        %3319 = vmatprep.subr.bf16.mxu0 %v2841
        %3320 = vmatpush2.bf16.msra.mxu0 %v2840
        %3321 = vmatprep.subr.bf16.mxu0 %v2833
        %3322 = vmatpush2.bf16.msra.mxu0 %v2832
        %3323 = vmatprep.subr.bf16.mxu0 %v2825
        %3324 = vmatpush2.bf16.msra.mxu0 %v2824
        %3325 = vmatprep.subr.bf16.mxu0 %v2817
        %3326 = vmatpush2.bf16.msra.mxu0 %v2816
        %3327 = vmatprep.subr.bf16.mxu0 %v2809
        %3328 = vmatpush2.bf16.msra.mxu0 %v2808
        %3329 = vmatprep.mubr.bf16.mxu0 %v1718
        %3330 = vmatmul.mubr.bf16.gmra.mxu0 %v1717
        %v3331 = vpop.f32.mrf.mxu0
        %v3332 = vadd.f32 %v3260, %v3331
        %v3333 = vpop.f32.mrf.mxu0
        %v3334 = vadd.f32 %v3264, %v3333
        %v3335 = vpop.f32.mrf.mxu0
        %v3336 = vpop.f32.mrf.mxu0
        %3337 = vdwg.mxu0
        %3338 = vmatprep.subr.bf16.mxu0 %v2929
        %3339 = vmatpush1.bf16.msra.mxu0 %v2928
        %3340 = vmatprep.subr.bf16.mxu0 %v2921
        %3341 = vmatpush1.bf16.msra.mxu0 %v2920
        %3342 = vmatprep.subr.bf16.mxu0 %v2913
        %3343 = vmatpush1.bf16.msra.mxu0 %v2912
        %3344 = vmatprep.subr.bf16.mxu0 %v2905
        %3345 = vmatpush1.bf16.msra.mxu0 %v2904
        %3346 = vmatprep.subr.bf16.mxu0 %v2897
        %3347 = vmatpush1.bf16.msra.mxu0 %v2896
        %3348 = vmatprep.subr.bf16.mxu0 %v2889
        %3349 = vmatpush1.bf16.msra.mxu0 %v2888
        %3350 = vmatprep.subr.bf16.mxu0 %v2881
        %3351 = vmatpush1.bf16.msra.mxu0 %v2880
        %3352 = vmatprep.subr.bf16.mxu0 %v2873
        %3353 = vmatpush1.bf16.msra.mxu0 %v2872
        %3354 = vmatprep.subr.bf16.mxu0 %v2993
        %3355 = vmatpush2.bf16.msra.mxu0 %v2992
        %3356 = vmatprep.subr.bf16.mxu0 %v2985
        %3357 = vmatpush2.bf16.msra.mxu0 %v2984
        %3358 = vmatprep.subr.bf16.mxu0 %v2977
        %3359 = vmatpush2.bf16.msra.mxu0 %v2976
        %3360 = vmatprep.subr.bf16.mxu0 %v2969
        %3361 = vmatpush2.bf16.msra.mxu0 %v2968
        %3362 = vmatprep.subr.bf16.mxu0 %v2961
        %3363 = vmatpush2.bf16.msra.mxu0 %v2960
        %3364 = vmatprep.subr.bf16.mxu0 %v2953
        %3365 = vmatpush2.bf16.msra.mxu0 %v2952
        %3366 = vmatprep.subr.bf16.mxu0 %v2945
        %3367 = vmatpush2.bf16.msra.mxu0 %v2944
        %3368 = vmatprep.subr.bf16.mxu0 %v2937
        %3369 = vmatpush2.bf16.msra.mxu0 %v2936
        %3370 = vmatprep.mubr.bf16.mxu0 %v758
        %3371 = vmatmul.mubr.bf16.gmra.mxu0 %v757
        %v3372 = vpop.f32.mrf.mxu0
        %v3373 = vadd.f32 %v3332, %v3372
        %v3374 = vpop.f32.mrf.mxu0
        %v3375 = vadd.f32 %v3334, %v3374
        %v3376 = vpop.f32.mrf.mxu0
        %v3377 = vpop.f32.mrf.mxu0
        %3378 = vdwg.mxu0
        %3379 = vmatprep.subr.bf16.mxu0 %v2803
        %3380 = vmatpush1.bf16.msra.mxu0 %v2802
        %3381 = vmatprep.subr.bf16.mxu0 %v2795
        %3382 = vmatpush1.bf16.msra.mxu0 %v2794
        %3383 = vmatprep.subr.bf16.mxu0 %v2787
        %3384 = vmatpush1.bf16.msra.mxu0 %v2786
        %3385 = vmatprep.subr.bf16.mxu0 %v2779
        %3386 = vmatpush1.bf16.msra.mxu0 %v2778
        %3387 = vmatprep.subr.bf16.mxu0 %v2771
        %3388 = vmatpush1.bf16.msra.mxu0 %v2770
        %3389 = vmatprep.subr.bf16.mxu0 %v2763
        %3390 = vmatpush1.bf16.msra.mxu0 %v2762
        %3391 = vmatprep.subr.bf16.mxu0 %v2755
        %3392 = vmatpush1.bf16.msra.mxu0 %v2754
        %3393 = vmatprep.subr.bf16.mxu0 %v2747
        %3394 = vmatpush1.bf16.msra.mxu0 %v2746
        %3395 = vmatprep.subr.bf16.mxu0 %v2867
        %3396 = vmatpush2.bf16.msra.mxu0 %v2866
        %3397 = vmatprep.subr.bf16.mxu0 %v2859
        %3398 = vmatpush2.bf16.msra.mxu0 %v2858
        %3399 = vmatprep.subr.bf16.mxu0 %v2851
        %3400 = vmatpush2.bf16.msra.mxu0 %v2850
        %3401 = vmatprep.subr.bf16.mxu0 %v2843
        %3402 = vmatpush2.bf16.msra.mxu0 %v2842
        %3403 = vmatprep.subr.bf16.mxu0 %v2835
        %3404 = vmatpush2.bf16.msra.mxu0 %v2834
        %3405 = vmatprep.subr.bf16.mxu0 %v2827
        %3406 = vmatpush2.bf16.msra.mxu0 %v2826
        %3407 = vmatprep.subr.bf16.mxu0 %v2819
        %3408 = vmatpush2.bf16.msra.mxu0 %v2818
        %3409 = vmatprep.subr.bf16.mxu0 %v2811
        %3410 = vmatpush2.bf16.msra.mxu0 %v2810
        %3411 = vmatprep.mubr.bf16.mxu0 %v1718
        %3412 = vmatmul.mubr.bf16.gmra.mxu0 %v1717
        %v3413 = vpop.f32.mrf.mxu0
        %v3414 = vadd.f32 %v3268, %v3413
        %v3415 = vpop.f32.mrf.mxu0
        %v3416 = vadd.f32 %v3272, %v3415
        %v3417 = vpop.f32.mrf.mxu0
        %v3418 = vpop.f32.mrf.mxu0
        %3419 = vdwg.mxu0
        %3420 = vmatprep.subr.bf16.mxu0 %v2931
        %3421 = vmatpush1.bf16.msra.mxu0 %v2930
        %3422 = vmatprep.subr.bf16.mxu0 %v2923
        %3423 = vmatpush1.bf16.msra.mxu0 %v2922
        %3424 = vmatprep.subr.bf16.mxu0 %v2915
        %3425 = vmatpush1.bf16.msra.mxu0 %v2914
        %3426 = vmatprep.subr.bf16.mxu0 %v2907
        %3427 = vmatpush1.bf16.msra.mxu0 %v2906
        %3428 = vmatprep.subr.bf16.mxu0 %v2899
        %3429 = vmatpush1.bf16.msra.mxu0 %v2898
        %3430 = vmatprep.subr.bf16.mxu0 %v2891
        %3431 = vmatpush1.bf16.msra.mxu0 %v2890
        %3432 = vmatprep.subr.bf16.mxu0 %v2883
        %3433 = vmatpush1.bf16.msra.mxu0 %v2882
        %3434 = vmatprep.subr.bf16.mxu0 %v2875
        %3435 = vmatpush1.bf16.msra.mxu0 %v2874
        %3436 = vmatprep.subr.bf16.mxu0 %v2995
        %3437 = vmatpush2.bf16.msra.mxu0 %v2994
        %3438 = vmatprep.subr.bf16.mxu0 %v2987
        %3439 = vmatpush2.bf16.msra.mxu0 %v2986
        %3440 = vmatprep.subr.bf16.mxu0 %v2979
        %3441 = vmatpush2.bf16.msra.mxu0 %v2978
        %3442 = vmatprep.subr.bf16.mxu0 %v2971
        %3443 = vmatpush2.bf16.msra.mxu0 %v2970
        %3444 = vmatprep.subr.bf16.mxu0 %v2963
        %3445 = vmatpush2.bf16.msra.mxu0 %v2962
        %3446 = vmatprep.subr.bf16.mxu0 %v2955
        %3447 = vmatpush2.bf16.msra.mxu0 %v2954
        %3448 = vmatprep.subr.bf16.mxu0 %v2947
        %3449 = vmatpush2.bf16.msra.mxu0 %v2946
        %3450 = vmatprep.subr.bf16.mxu0 %v2939
        %3451 = vmatpush2.bf16.msra.mxu0 %v2938
        %3452 = vmatprep.mubr.bf16.mxu0 %v758
        %3453 = vmatmul.mubr.bf16.gmra.mxu0 %v757
        %v3454 = vpop.f32.mrf.mxu0
        %v3455 = vadd.f32 %v3414, %v3454
        %v3456 = vpop.f32.mrf.mxu0
        %v3457 = vadd.f32 %v3416, %v3456
        %v3458 = vpop.f32.mrf.mxu0
        %v3459 = vpop.f32.mrf.mxu0
        %3460 = vdwg.mxu0
        %3461 = vmatprep.subr.bf16.mxu0 %v2805
        %3462 = vmatpush1.bf16.msra.mxu0 %v2804
        %3463 = vmatprep.subr.bf16.mxu0 %v2797
        %3464 = vmatpush1.bf16.msra.mxu0 %v2796
        %3465 = vmatprep.subr.bf16.mxu0 %v2789
        %3466 = vmatpush1.bf16.msra.mxu0 %v2788
        %3467 = vmatprep.subr.bf16.mxu0 %v2781
        %3468 = vmatpush1.bf16.msra.mxu0 %v2780
        %3469 = vmatprep.subr.bf16.mxu0 %v2773
        %3470 = vmatpush1.bf16.msra.mxu0 %v2772
        %3471 = vmatprep.subr.bf16.mxu0 %v2765
        %3472 = vmatpush1.bf16.msra.mxu0 %v2764
        %3473 = vmatprep.subr.bf16.mxu0 %v2757
        %3474 = vmatpush1.bf16.msra.mxu0 %v2756
        %3475 = vmatprep.subr.bf16.mxu0 %v2749
        %3476 = vmatpush1.bf16.msra.mxu0 %v2748
        %3477 = vmatprep.subr.bf16.mxu0 %v2869
        %3478 = vmatpush2.bf16.msra.mxu0 %v2868
        %3479 = vmatprep.subr.bf16.mxu0 %v2861
        %3480 = vmatpush2.bf16.msra.mxu0 %v2860
        %3481 = vmatprep.subr.bf16.mxu0 %v2853
        %3482 = vmatpush2.bf16.msra.mxu0 %v2852
        %3483 = vmatprep.subr.bf16.mxu0 %v2845
        %3484 = vmatpush2.bf16.msra.mxu0 %v2844
        %3485 = vmatprep.subr.bf16.mxu0 %v2837
        %3486 = vmatpush2.bf16.msra.mxu0 %v2836
        %3487 = vmatprep.subr.bf16.mxu0 %v2829
        %3488 = vmatpush2.bf16.msra.mxu0 %v2828
        %3489 = vmatprep.subr.bf16.mxu0 %v2821
        %3490 = vmatpush2.bf16.msra.mxu0 %v2820
        %3491 = vmatprep.subr.bf16.mxu0 %v2813
        %3492 = vmatpush2.bf16.msra.mxu0 %v2812
        %3493 = vmatprep.mubr.bf16.mxu0 %v1718
        %3494 = vmatmul.mubr.bf16.gmra.mxu0 %v1717
        %v3495 = vpop.f32.mrf.mxu0
        %v3496 = vadd.f32 %v3276, %v3495
        %v3497 = vpop.f32.mrf.mxu0
        %v3498 = vadd.f32 %v3280, %v3497
        %v3499 = vpop.f32.mrf.mxu0
        %v3500 = vpop.f32.mrf.mxu0
        %3501 = vdwg.mxu0
        %3502 = vmatprep.subr.bf16.mxu0 %v2933
        %3503 = vmatpush1.bf16.msra.mxu0 %v2932
        %3504 = vmatprep.subr.bf16.mxu0 %v2925
        %3505 = vmatpush1.bf16.msra.mxu0 %v2924
        %3506 = vmatprep.subr.bf16.mxu0 %v2917
        %3507 = vmatpush1.bf16.msra.mxu0 %v2916
        %3508 = vmatprep.subr.bf16.mxu0 %v2909
        %3509 = vmatpush1.bf16.msra.mxu0 %v2908
        %3510 = vmatprep.subr.bf16.mxu0 %v2901
        %3511 = vmatpush1.bf16.msra.mxu0 %v2900
        %3512 = vmatprep.subr.bf16.mxu0 %v2893
        %3513 = vmatpush1.bf16.msra.mxu0 %v2892
        %3514 = vmatprep.subr.bf16.mxu0 %v2885
        %3515 = vmatpush1.bf16.msra.mxu0 %v2884
        %3516 = vmatprep.subr.bf16.mxu0 %v2877
        %3517 = vmatpush1.bf16.msra.mxu0 %v2876
        %3518 = vmatprep.subr.bf16.mxu0 %v2997
        %3519 = vmatpush2.bf16.msra.mxu0 %v2996
        %3520 = vmatprep.subr.bf16.mxu0 %v2989
        %3521 = vmatpush2.bf16.msra.mxu0 %v2988
        %3522 = vmatprep.subr.bf16.mxu0 %v2981
        %3523 = vmatpush2.bf16.msra.mxu0 %v2980
        %3524 = vmatprep.subr.bf16.mxu0 %v2973
        %3525 = vmatpush2.bf16.msra.mxu0 %v2972
        %3526 = vmatprep.subr.bf16.mxu0 %v2965
        %3527 = vmatpush2.bf16.msra.mxu0 %v2964
        %3528 = vmatprep.subr.bf16.mxu0 %v2957
        %3529 = vmatpush2.bf16.msra.mxu0 %v2956
        %3530 = vmatprep.subr.bf16.mxu0 %v2949
        %3531 = vmatpush2.bf16.msra.mxu0 %v2948
        %3532 = vmatprep.subr.bf16.mxu0 %v2941
        %3533 = vmatpush2.bf16.msra.mxu0 %v2940
        %3534 = vmatprep.mubr.bf16.mxu0 %v758
        %3535 = vmatmul.mubr.bf16.gmra.mxu0 %v757
        %v3536 = vpop.f32.mrf.mxu0
        %v3537 = vadd.f32 %v3496, %v3536
        %v3538 = vpop.f32.mrf.mxu0
        %v3539 = vadd.f32 %v3498, %v3538
        %v3540 = vpop.f32.mrf.mxu0
        %v3541 = vpop.f32.mrf.mxu0
        %3542 = vdwg.mxu0
        %3543 = vmatprep.subr.bf16.mxu0 %v2807
        %3544 = vmatpush1.bf16.msra.mxu0 %v2806
        %3545 = vmatprep.subr.bf16.mxu0 %v2799
        %3546 = vmatpush1.bf16.msra.mxu0 %v2798
        %3547 = vmatprep.subr.bf16.mxu0 %v2791
        %3548 = vmatpush1.bf16.msra.mxu0 %v2790
        %3549 = vmatprep.subr.bf16.mxu0 %v2783
        %3550 = vmatpush1.bf16.msra.mxu0 %v2782
        %3551 = vmatprep.subr.bf16.mxu0 %v2775
        %3552 = vmatpush1.bf16.msra.mxu0 %v2774
        %3553 = vmatprep.subr.bf16.mxu0 %v2767
        %3554 = vmatpush1.bf16.msra.mxu0 %v2766
        %3555 = vmatprep.subr.bf16.mxu0 %v2759
        %3556 = vmatpush1.bf16.msra.mxu0 %v2758
        %3557 = vmatprep.subr.bf16.mxu0 %v2751
        %3558 = vmatpush1.bf16.msra.mxu0 %v2750
        %3559 = vmatprep.subr.bf16.mxu0 %v2871
        %3560 = vmatpush2.bf16.msra.mxu0 %v2870
        %3561 = vmatprep.subr.bf16.mxu0 %v2863
        %3562 = vmatpush2.bf16.msra.mxu0 %v2862
        %3563 = vmatprep.subr.bf16.mxu0 %v2855
        %3564 = vmatpush2.bf16.msra.mxu0 %v2854
        %3565 = vmatprep.subr.bf16.mxu0 %v2847
        %3566 = vmatpush2.bf16.msra.mxu0 %v2846
        %3567 = vmatprep.subr.bf16.mxu0 %v2839
        %3568 = vmatpush2.bf16.msra.mxu0 %v2838
        %3569 = vmatprep.subr.bf16.mxu0 %v2831
        %3570 = vmatpush2.bf16.msra.mxu0 %v2830
        %3571 = vmatprep.subr.bf16.mxu0 %v2823
        %3572 = vmatpush2.bf16.msra.mxu0 %v2822
        %3573 = vmatprep.subr.bf16.mxu0 %v2815
        %3574 = vmatpush2.bf16.msra.mxu0 %v2814
        %3575 = vmatprep.mubr.bf16.mxu0 %v1718
        %3576 = vmatmul.mubr.bf16.gmra.mxu0 %v1717
        %v3577 = vpop.f32.mrf.mxu0
        %v3578 = vadd.f32 %v3284, %v3577
        %v3579 = vpop.f32.mrf.mxu0
        %v3580 = vadd.f32 %v3288, %v3579
        %v3581 = vpop.f32.mrf.mxu0
        %v3582 = vpop.f32.mrf.mxu0
        %3583 = vdwg.mxu0
        %3584 = vmatprep.subr.bf16.mxu0 %v2935
        %3585 = vmatpush1.bf16.msra.mxu0 %v2934
        %3586 = vmatprep.subr.bf16.mxu0 %v2927
        %3587 = vmatpush1.bf16.msra.mxu0 %v2926
        %3588 = vmatprep.subr.bf16.mxu0 %v2919
        %3589 = vmatpush1.bf16.msra.mxu0 %v2918
        %3590 = vmatprep.subr.bf16.mxu0 %v2911
        %3591 = vmatpush1.bf16.msra.mxu0 %v2910
        %3592 = vmatprep.subr.bf16.mxu0 %v2903
        %3593 = vmatpush1.bf16.msra.mxu0 %v2902
        %3594 = vmatprep.subr.bf16.mxu0 %v2895
        %3595 = vmatpush1.bf16.msra.mxu0 %v2894
        %3596 = vmatprep.subr.bf16.mxu0 %v2887
        %3597 = vmatpush1.bf16.msra.mxu0 %v2886
        %3598 = vmatprep.subr.bf16.mxu0 %v2879
        %3599 = vmatpush1.bf16.msra.mxu0 %v2878
        %3600 = vmatprep.subr.bf16.mxu0 %v2999
        %3601 = vmatpush2.bf16.msra.mxu0 %v2998
        %3602 = vmatprep.subr.bf16.mxu0 %v2991
        %3603 = vmatpush2.bf16.msra.mxu0 %v2990
        %3604 = vmatprep.subr.bf16.mxu0 %v2983
        %3605 = vmatpush2.bf16.msra.mxu0 %v2982
        %3606 = vmatprep.subr.bf16.mxu0 %v2975
        %3607 = vmatpush2.bf16.msra.mxu0 %v2974
        %3608 = vmatprep.subr.bf16.mxu0 %v2967
        %3609 = vmatpush2.bf16.msra.mxu0 %v2966
        %3610 = vmatprep.subr.bf16.mxu0 %v2959
        %3611 = vmatpush2.bf16.msra.mxu0 %v2958
        %3612 = vmatprep.subr.bf16.mxu0 %v2951
        %3613 = vmatpush2.bf16.msra.mxu0 %v2950
        %3614 = vmatprep.subr.bf16.mxu0 %v2943
        %3615 = vmatpush2.bf16.msra.mxu0 %v2942
        %3616 = vmatprep.mubr.bf16.mxu0 %v758
        %3617 = vmatmul.mubr.bf16.gmra.mxu0 %v757
        %v3618 = vpop.f32.mrf.mxu0
        %v3619 = vadd.f32 %v3578, %v3618
        %v3620 = vpop.f32.mrf.mxu0
        %v3621 = vadd.f32 %v3580, %v3620
        %v3622 = vpop.f32.mrf.mxu0
        %v3623 = vpop.f32.mrf.mxu0
        %3624 = vdwg.mxu0
        %v3625 = vxor.u32 %v3373, 2147483648
        %v3626 = vxor.u32 %v3375, 2147483648
        %v3627 = vmul.f32 %v3625, 1.442695
        %v3628 = vpow.pop %v3627
        %v3629 = vmul.f32 %v3626, 1.442695
        %v3630 = vpow.pop %v3629
        %v3631 = vadd.f32 %v3628, 1.0
        %v3632 = vadd.f32 %v3630, 1.0
        %v3633 = vrcp.pop %v3631
        %v3634 = vmul.f32 1.0, %v3633
        %v3635 = vrcp.pop %v3632
        %v3636 = vmul.f32 1.0, %v3635
        %v3637 = vxor.u32 %v3455, 2147483648
        %v3638 = vxor.u32 %v3457, 2147483648
        %v3639 = vmul.f32 %v3637, 1.442695
        %v3640 = vpow.pop %v3639
        %v3641 = vmul.f32 %v3638, 1.442695
        %v3642 = vpow.pop %v3641
        %v3643 = vadd.f32 %v3640, 1.0
        %v3644 = vadd.f32 %v3642, 1.0
        %v3645 = vrcp.pop %v3643
        %v3646 = vmul.f32 1.0, %v3645
        %v3647 = vrcp.pop %v3644
        %v3648 = vmul.f32 1.0, %v3647
        %v3649 = vtanh.pop %v3537
        %v3650 = vtanh.pop %v3539
        %v3651 = vxor.u32 %v3619, 2147483648
        %v3652 = vxor.u32 %v3621, 2147483648
        %v3653 = vmul.f32 %v3651, 1.442695
        %v3654 = vpow.pop %v3653
        %v3655 = vmul.f32 %v3652, 1.442695
        %v3656 = vpow.pop %v3655
        %v3657 = vadd.f32 %v3654, 1.0
        %v3658 = vadd.f32 %v3656, 1.0
        %v3659 = vrcp.pop %v3657
        %v3660 = vmul.f32 1.0, %v3659
        %v3661 = vrcp.pop %v3658
        %v3662 = vmul.f32 1.0, %v3661
        %v3664 = vlaneseq
        %v3665 = vshrl.u32 %v3664, 7
        %v3666 = vsub.s32 0, %v3665
        %v3667 = vrot.slane %v706, %v3666
        %v3668 = vlaneseq
        %v3669 = vshrl.u32 %v3668, 7
        %v3670 = vsub.s32 1, %v3669
        %v3671 = vrot.slane %v706, %v3670
        %v3674 = vmul.f32 %v3646, %v3667
        %v3675 = vmul.f32 %v3648, %v3671
        %v3676 = vmul.f32 %v3634, %v3649
        %v3677 = vmul.f32 %v3636, %v3650
        %v3678 = vadd.f32 %v3674, %v3676
        %v3679 = vadd.f32 %v3675, %v3677
        %v3680 = vtanh.pop %v3678
        %v3681 = vtanh.pop %v3679
        %v3682 = vmul.f32 %v3660, %v3680
        %v3683 = vmul.f32 %v3662, %v3681
        %v3686 = vcombine.low %v3682, %v3683
        %v3688 = vunpack.c.l.s4 1966171168
        %v3689 = vunpack.c.0.s8 %v3688
        %v3690 = vlaneseq
        %v3691 = vshrl.u32 %v3690, 7
        %v3692 = vsub.s32 %v3689, %v3691
        %v3693 = vrot.slane %v3686, %v3692
        %v3695 = vunpack.c.l.s4 1966171168
        %v3696 = vunpack.c.0.s8 %v3695
        %v3697 = vlaneseq
        %v3698 = vshrl.u32 %v3697, 7
        %v3699 = vsub.s32 %v3696, %v3698
        %v3700 = vrot.slane %v3693, %v3699
        %v3702 = vlaneseq
        %vm3703 = vcmp.ge.s32.totalorder %v3702, 0
        %vm3704 = vcmp.lt.s32.totalorder %v3702, 256
        %vm3705 = vmand %vm3703, %vm3704
        %3706 = vst.msk [vmem:[#allocation2] sm:$0x3] %vm3705, %v3700
        %v3709 = vcombine.low %v3678, %v3679
        %v3711 = vunpack.c.l.s4 1966171168
        %v3712 = vunpack.c.0.s8 %v3711
        %v3713 = vlaneseq
        %v3714 = vshrl.u32 %v3713, 7
        %v3715 = vsub.s32 %v3712, %v3714
        %v3716 = vrot.slane %v3709, %v3715
        %v3718 = vunpack.c.l.s4 1966171168
        %v3719 = vunpack.c.0.s8 %v3718
        %v3720 = vlaneseq
        %v3721 = vshrl.u32 %v3720, 7
        %v3722 = vsub.s32 %v3719, %v3721
        %v3723 = vrot.slane %v3716, %v3722
        %3725 = vst.msk [vmem:[#allocation3] sm:$0x3] %vm3705, %v3723
        %3726 = vst.msk [vmem:[#allocation23] sm:$0x3] %vm3705, %v3700
        %3727 = vst.msk [vmem:[#allocation25] sm:$0x3] %vm3705, %v3723
        %v3728 = vpack.c.bf16 %v3682, %v3682
        %v3729 = vpack.c.bf16 %v3683, %v3683
        %v3730 = vld [vmem:[#allocation21] sm:$0xff]
        %v3731 = vld [vmem:[#allocation21 + $0x8] sm:$0xff]
        %v3732 = vld [vmem:[#allocation21 + $0x10] sm:$0xff]
        %v3733 = vld [vmem:[#allocation21 + $0x18] sm:$0xff]
        %v3734 = vld [vmem:[#allocation21 + $0x20] sm:$0xff]
        %v3735 = vld [vmem:[#allocation21 + $0x28] sm:$0xff]
        %v3736 = vld [vmem:[#allocation21 + $0x30] sm:$0xff]
        %v3737 = vld [vmem:[#allocation21 + $0x38] sm:$0xff]
        %v3738 = vld [vmem:[#allocation21 + $0x40] sm:$0xff]
        %v3739 = vld [vmem:[#allocation21 + $0x48] sm:$0xff]
        %v3740 = vld [vmem:[#allocation21 + $0x50] sm:$0xff]
        %v3741 = vld [vmem:[#allocation21 + $0x58] sm:$0xff]
        %v3742 = vld [vmem:[#allocation21 + $0x60] sm:$0xff]
        %v3743 = vld [vmem:[#allocation21 + $0x68] sm:$0xff]
        %v3744 = vld [vmem:[#allocation21 + $0x70] sm:$0xff]
        %v3745 = vld [vmem:[#allocation21 + $0x78] sm:$0xff]
        %v3746 = vld [vmem:[#allocation21 + $0x80] sm:$0xff]
        %v3747 = vld [vmem:[#allocation21 + $0x88] sm:$0xff]
        %v3748 = vld [vmem:[#allocation21 + $0x90] sm:$0xff]
        %v3749 = vld [vmem:[#allocation21 + $0x98] sm:$0xff]
        %v3750 = vld [vmem:[#allocation21 + $0xa0] sm:$0xff]
        %v3751 = vld [vmem:[#allocation21 + $0xa8] sm:$0xff]
        %v3752 = vld [vmem:[#allocation21 + $0xb0] sm:$0xff]
        %v3753 = vld [vmem:[#allocation21 + $0xb8] sm:$0xff]
        %v3754 = vld [vmem:[#allocation21 + $0xc0] sm:$0xff]
        %v3755 = vld [vmem:[#allocation21 + $0xc8] sm:$0xff]
        %v3756 = vld [vmem:[#allocation21 + $0xd0] sm:$0xff]
        %v3757 = vld [vmem:[#allocation21 + $0xd8] sm:$0xff]
        %v3758 = vld [vmem:[#allocation21 + $0xe0] sm:$0xff]
        %v3759 = vld [vmem:[#allocation21 + $0xe8] sm:$0xff]
        %v3760 = vld [vmem:[#allocation21 + $0xf0] sm:$0xff]
        %v3761 = vld [vmem:[#allocation21 + $0xf8] sm:$0xff]
        %v3762 = vld [vmem:[#allocation21 + $0x100] sm:$0xff]
        %v3763 = vld [vmem:[#allocation21 + $0x108] sm:$0xff]
        %v3764 = vld [vmem:[#allocation21 + $0x110] sm:$0xff]
        %v3765 = vld [vmem:[#allocation21 + $0x118] sm:$0xff]
        %v3766 = vld [vmem:[#allocation21 + $0x120] sm:$0xff]
        %v3767 = vld [vmem:[#allocation21 + $0x128] sm:$0xff]
        %v3768 = vld [vmem:[#allocation21 + $0x130] sm:$0xff]
        %v3769 = vld [vmem:[#allocation21 + $0x138] sm:$0xff]
        %v3770 = vld [vmem:[#allocation21 + $0x140] sm:$0xff]
        %v3771 = vld [vmem:[#allocation21 + $0x148] sm:$0xff]
        %v3772 = vld [vmem:[#allocation21 + $0x150] sm:$0xff]
        %v3773 = vld [vmem:[#allocation21 + $0x158] sm:$0xff]
        %v3774 = vld [vmem:[#allocation21 + $0x160] sm:$0xff]
        %v3775 = vld [vmem:[#allocation21 + $0x168] sm:$0xff]
        %v3776 = vld [vmem:[#allocation21 + $0x170] sm:$0xff]
        %v3777 = vld [vmem:[#allocation21 + $0x178] sm:$0xff]
        %v3778 = vld [vmem:[#allocation21 + $0x180] sm:$0xff]
        %v3779 = vld [vmem:[#allocation21 + $0x188] sm:$0xff]
        %v3780 = vld [vmem:[#allocation21 + $0x190] sm:$0xff]
        %v3781 = vld [vmem:[#allocation21 + $0x198] sm:$0xff]
        %v3782 = vld [vmem:[#allocation21 + $0x1a0] sm:$0xff]
        %v3783 = vld [vmem:[#allocation21 + $0x1a8] sm:$0xff]
        %v3784 = vld [vmem:[#allocation21 + $0x1b0] sm:$0xff]
        %v3785 = vld [vmem:[#allocation21 + $0x1b8] sm:$0xff]
        %v3786 = vld [vmem:[#allocation21 + $0x1c0] sm:$0xff]
        %v3787 = vld [vmem:[#allocation21 + $0x1c8] sm:$0xff]
        %v3788 = vld [vmem:[#allocation21 + $0x1d0] sm:$0xff]
        %v3789 = vld [vmem:[#allocation21 + $0x1d8] sm:$0xff]
        %v3790 = vld [vmem:[#allocation21 + $0x1e0] sm:$0xff]
        %v3791 = vld [vmem:[#allocation21 + $0x1e8] sm:$0xff]
        %v3792 = vld [vmem:[#allocation21 + $0x1f0] sm:$0xff]
        %v3793 = vld [vmem:[#allocation21 + $0x1f8] sm:$0xff]
        %v3794 = vld [vmem:[%s15] sm:$0xf]
        %v3859 = vunpack.c.l.b16 %v3730
        %v3860 = vunpack.c.h.b16 %v3730
        %v3861 = vunpack.c.l.b16 %v3731
        %v3862 = vunpack.c.h.b16 %v3731
        %v3863 = vunpack.c.l.b16 %v3732
        %v3864 = vunpack.c.h.b16 %v3732
        %v3865 = vunpack.c.l.b16 %v3733
        %v3866 = vunpack.c.h.b16 %v3733
        %v3867 = vunpack.c.l.b16 %v3734
        %v3868 = vunpack.c.h.b16 %v3734
        %v3869 = vunpack.c.l.b16 %v3735
        %v3870 = vunpack.c.h.b16 %v3735
        %v3871 = vunpack.c.l.b16 %v3736
        %v3872 = vunpack.c.h.b16 %v3736
        %v3873 = vunpack.c.l.b16 %v3737
        %v3874 = vunpack.c.h.b16 %v3737
        %v3875 = vunpack.c.l.b16 %v3738
        %v3876 = vunpack.c.h.b16 %v3738
        %v3877 = vunpack.c.l.b16 %v3739
        %v3878 = vunpack.c.h.b16 %v3739
        %v3879 = vunpack.c.l.b16 %v3740
        %v3880 = vunpack.c.h.b16 %v3740
        %v3881 = vunpack.c.l.b16 %v3741
        %v3882 = vunpack.c.h.b16 %v3741
        %v3883 = vunpack.c.l.b16 %v3742
        %v3884 = vunpack.c.h.b16 %v3742
        %v3885 = vunpack.c.l.b16 %v3743
        %v3886 = vunpack.c.h.b16 %v3743
        %v3887 = vunpack.c.l.b16 %v3744
        %v3888 = vunpack.c.h.b16 %v3744
        %v3889 = vunpack.c.l.b16 %v3745
        %v3890 = vunpack.c.h.b16 %v3745
        %v3891 = vunpack.c.l.b16 %v3746
        %v3892 = vunpack.c.h.b16 %v3746
        %v3893 = vunpack.c.l.b16 %v3747
        %v3894 = vunpack.c.h.b16 %v3747
        %v3895 = vunpack.c.l.b16 %v3748
        %v3896 = vunpack.c.h.b16 %v3748
        %v3897 = vunpack.c.l.b16 %v3749
        %v3898 = vunpack.c.h.b16 %v3749
        %v3899 = vunpack.c.l.b16 %v3750
        %v3900 = vunpack.c.h.b16 %v3750
        %v3901 = vunpack.c.l.b16 %v3751
        %v3902 = vunpack.c.h.b16 %v3751
        %v3903 = vunpack.c.l.b16 %v3752
        %v3904 = vunpack.c.h.b16 %v3752
        %v3905 = vunpack.c.l.b16 %v3753
        %v3906 = vunpack.c.h.b16 %v3753
        %v3907 = vunpack.c.l.b16 %v3754
        %v3908 = vunpack.c.h.b16 %v3754
        %v3909 = vunpack.c.l.b16 %v3755
        %v3910 = vunpack.c.h.b16 %v3755
        %v3911 = vunpack.c.l.b16 %v3756
        %v3912 = vunpack.c.h.b16 %v3756
        %v3913 = vunpack.c.l.b16 %v3757
        %v3914 = vunpack.c.h.b16 %v3757
        %v3915 = vunpack.c.l.b16 %v3758
        %v3916 = vunpack.c.h.b16 %v3758
        %v3917 = vunpack.c.l.b16 %v3759
        %v3918 = vunpack.c.h.b16 %v3759
        %v3919 = vunpack.c.l.b16 %v3760
        %v3920 = vunpack.c.h.b16 %v3760
        %v3921 = vunpack.c.l.b16 %v3761
        %v3922 = vunpack.c.h.b16 %v3761
        %v3923 = vunpack.c.l.b16 %v3762
        %v3924 = vunpack.c.h.b16 %v3762
        %v3925 = vunpack.c.l.b16 %v3763
        %v3926 = vunpack.c.h.b16 %v3763
        %v3927 = vunpack.c.l.b16 %v3764
        %v3928 = vunpack.c.h.b16 %v3764
        %v3929 = vunpack.c.l.b16 %v3765
        %v3930 = vunpack.c.h.b16 %v3765
        %v3931 = vunpack.c.l.b16 %v3766
        %v3932 = vunpack.c.h.b16 %v3766
        %v3933 = vunpack.c.l.b16 %v3767
        %v3934 = vunpack.c.h.b16 %v3767
        %v3935 = vunpack.c.l.b16 %v3768
        %v3936 = vunpack.c.h.b16 %v3768
        %v3937 = vunpack.c.l.b16 %v3769
        %v3938 = vunpack.c.h.b16 %v3769
        %v3939 = vunpack.c.l.b16 %v3770
        %v3940 = vunpack.c.h.b16 %v3770
        %v3941 = vunpack.c.l.b16 %v3771
        %v3942 = vunpack.c.h.b16 %v3771
        %v3943 = vunpack.c.l.b16 %v3772
        %v3944 = vunpack.c.h.b16 %v3772
        %v3945 = vunpack.c.l.b16 %v3773
        %v3946 = vunpack.c.h.b16 %v3773
        %v3947 = vunpack.c.l.b16 %v3774
        %v3948 = vunpack.c.h.b16 %v3774
        %v3949 = vunpack.c.l.b16 %v3775
        %v3950 = vunpack.c.h.b16 %v3775
        %v3951 = vunpack.c.l.b16 %v3776
        %v3952 = vunpack.c.h.b16 %v3776
        %v3953 = vunpack.c.l.b16 %v3777
        %v3954 = vunpack.c.h.b16 %v3777
        %v3955 = vunpack.c.l.b16 %v3778
        %v3956 = vunpack.c.h.b16 %v3778
        %v3957 = vunpack.c.l.b16 %v3779
        %v3958 = vunpack.c.h.b16 %v3779
        %v3959 = vunpack.c.l.b16 %v3780
        %v3960 = vunpack.c.h.b16 %v3780
        %v3961 = vunpack.c.l.b16 %v3781
        %v3962 = vunpack.c.h.b16 %v3781
        %v3963 = vunpack.c.l.b16 %v3782
        %v3964 = vunpack.c.h.b16 %v3782
        %v3965 = vunpack.c.l.b16 %v3783
        %v3966 = vunpack.c.h.b16 %v3783
        %v3967 = vunpack.c.l.b16 %v3784
        %v3968 = vunpack.c.h.b16 %v3784
        %v3969 = vunpack.c.l.b16 %v3785
        %v3970 = vunpack.c.h.b16 %v3785
        %v3971 = vunpack.c.l.b16 %v3786
        %v3972 = vunpack.c.h.b16 %v3786
        %v3973 = vunpack.c.l.b16 %v3787
        %v3974 = vunpack.c.h.b16 %v3787
        %v3975 = vunpack.c.l.b16 %v3788
        %v3976 = vunpack.c.h.b16 %v3788
        %v3977 = vunpack.c.l.b16 %v3789
        %v3978 = vunpack.c.h.b16 %v3789
        %v3979 = vunpack.c.l.b16 %v3790
        %v3980 = vunpack.c.h.b16 %v3790
        %v3981 = vunpack.c.l.b16 %v3791
        %v3982 = vunpack.c.h.b16 %v3791
        %v3983 = vunpack.c.l.b16 %v3792
        %v3984 = vunpack.c.h.b16 %v3792
        %v3985 = vunpack.c.l.b16 %v3793
        %v3986 = vunpack.c.h.b16 %v3793
        %v3987 = vpack.c.b16 %v3863, %v3859
        %v3988 = vpack.c.b16 %v3864, %v3860
        %v3989 = vpack.c.b16 %v3865, %v3861
        %v3990 = vpack.c.b16 %v3866, %v3862
        %v3991 = vpack.c.b16 %v3871, %v3867
        %v3992 = vpack.c.b16 %v3872, %v3868
        %v3993 = vpack.c.b16 %v3873, %v3869
        %v3994 = vpack.c.b16 %v3874, %v3870
        %v3995 = vpack.c.b16 %v3879, %v3875
        %v3996 = vpack.c.b16 %v3880, %v3876
        %v3997 = vpack.c.b16 %v3881, %v3877
        %v3998 = vpack.c.b16 %v3882, %v3878
        %v3999 = vpack.c.b16 %v3887, %v3883
        %v4000 = vpack.c.b16 %v3888, %v3884
        %v4001 = vpack.c.b16 %v3889, %v3885
        %v4002 = vpack.c.b16 %v3890, %v3886
        %v4003 = vpack.c.b16 %v3895, %v3891
        %v4004 = vpack.c.b16 %v3896, %v3892
        %v4005 = vpack.c.b16 %v3897, %v3893
        %v4006 = vpack.c.b16 %v3898, %v3894
        %v4007 = vpack.c.b16 %v3903, %v3899
        %v4008 = vpack.c.b16 %v3904, %v3900
        %v4009 = vpack.c.b16 %v3905, %v3901
        %v4010 = vpack.c.b16 %v3906, %v3902
        %v4011 = vpack.c.b16 %v3911, %v3907
        %v4012 = vpack.c.b16 %v3912, %v3908
        %v4013 = vpack.c.b16 %v3913, %v3909
        %v4014 = vpack.c.b16 %v3914, %v3910
        %v4015 = vpack.c.b16 %v3919, %v3915
        %v4016 = vpack.c.b16 %v3920, %v3916
        %v4017 = vpack.c.b16 %v3921, %v3917
        %v4018 = vpack.c.b16 %v3922, %v3918
        %v4019 = vpack.c.b16 %v3927, %v3923
        %v4020 = vpack.c.b16 %v3928, %v3924
        %v4021 = vpack.c.b16 %v3929, %v3925
        %v4022 = vpack.c.b16 %v3930, %v3926
        %v4023 = vpack.c.b16 %v3935, %v3931
        %v4024 = vpack.c.b16 %v3936, %v3932
        %v4025 = vpack.c.b16 %v3937, %v3933
        %v4026 = vpack.c.b16 %v3938, %v3934
        %v4027 = vpack.c.b16 %v3943, %v3939
        %v4028 = vpack.c.b16 %v3944, %v3940
        %v4029 = vpack.c.b16 %v3945, %v3941
        %v4030 = vpack.c.b16 %v3946, %v3942
        %v4031 = vpack.c.b16 %v3951, %v3947
        %v4032 = vpack.c.b16 %v3952, %v3948
        %v4033 = vpack.c.b16 %v3953, %v3949
        %v4034 = vpack.c.b16 %v3954, %v3950
        %v4035 = vpack.c.b16 %v3959, %v3955
        %v4036 = vpack.c.b16 %v3960, %v3956
        %v4037 = vpack.c.b16 %v3961, %v3957
        %v4038 = vpack.c.b16 %v3962, %v3958
        %v4039 = vpack.c.b16 %v3967, %v3963
        %v4040 = vpack.c.b16 %v3968, %v3964
        %v4041 = vpack.c.b16 %v3969, %v3965
        %v4042 = vpack.c.b16 %v3970, %v3966
        %v4043 = vpack.c.b16 %v3975, %v3971
        %v4044 = vpack.c.b16 %v3976, %v3972
        %v4045 = vpack.c.b16 %v3977, %v3973
        %v4046 = vpack.c.b16 %v3978, %v3974
        %v4047 = vpack.c.b16 %v3983, %v3979
        %v4048 = vpack.c.b16 %v3984, %v3980
        %v4049 = vpack.c.b16 %v3985, %v3981
        %v4050 = vpack.c.b16 %v3986, %v3982
        %v4116 = vlaneseq
        %v4117 = vshrl.u32 %v4116, 7
        %v4118 = vsub.s32 0, %v4117
        %v4119 = vrot.slane %v3794, %v4118
        %v4120 = vlaneseq
        %v4121 = vshrl.u32 %v4120, 7
        %v4122 = vsub.s32 1, %v4121
        %v4123 = vrot.slane %v3794, %v4122
        %v4124 = vlaneseq
        %v4125 = vshrl.u32 %v4124, 7
        %v4126 = vsub.s32 2, %v4125
        %v4127 = vrot.slane %v3794, %v4126
        %v4128 = vlaneseq
        %v4129 = vshrl.u32 %v4128, 7
        %v4130 = vsub.s32 3, %v4129
        %v4131 = vrot.slane %v3794, %v4130
        %4136 = vmatprep.subr.bf16.mxu0 %v4016
        %4137 = vmatpush1.bf16.msra.mxu0 %v4015
        %4138 = vmatprep.subr.bf16.mxu0 %v4012
        %4139 = vmatpush1.bf16.msra.mxu0 %v4011
        %4140 = vmatprep.subr.bf16.mxu0 %v4008
        %4141 = vmatpush1.bf16.msra.mxu0 %v4007
        %4142 = vmatprep.subr.bf16.mxu0 %v4004
        %4143 = vmatpush1.bf16.msra.mxu0 %v4003
        %4144 = vmatprep.subr.bf16.mxu0 %v4000
        %4145 = vmatpush1.bf16.msra.mxu0 %v3999
        %4146 = vmatprep.subr.bf16.mxu0 %v3996
        %4147 = vmatpush1.bf16.msra.mxu0 %v3995
        %4148 = vmatprep.subr.bf16.mxu0 %v3992
        %4149 = vmatpush1.bf16.msra.mxu0 %v3991
        %4150 = vmatprep.subr.bf16.mxu0 %v3988
        %4151 = vmatpush1.bf16.msra.mxu0 %v3987
        %4152 = vmatprep.subr.bf16.mxu0 %v4048
        %4153 = vmatpush2.bf16.msra.mxu0 %v4047
        %4154 = vmatprep.subr.bf16.mxu0 %v4044
        %4155 = vmatpush2.bf16.msra.mxu0 %v4043
        %4156 = vmatprep.subr.bf16.mxu0 %v4040
        %4157 = vmatpush2.bf16.msra.mxu0 %v4039
        %4158 = vmatprep.subr.bf16.mxu0 %v4036
        %4159 = vmatpush2.bf16.msra.mxu0 %v4035
        %4160 = vmatprep.subr.bf16.mxu0 %v4032
        %4161 = vmatpush2.bf16.msra.mxu0 %v4031
        %4162 = vmatprep.subr.bf16.mxu0 %v4028
        %4163 = vmatpush2.bf16.msra.mxu0 %v4027
        %4164 = vmatprep.subr.bf16.mxu0 %v4024
        %4165 = vmatpush2.bf16.msra.mxu0 %v4023
        %4166 = vmatprep.subr.bf16.mxu0 %v4020
        %4167 = vmatpush2.bf16.msra.mxu0 %v4019
        %4168 = vmatprep.mubr.bf16.mxu0 %v3729
        %4169 = vmatmul.mubr.bf16.gmra.mxu0 %v3728
        %v4170 = vpop.f32.mrf.mxu0
        %v4171 = vadd.f32 %v4119, %v4170
        %v4172 = vpop.f32.mrf.mxu0
        %v4173 = vadd.f32 %v4123, %v4172
        %v4174 = vpop.f32.mrf.mxu0
        %v4175 = vpop.f32.mrf.mxu0
        %4176 = vdwg.mxu0
        %4177 = vmatprep.subr.bf16.mxu0 %v4018
        %4178 = vmatpush1.bf16.msra.mxu0 %v4017
        %4179 = vmatprep.subr.bf16.mxu0 %v4014
        %4180 = vmatpush1.bf16.msra.mxu0 %v4013
        %4181 = vmatprep.subr.bf16.mxu0 %v4010
        %4182 = vmatpush1.bf16.msra.mxu0 %v4009
        %4183 = vmatprep.subr.bf16.mxu0 %v4006
        %4184 = vmatpush1.bf16.msra.mxu0 %v4005
        %4185 = vmatprep.subr.bf16.mxu0 %v4002
        %4186 = vmatpush1.bf16.msra.mxu0 %v4001
        %4187 = vmatprep.subr.bf16.mxu0 %v3998
        %4188 = vmatpush1.bf16.msra.mxu0 %v3997
        %4189 = vmatprep.subr.bf16.mxu0 %v3994
        %4190 = vmatpush1.bf16.msra.mxu0 %v3993
        %4191 = vmatprep.subr.bf16.mxu0 %v3990
        %4192 = vmatpush1.bf16.msra.mxu0 %v3989
        %4193 = vmatprep.subr.bf16.mxu0 %v4050
        %4194 = vmatpush2.bf16.msra.mxu0 %v4049
        %4195 = vmatprep.subr.bf16.mxu0 %v4046
        %4196 = vmatpush2.bf16.msra.mxu0 %v4045
        %4197 = vmatprep.subr.bf16.mxu0 %v4042
        %4198 = vmatpush2.bf16.msra.mxu0 %v4041
        %4199 = vmatprep.subr.bf16.mxu0 %v4038
        %4200 = vmatpush2.bf16.msra.mxu0 %v4037
        %4201 = vmatprep.subr.bf16.mxu0 %v4034
        %4202 = vmatpush2.bf16.msra.mxu0 %v4033
        %4203 = vmatprep.subr.bf16.mxu0 %v4030
        %4204 = vmatpush2.bf16.msra.mxu0 %v4029
        %4205 = vmatprep.subr.bf16.mxu0 %v4026
        %4206 = vmatpush2.bf16.msra.mxu0 %v4025
        %4207 = vmatprep.subr.bf16.mxu0 %v4022
        %4208 = vmatpush2.bf16.msra.mxu0 %v4021
        %4209 = vmatprep.mubr.bf16.mxu0 %v3729
        %4210 = vmatmul.mubr.bf16.gmra.mxu0 %v3728
        %v4211 = vpop.f32.mrf.mxu0
        %v4212 = vadd.f32 %v4127, %v4211
        %v4213 = vpop.f32.mrf.mxu0
        %v4214 = vadd.f32 %v4131, %v4213
        %v4215 = vpop.f32.mrf.mxu0
        %v4216 = vpop.f32.mrf.mxu0
        %4217 = vdwg.mxu0
        %vm4218 = vcmask 1040384
        %v4219 = vsel %vm4218, %v4171, -inf
        %v4220 = vsel %vm4218, %v4173, -inf
        %v4221 = vsel %vm4218, %v4212, -inf
        %v4222 = vsel %vm4218, %v4214, -inf
        %v4223 = vmax.f32 %v4219, %v4220
        %v4224 = vmax.f32 %v4221, %v4222
        %v4225 = vmax.f32 %v4223, %v4224
        %4226 = vmax.xlane.f32.xlu0 %v4225
        %v4227 = vpop.xlane.xlu0 %4226
        %v4228 = vsub.f32 %v4171, %v4227
        %v4229 = vsub.f32 %v4173, %v4227
        %v4230 = vsub.f32 %v4212, %v4227
        %v4231 = vsub.f32 %v4214, %v4227
        %v4232 = vmul.f32 %v4228, 1.442695
        %v4233 = vpow.pop %v4232
        %v4234 = vmul.f32 %v4229, 1.442695
        %v4235 = vpow.pop %v4234
        %v4236 = vmul.f32 %v4230, 1.442695
        %v4237 = vpow.pop %v4236
        %v4238 = vmul.f32 %v4231, 1.442695
        %v4239 = vpow.pop %v4238
        %v4240 = vsel %vm4218, %v4233, 0.0
        %v4241 = vsel %vm4218, %v4235, 0.0
        %v4242 = vadd.f32 %v4240, %v4241
        %v4243 = vsel %vm4218, %v4237, 0.0
        %v4244 = vadd.f32 %v4242, %v4243
        %v4245 = vsel %vm4218, %v4239, 0.0
        %v4246 = vadd.f32 %v4244, %v4245
        %4247 = vadd.xlane.f32.xlu0 %v4246
        %v4248 = vpop.xlane.xlu0 %4247
        %v4249 = vlog2.pop %v4248
        %v4250 = vmul.f32 %v4249, 0.6931472
        %v4251 = vsub.f32 %v4228, %v4250
        %v4252 = vsub.f32 %v4229, %v4250
        %v4253 = vsub.f32 %v4230, %v4250
        %v4254 = vsub.f32 %v4231, %v4250
        %v4259 = vcombine.low %v4251, %v4252
        %v4260 = vcombine.low %v4253, %v4254
        %v4262 = vunpack.c.l.s4 1966171168
        %v4263 = vunpack.c.0.s8 %v4262
        %v4264 = vlaneseq
        %v4265 = vshrl.u32 %v4264, 7
        %v4266 = vsub.s32 %v4263, %v4265
        %v4267 = vrot.slane %v4259, %v4266
        %v4269 = vunpack.c.l.s4 1966171168
        %v4270 = vunpack.c.0.s8 %v4269
        %v4271 = vlaneseq
        %v4272 = vshrl.u32 %v4271, 7
        %v4273 = vsub.s32 %v4270, %v4272
        %v4274 = vrot.slane %v4260, %v4273
        %v4275 = vcombine.low %v4267, %v4274
        %v4277 = vunpack.c.l.s4 1966171168
        %v4278 = vunpack.c.0.s8 %v4277
        %v4279 = vlaneseq
        %v4280 = vshrl.u32 %v4279, 7
        %v4281 = vsub.s32 %v4278, %v4280
        %v4282 = vrot.slane %v4275, %v4281
        %vm4284 = vcmp.lt.s32.totalorder %v3702, 512
        %vm4285 = vmand %vm3703, %vm4284
        %s4286 = sshra.s32 %s46, 2
        %s4287 = sand.u32 %s46, 3
        %s4288 = sshra.s32 %s46, 2
        %s4289 = sand.u32 %s46, 3
        %s4290 = smul.u32 %s4286, 4
        %s4291 = smul.u32 %s4290, 4
        %s4292 = sadd.s32 %s4291, %s4289
        %s4293 = scalar_lea.vmem [#allocation22], %s4292
        %4294 = vst.msk [vmem:[%s4293] ss:$4 sm:$0xf] %vm4285, %v4282
        // Predicated region
        $region121: #{tpu_custom_call.1} parent=79 // pred_check
          %p4295 = pneg %p381
        $region122: #{tpu_custom_call.1} parent=79 // pred_check_branch
          %4297 = sbr.rel (%p4295) target = $region124
        $region123: #{tpu_custom_call.1} parent=79 // pred_region
          %s4299 = ssub.s32 256, 256
          %4300 = vsyncadd [#allocation9], %s4299
          %s4302 = sshll.u32 [#allocation22], 4
          %s4303 = int_to_ptr.vmem [resolvable:$true] %s4302
          %4305 = dma.vmem_to_hbm [thread:$0]  %s4303, 256, %s16, [#allocation9]
        $region124: #{tpu_custom_call.1} parent=79 // pred_fallthru
          _
        // Predicated region
        $region125: #{tpu_custom_call.1} parent=79 // pred_check
          %p4306 = pneg %p402
        $region126: #{tpu_custom_call.1} parent=79 // pred_check_branch
          %4308 = sbr.rel (%p4306) target = $region128
        $region127: #{tpu_custom_call.1} parent=79 // pred_region
          %s4310 = ssub.s32 32, 32
          %4311 = vsyncadd [#allocation24], %s4310
          %s4313 = sshll.u32 [#allocation23], 4
          %s4314 = int_to_ptr.vmem [resolvable:$true] %s4313
          %4316 = dma.vmem_to_hbm [thread:$0]  %s4314, 32, %s17, [#allocation24]
        $region128: #{tpu_custom_call.1} parent=79 // pred_fallthru
          _
        // Predicated region
        $region129: #{tpu_custom_call.1} parent=79 // pred_check
          %p4317 = pneg %p423
        $region130: #{tpu_custom_call.1} parent=79 // pred_check_branch
          %4319 = sbr.rel (%p4317) target = $region132
        $region131: #{tpu_custom_call.1} parent=79 // pred_region
          %s4321 = ssub.s32 32, 32
          %4322 = vsyncadd [#allocation24], %s4321
          %s4324 = sshll.u32 [#allocation25], 4
          %s4325 = int_to_ptr.vmem [resolvable:$true] %s4324
          %4327 = dma.vmem_to_hbm [thread:$0]  %s4325, 32, %s18, [#allocation24]
        $region132: #{tpu_custom_call.1} parent=79 // pred_fallthru
          _
        // Predicated region
        $region133: #{tpu_custom_call.1} parent=79 // pred_check
          %p4328 = pneg %p444
        $region134: #{tpu_custom_call.1} parent=79 // pred_check_branch
          %4330 = sbr.rel (%p4328) target = $region136
        $region135: #{tpu_custom_call.1} parent=79 // pred_region
          _
        $region136: #{tpu_custom_call.1} parent=79 // pred_fallthru
          _
        // Predicated region
        $region137: #{tpu_custom_call.1} parent=79 // pred_check
          %p4331 = pneg %p381
        $region138: #{tpu_custom_call.1} parent=79 // pred_check_branch
          %4333 = sbr.rel (%p4331) target = $region140
        $region139: #{tpu_custom_call.1} parent=79 // pred_region
          %4334 = dma.done [#allocation9], 256
        $region140: #{tpu_custom_call.1} parent=79 // pred_fallthru
          _
        // Predicated region
        $region141: #{tpu_custom_call.1} parent=79 // pred_check
          %p4335 = pneg %p402
        $region142: #{tpu_custom_call.1} parent=79 // pred_check_branch
          %4337 = sbr.rel (%p4335) target = $region144
        $region143: #{tpu_custom_call.1} parent=79 // pred_region
          %4338 = dma.done [#allocation24], 32
        $region144: #{tpu_custom_call.1} parent=79 // pred_fallthru
          _
        // Predicated region
        $region145: #{tpu_custom_call.1} parent=79 // pred_check
          %p4339 = pneg %p423
        $region146: #{tpu_custom_call.1} parent=79 // pred_check_branch
          %4341 = sbr.rel (%p4339) target = $region148
        $region147: #{tpu_custom_call.1} parent=79 // pred_region
          %4342 = dma.done [#allocation24], 32
        $region148: #{tpu_custom_call.1} parent=79 // pred_fallthru
          _
        // Predicated region
        $region149: #{tpu_custom_call.1} parent=79 // pred_check
          %p4343 = pneg %p444
        $region150: #{tpu_custom_call.1} parent=79 // pred_check_branch
          %4345 = sbr.rel (%p4343) target = $region152
        $region151: #{tpu_custom_call.1} parent=79 // pred_region
          _
        $region152: #{tpu_custom_call.1} parent=79 // pred_fallthru
          _
      $region80: #{tpu_custom_call.1} parent=5 // pred_fallthru
        _
      %p4346 = scmp.le.s32.totalorder 2, %s41
      // Predicated region
      $region153: #{tpu_custom_call.1} parent=5 // pred_check
        %p4347 = pneg %p4346
      $region154: #{tpu_custom_call.1} parent=5 // pred_check_branch
        %4349 = sbr.rel (%p4347) target = $region156
      $region155: #{tpu_custom_call.1} parent=5 // pred_region
        %s4350 = ssub.s32 %s41, 2
      $region156: #{tpu_custom_call.1} parent=5 // pred_fallthru
        _
    $region6: #{tpu_custom_call.1} parent=1 // loop_footer
      %s45 = sadd.s32 1, %s41
    $region7: #{tpu_custom_call.1} parent=1 // loop_footer_branch
      %40 = sbr.rel target = $region3
    $region8: #{tpu_custom_call.1} parent=1 // loop_exit
      _
    %4351 = vsyncpa [#allocation8], 1
    %s4352 = scalar_lea.sflag [#allocation8], 1
    %4353 = vsyncpa %s4352, 1
    %4354 = vsyncpa [#allocation11], 1
    %4355 = vsyncpa [#allocation14], 1
    %4356 = vsyncpa [#allocation17], 1
    %4357 = vsyncpa [#allocation20], 1
    %4358 = vsyncpa [#allocation9], 1
    %s4359 = scalar_lea.sflag [#allocation9], 1
    %4360 = vsyncpa %s4359, 1
    %4361 = vsyncpa [#allocation24], 1

</llo_original>
